<compile_context>
chip_gen: v6e
topology: v6e:2x2x1
jax: 0.10.0
libtpu: 0.0.40
codegen_flags: <defaults>
</compile_context>

<pallas_src>
import jax
import jax.numpy as jnp
from jax.experimental import pallas as pl
from jax.experimental.pallas import tpu as pltpu

# ---- module hyper-parameters (KANLinear defaults) ---------------------------
IN_FEATURES = 16
OUT_FEATURES = 32
GRID_SIZE = 5
SPLINE_ORDER = 3
SCALE_NOISE = 0.1
SCALE_BASE = 1.0
SCALE_SPLINE = 1.0
GRID_RANGE = (-1.0, 1.0)

N_COEFF = GRID_SIZE + SPLINE_ORDER            # 8  per-input spline coefficients
N_GRID = GRID_SIZE + 2 * SPLINE_ORDER + 1     # 12 knot-vector length


# ---- Pallas kernel ----------------------------------------------------------
def kan_linear_kernel(xT_ref, g_ref, il1_ref, ir1_ref, il2_ref, ir2_ref,
                      il3_ref, ir3_ref, wf_ref, o_ref):
    # xT_ref : (IN, TB)               input, batch on lanes
    # g_ref  : (N_GRID, IN, 1)        knots, coefficient axis leading
    # il/ir  : (N_GRID-k-1, IN, 1)    precomputed knot-difference reciprocals
    # wf_ref : (OUT, (N_COEFF+1)*IN)  fused [spline (coeff-major) | base] weight
    # o_ref  : (OUT, TB)              output, batch on lanes (lane-dense stores)
    xT = xT_ref[...]                                     # (IN, TB) f32
    gb = g_ref[...]                                      # (N_GRID, IN, 1)
    in_features, tb = xT.shape
    xe = xT[None, :, :]                                  # (1, IN, TB)

    # base-branch activation: SiLU(x) = x * sigmoid(x), full-width VPU/EUP
    silu = xT / (1.0 + jnp.exp(-xT))                     # (IN, TB)

    # Cox-de Boor recursion, coefficient axis leading -> leading-dim slices are
    # free views; all knot reciprocals come precomputed (multiply, not divide).
    bases = ((xe >= gb[:-1]) & (xe < gb[1:])).astype(jnp.float32)  # (N_GRID-1, IN, TB)
    inv_l = (il1_ref[...], il2_ref[...], il3_ref[...])
    inv_r = (ir1_ref[...], ir2_ref[...], ir3_ref[...])
    for k in range(1, SPLINE_ORDER + 1):                 # static -> unrolled
        left = (xe - gb[: -(k + 1)]) * inv_l[k - 1]
        right = (gb[k + 1:] - xe) * inv_r[k - 1]
        bases = left * bases[:-1] + right * bases[1:]
    # bases: (N_COEFF, IN, TB). Stack SiLU as an extra "level" so base + spline
    # become one fused contraction.
    combined = jnp.concatenate([bases, silu[None]], axis=0)        # (N_COEFF+1, IN, TB)
    combined = combined.reshape((N_COEFF + 1) * in_features, tb)   # (144, TB)

    # single fused MXU contraction: (OUT, 144) @ (144, TB)
    o_ref[...] = jnp.dot(wf_ref[...], combined,
                         preferred_element_type=jnp.float32,
                         precision=jax.lax.Precision.HIGHEST).astype(o_ref.dtype)


# ---- tile selection (per TPU generation) ------------------------------------
def _pick_tile_b(batch):
    try:
        kind = jax.devices()[0].device_kind.lower()
    except Exception:
        kind = ""
    dual_tc = ("v7" in kind) or ("7x" in kind)     # v7x: 2 TensorCores / chip
    num_cores = 2 if dual_tc else 1
    cap = 2048 if dual_tc else 4096                # v7x has only 64 MiB VMEM
    if batch % 128 != 0:
        return batch                               # single full-width step
    candidates = [t for t in range(128, min(batch, cap) + 1, 128)
                  if batch % t == 0 and (batch // t) % num_cores == 0]
    return max(candidates) if candidates else batch


# ---- wrappers ----------------------------------------------------------------
def kan_linear_fm(xT, grid, base_weight, spline_weight, *, tile_b=None):
    """Feature-major forward: xT (IN, B) -> (OUT, B). No layout transposes."""
    in_features, batch = xT.shape
    out_features = base_weight.shape[0]
    n_coeff = spline_weight.shape[2]
    assert grid.shape == (in_features, N_GRID) and n_coeff == N_COEFF

    if tile_b is None:
        tile_b = _pick_tile_b(batch)
    if tile_b > batch or batch % tile_b != 0:
        tile_b = batch

    # grid-only precompute (once, outside the kernel)
    gT = grid.T.astype(jnp.float32)                        # (N_GRID, IN)
    g3 = gT[:, :, None]                                    # (N_GRID, IN, 1)
    invs = []
    for k in range(1, SPLINE_ORDER + 1):
        inv_l = 1.0 / (gT[k:-1] - gT[: -(k + 1)])          # (N_GRID-k-1, IN)
        inv_r = 1.0 / (gT[k + 1:] - gT[1:-k])              # (N_GRID-k-1, IN)
        invs += [inv_l[:, :, None], inv_r[:, :, None]]

    # fused weight: [spline coeff-major | base] -> (OUT, (N_COEFF+1)*IN)
    swf = spline_weight.transpose(0, 2, 1).reshape(out_features,
                                                   n_coeff * in_features)
    wf = jnp.concatenate([swf, base_weight], axis=1)

    k_fused = (n_coeff + 1) * in_features
    cost = pl.CostEstimate(
        flops=2 * batch * out_features * k_fused
              + 12 * batch * in_features * n_coeff,
        transcendentals=batch * in_features,
        bytes_accessed=4 * (batch * in_features + batch * out_features
                            + out_features * k_fused
                            + 8 * in_features * N_GRID),
    )

    const3 = lambda i: (0, 0, 0)
    in_specs = [pl.BlockSpec((in_features, tile_b), lambda i: (0, i)),
                pl.BlockSpec(g3.shape, const3)]
    in_specs += [pl.BlockSpec(a.shape, const3) for a in invs]
    in_specs += [pl.BlockSpec(wf.shape, lambda i: (0, 0))]

    return pl.pallas_call(
        kan_linear_kernel,
        out_shape=jax.ShapeDtypeStruct((out_features, batch), xT.dtype),
        grid=(batch // tile_b,),
        in_specs=in_specs,
        out_specs=pl.BlockSpec((out_features, tile_b), lambda i: (0, i)),
        compiler_params=pltpu.CompilerParams(dimension_semantics=("parallel",)),
        cost_estimate=cost,
    )(xT, g3, *invs, wf)


def kan_linear(x, grid, base_weight, spline_weight, *, tile_b=None):
    """Module-compatible forward: x (B, IN) -> (B, OUT).

    The two transposes are layout plumbing only; producers/consumers that can
    work feature-major should call kan_linear_fm directly to avoid them.
    """
    return kan_linear_fm(x.T, grid, base_weight, spline_weight,
                         tile_b=tile_b).T


# ---- pure-JAX reference (correctness check) ----------------------------------
def _b_splines_ref(x, grid):
    xe = x[:, :, None]
    bases = ((xe >= grid[:, :-1]) & (xe < grid[:, 1:])).astype(x.dtype)
    for k in range(1, SPLINE_ORDER + 1):
        bases = ((xe - grid[:, : -(k + 1)]) / (grid[:, k:-1] - grid[:, : -(k + 1)])
                 * bases[:, :, :-1]
                 + (grid[:, k + 1:] - xe) / (grid[:, k + 1:] - grid[:, 1:-k])
                 * bases[:, :, 1:])
    return bases


def _kan_ref(x, grid, base_weight, spline_weight):
    hi = jax.lax.Precision.HIGHEST
    base_out = jnp.dot(jax.nn.silu(x), base_weight.T, precision=hi)
    spl = _b_splines_ref(x, grid).reshape(x.shape[0], -1)
    spline_out = jnp.dot(spl, spline_weight.reshape(spline_weight.shape[0], -1).T,
                         precision=hi)
    return base_out + spline_out


# ---- main --------------------------------------------------------------------
if __name__ == "__main__":
    key = jax.random.PRNGKey(0)
    k_x, k_spline = jax.random.split(key)

    B = 512
    x = jax.random.uniform(k_x, (B, IN_FEATURES), dtype=jnp.float32,
                           minval=-1.0, maxval=1.0)

    # knot grid: arange(-K, G+K+1) * h + grid_range[0], expanded over in_features
    h = (GRID_RANGE[1] - GRID_RANGE[0]) / GRID_SIZE
    knots = (jnp.arange(-SPLINE_ORDER, GRID_SIZE + SPLINE_ORDER + 1,
                        dtype=jnp.float32) * h + GRID_RANGE[0])
    grid = jnp.broadcast_to(knots, (IN_FEATURES, N_GRID))

    base_weight = jnp.full((OUT_FEATURES, IN_FEATURES), SCALE_BASE, jnp.float32)
    # TODO(synk): reference init runs torch.linalg.lstsq (curve2coeff) on noise;
    # init-time only -- replaced with deterministic values of the same
    # shape/scale (does not affect forward-pass kernel semantics).
    spline_weight = (SCALE_SPLINE * SCALE_NOISE / GRID_SIZE) * (
        jax.random.uniform(k_spline, (OUT_FEATURES, IN_FEATURES, N_COEFF),
                           dtype=jnp.float32) - 0.5)

    out = kan_linear(x, grid, base_weight, spline_weight)
    out = jax.block_until_ready(out)

    ref = _kan_ref(x, grid, base_weight, spline_weight)
    assert out.shape == (B, OUT_FEATURES)
    assert jnp.allclose(out, ref, atol=1e-5, rtol=1e-5), \
        float(jnp.max(jnp.abs(out - ref)))

    print("KERNEL_OK")
</pallas_src>

<mosaic_0001>
module attributes {stable_mosaic.version = 11 : i64} {
  func.func @kan_linear_kernel(%arg0: i32, %arg1: memref<16x512xf32, #tpu.memory_space<vmem>>, %arg2: memref<12x16x1xf32, #tpu.memory_space<vmem>>, %arg3: memref<10x16x1xf32, #tpu.memory_space<vmem>>, %arg4: memref<10x16x1xf32, #tpu.memory_space<vmem>>, %arg5: memref<9x16x1xf32, #tpu.memory_space<vmem>>, %arg6: memref<9x16x1xf32, #tpu.memory_space<vmem>>, %arg7: memref<8x16x1xf32, #tpu.memory_space<vmem>>, %arg8: memref<8x16x1xf32, #tpu.memory_space<vmem>>, %arg9: memref<32x144xf32, #tpu.memory_space<vmem>>, %arg10: memref<32x512xf32, #tpu.memory_space<vmem>>) attributes {dimension_semantics = [#tpu.dimension_semantics<parallel>], iteration_bounds = array<i64: 1>, scalar_prefetch = 0 : i64, scratch_operands = 0 : i64, tpu.core_type = #tpu.core_type<tc>, window_params = [{transform_indices = @transform_0, window_bounds = array<i64: 16, 512>}, {pipeline_mode = #tpu.pipeline_mode<synchronous>, transform_indices = @transform_1, window_bounds = array<i64: 12, 16, 1>}, {pipeline_mode = #tpu.pipeline_mode<synchronous>, transform_indices = @transform_2, window_bounds = array<i64: 10, 16, 1>}, {pipeline_mode = #tpu.pipeline_mode<synchronous>, transform_indices = @transform_3, window_bounds = array<i64: 10, 16, 1>}, {pipeline_mode = #tpu.pipeline_mode<synchronous>, transform_indices = @transform_4, window_bounds = array<i64: 9, 16, 1>}, {pipeline_mode = #tpu.pipeline_mode<synchronous>, transform_indices = @transform_5, window_bounds = array<i64: 9, 16, 1>}, {pipeline_mode = #tpu.pipeline_mode<synchronous>, transform_indices = @transform_6, window_bounds = array<i64: 8, 16, 1>}, {pipeline_mode = #tpu.pipeline_mode<synchronous>, transform_indices = @transform_7, window_bounds = array<i64: 8, 16, 1>}, {pipeline_mode = #tpu.pipeline_mode<synchronous>, transform_indices = @transform_8, window_bounds = array<i64: 32, 144>}, {transform_indices = @transform_9, window_bounds = array<i64: 32, 512>}]} {
    %c0 = arith.constant 0 : index
    %c0_0 = arith.constant 0 : index
    %0 = vector.load %arg1[%c0, %c0_0] : memref<16x512xf32, #tpu.memory_space<vmem>>, vector<16x512xf32>
    %c0_1 = arith.constant 0 : index
    %c0_2 = arith.constant 0 : index
    %c0_3 = arith.constant 0 : index
    %1 = vector.load %arg2[%c0_1, %c0_2, %c0_3] : memref<12x16x1xf32, #tpu.memory_space<vmem>>, vector<12x16x1xf32>
    %2 = vector.shape_cast %0 : vector<16x512xf32> to vector<1x16x512xf32>
    %cst = arith.constant 0.000000e+00 : f32
    %3 = vector.broadcast %cst : f32 to vector<16x512xf32>
    %4 = arith.subf %3, %0 : vector<16x512xf32>
    %5 = math.exp %4 : vector<16x512xf32>
    %cst_4 = arith.constant 1.000000e+00 : f32
    %6 = vector.broadcast %cst_4 : f32 to vector<16x512xf32>
    %7 = arith.addf %6, %5 : vector<16x512xf32>
    %8 = arith.divf %0, %7 : vector<16x512xf32>
    %9 = vector.extract_strided_slice %1 {offsets = [0, 0, 0], sizes = [11, 16, 1], strides = [1, 1, 1]} : vector<12x16x1xf32> to vector<11x16x1xf32>
    %10 = vector.broadcast %2 : vector<1x16x512xf32> to vector<11x16x512xf32>
    %11 = vector.broadcast %9 : vector<11x16x1xf32> to vector<11x16x512xf32>
    %12 = arith.cmpf oge, %10, %11 : vector<11x16x512xf32>
    %13 = vector.extract_strided_slice %1 {offsets = [1, 0, 0], sizes = [11, 16, 1], strides = [1, 1, 1]} : vector<12x16x1xf32> to vector<11x16x1xf32>
    %14 = vector.broadcast %2 : vector<1x16x512xf32> to vector<11x16x512xf32>
    %15 = vector.broadcast %13 : vector<11x16x1xf32> to vector<11x16x512xf32>
    %16 = arith.cmpf olt, %14, %15 : vector<11x16x512xf32>
    %17 = arith.andi %12, %16 : vector<11x16x512xi1>
    %18 = arith.extui %17 : vector<11x16x512xi1> to vector<11x16x512xi32>
    %19 = arith.sitofp %18 : vector<11x16x512xi32> to vector<11x16x512xf32>
    %c0_5 = arith.constant 0 : index
    %c0_6 = arith.constant 0 : index
    %c0_7 = arith.constant 0 : index
    %20 = vector.load %arg3[%c0_5, %c0_6, %c0_7] : memref<10x16x1xf32, #tpu.memory_space<vmem>>, vector<10x16x1xf32>
    %c0_8 = arith.constant 0 : index
    %c0_9 = arith.constant 0 : index
    %c0_10 = arith.constant 0 : index
    %21 = vector.load %arg5[%c0_8, %c0_9, %c0_10] : memref<9x16x1xf32, #tpu.memory_space<vmem>>, vector<9x16x1xf32>
    %c0_11 = arith.constant 0 : index
    %c0_12 = arith.constant 0 : index
    %c0_13 = arith.constant 0 : index
    %22 = vector.load %arg7[%c0_11, %c0_12, %c0_13] : memref<8x16x1xf32, #tpu.memory_space<vmem>>, vector<8x16x1xf32>
    %c0_14 = arith.constant 0 : index
    %c0_15 = arith.constant 0 : index
    %c0_16 = arith.constant 0 : index
    %23 = vector.load %arg4[%c0_14, %c0_15, %c0_16] : memref<10x16x1xf32, #tpu.memory_space<vmem>>, vector<10x16x1xf32>
    %c0_17 = arith.constant 0 : index
    %c0_18 = arith.constant 0 : index
    %c0_19 = arith.constant 0 : index
    %24 = vector.load %arg6[%c0_17, %c0_18, %c0_19] : memref<9x16x1xf32, #tpu.memory_space<vmem>>, vector<9x16x1xf32>
    %c0_20 = arith.constant 0 : index
    %c0_21 = arith.constant 0 : index
    %c0_22 = arith.constant 0 : index
    %25 = vector.load %arg8[%c0_20, %c0_21, %c0_22] : memref<8x16x1xf32, #tpu.memory_space<vmem>>, vector<8x16x1xf32>
    %26 = vector.extract_strided_slice %1 {offsets = [0, 0, 0], sizes = [10, 16, 1], strides = [1, 1, 1]} : vector<12x16x1xf32> to vector<10x16x1xf32>
    %27 = vector.broadcast %2 : vector<1x16x512xf32> to vector<10x16x512xf32>
    %28 = vector.broadcast %26 : vector<10x16x1xf32> to vector<10x16x512xf32>
    %29 = arith.subf %27, %28 : vector<10x16x512xf32>
    %30 = vector.broadcast %20 : vector<10x16x1xf32> to vector<10x16x512xf32>
    %31 = arith.mulf %29, %30 : vector<10x16x512xf32>
    %32 = vector.extract_strided_slice %1 {offsets = [2, 0, 0], sizes = [10, 16, 1], strides = [1, 1, 1]} : vector<12x16x1xf32> to vector<10x16x1xf32>
    %33 = vector.broadcast %32 : vector<10x16x1xf32> to vector<10x16x512xf32>
    %34 = vector.broadcast %2 : vector<1x16x512xf32> to vector<10x16x512xf32>
    %35 = arith.subf %33, %34 : vector<10x16x512xf32>
    %36 = vector.broadcast %23 : vector<10x16x1xf32> to vector<10x16x512xf32>
    %37 = arith.mulf %35, %36 : vector<10x16x512xf32>
    %38 = vector.extract_strided_slice %19 {offsets = [0, 0, 0], sizes = [10, 16, 512], strides = [1, 1, 1]} : vector<11x16x512xf32> to vector<10x16x512xf32>
    %39 = arith.mulf %31, %38 : vector<10x16x512xf32>
    %40 = vector.extract_strided_slice %19 {offsets = [1, 0, 0], sizes = [10, 16, 512], strides = [1, 1, 1]} : vector<11x16x512xf32> to vector<10x16x512xf32>
    %41 = arith.mulf %37, %40 : vector<10x16x512xf32>
    %42 = arith.addf %39, %41 : vector<10x16x512xf32>
    %43 = vector.extract_strided_slice %1 {offsets = [0, 0, 0], sizes = [9, 16, 1], strides = [1, 1, 1]} : vector<12x16x1xf32> to vector<9x16x1xf32>
    %44 = vector.broadcast %2 : vector<1x16x512xf32> to vector<9x16x512xf32>
    %45 = vector.broadcast %43 : vector<9x16x1xf32> to vector<9x16x512xf32>
    %46 = arith.subf %44, %45 : vector<9x16x512xf32>
    %47 = vector.broadcast %21 : vector<9x16x1xf32> to vector<9x16x512xf32>
    %48 = arith.mulf %46, %47 : vector<9x16x512xf32>
    %49 = vector.extract_strided_slice %1 {offsets = [3, 0, 0], sizes = [9, 16, 1], strides = [1, 1, 1]} : vector<12x16x1xf32> to vector<9x16x1xf32>
    %50 = vector.broadcast %49 : vector<9x16x1xf32> to vector<9x16x512xf32>
    %51 = vector.broadcast %2 : vector<1x16x512xf32> to vector<9x16x512xf32>
    %52 = arith.subf %50, %51 : vector<9x16x512xf32>
    %53 = vector.broadcast %24 : vector<9x16x1xf32> to vector<9x16x512xf32>
    %54 = arith.mulf %52, %53 : vector<9x16x512xf32>
    %55 = vector.extract_strided_slice %42 {offsets = [0, 0, 0], sizes = [9, 16, 512], strides = [1, 1, 1]} : vector<10x16x512xf32> to vector<9x16x512xf32>
    %56 = arith.mulf %48, %55 : vector<9x16x512xf32>
    %57 = vector.extract_strided_slice %42 {offsets = [1, 0, 0], sizes = [9, 16, 512], strides = [1, 1, 1]} : vector<10x16x512xf32> to vector<9x16x512xf32>
    %58 = arith.mulf %54, %57 : vector<9x16x512xf32>
    %59 = arith.addf %56, %58 : vector<9x16x512xf32>
    %60 = vector.extract_strided_slice %1 {offsets = [0, 0, 0], sizes = [8, 16, 1], strides = [1, 1, 1]} : vector<12x16x1xf32> to vector<8x16x1xf32>
    %61 = vector.broadcast %2 : vector<1x16x512xf32> to vector<8x16x512xf32>
    %62 = vector.broadcast %60 : vector<8x16x1xf32> to vector<8x16x512xf32>
    %63 = arith.subf %61, %62 : vector<8x16x512xf32>
    %64 = vector.broadcast %22 : vector<8x16x1xf32> to vector<8x16x512xf32>
    %65 = arith.mulf %63, %64 : vector<8x16x512xf32>
    %66 = vector.extract_strided_slice %1 {offsets = [4, 0, 0], sizes = [8, 16, 1], strides = [1, 1, 1]} : vector<12x16x1xf32> to vector<8x16x1xf32>
    %67 = vector.broadcast %66 : vector<8x16x1xf32> to vector<8x16x512xf32>
    %68 = vector.broadcast %2 : vector<1x16x512xf32> to vector<8x16x512xf32>
    %69 = arith.subf %67, %68 : vector<8x16x512xf32>
    %70 = vector.broadcast %25 : vector<8x16x1xf32> to vector<8x16x512xf32>
    %71 = arith.mulf %69, %70 : vector<8x16x512xf32>
    %72 = vector.extract_strided_slice %59 {offsets = [0, 0, 0], sizes = [8, 16, 512], strides = [1, 1, 1]} : vector<9x16x512xf32> to vector<8x16x512xf32>
    %73 = arith.mulf %65, %72 : vector<8x16x512xf32>
    %74 = vector.extract_strided_slice %59 {offsets = [1, 0, 0], sizes = [8, 16, 512], strides = [1, 1, 1]} : vector<9x16x512xf32> to vector<8x16x512xf32>
    %75 = arith.mulf %71, %74 : vector<8x16x512xf32>
    %76 = arith.addf %73, %75 : vector<8x16x512xf32>
    %77 = vector.shape_cast %8 : vector<16x512xf32> to vector<1x16x512xf32>
    %78 = tpu.concatenate %76, %77 in 0 : vector<8x16x512xf32>, vector<1x16x512xf32> -> vector<9x16x512xf32>
    %79 = vector.shape_cast %78 : vector<9x16x512xf32> to vector<144x512xf32>
    %c0_23 = arith.constant 0 : index
    %c0_24 = arith.constant 0 : index
    %80 = vector.load %arg9[%c0_23, %c0_24] : memref<32x144xf32, #tpu.memory_space<vmem>>, vector<32x144xf32>
    %cst_25 = arith.constant dense<0.000000e+00> : vector<32x512xf32>
    %81 = tpu.matmul %80, %79, %cst_25 {dimension_numbers = #tpu.dot_dimension_numbers<[1], [0], [0], [1], [0, 0, 1, 1], [], []>, precision = #tpu.contract_precision<fp32>} : vector<32x144xf32>, vector<144x512xf32>, vector<32x512xf32> -> vector<32x512xf32>
    %c0_26 = arith.constant 0 : index
    %c0_27 = arith.constant 0 : index
    %82 = vector.load %arg10[%c0_26, %c0_27] : memref<32x512xf32, #tpu.memory_space<vmem>>, vector<32x512xf32>
    tpu.vector_store %arg10[%c0_26, %c0_27], %81 {strides = array<i32>} : memref<32x512xf32, #tpu.memory_space<vmem>>, vector<32x512xf32>,
    return
  }
  func.func @transform_0(%arg0: i32) -> (i32, i32) {
    %c0_i32 = arith.constant 0 : i32
    %c0_i32_0 = arith.constant 0 : i32
    return %c0_i32, %arg0 : i32, i32
  }
  func.func @transform_1(%arg0: i32) -> (i32, i32, i32) {
    %c0_i32 = arith.constant 0 : i32
    %c0_i32_0 = arith.constant 0 : i32
    %c0_i32_1 = arith.constant 0 : i32
    %c0_i32_2 = arith.constant 0 : i32
    return %c0_i32, %c0_i32_0, %c0_i32_1 : i32, i32, i32
  }
  func.func @transform_2(%arg0: i32) -> (i32, i32, i32) {
    %c0_i32 = arith.constant 0 : i32
    %c0_i32_0 = arith.constant 0 : i32
    %c0_i32_1 = arith.constant 0 : i32
    %c0_i32_2 = arith.constant 0 : i32
    return %c0_i32, %c0_i32_0, %c0_i32_1 : i32, i32, i32
  }
  func.func @transform_3(%arg0: i32) -> (i32, i32, i32) {
    %c0_i32 = arith.constant 0 : i32
    %c0_i32_0 = arith.constant 0 : i32
    %c0_i32_1 = arith.constant 0 : i32
    %c0_i32_2 = arith.constant 0 : i32
    return %c0_i32, %c0_i32_0, %c0_i32_1 : i32, i32, i32
  }
  func.func @transform_4(%arg0: i32) -> (i32, i32, i32) {
    %c0_i32 = arith.constant 0 : i32
    %c0_i32_0 = arith.constant 0 : i32
    %c0_i32_1 = arith.constant 0 : i32
    %c0_i32_2 = arith.constant 0 : i32
    return %c0_i32, %c0_i32_0, %c0_i32_1 : i32, i32, i32
  }
  func.func @transform_5(%arg0: i32) -> (i32, i32, i32) {
    %c0_i32 = arith.constant 0 : i32
    %c0_i32_0 = arith.constant 0 : i32
    %c0_i32_1 = arith.constant 0 : i32
    %c0_i32_2 = arith.constant 0 : i32
    return %c0_i32, %c0_i32_0, %c0_i32_1 : i32, i32, i32
  }
  func.func @transform_6(%arg0: i32) -> (i32, i32, i32) {
    %c0_i32 = arith.constant 0 : i32
    %c0_i32_0 = arith.constant 0 : i32
    %c0_i32_1 = arith.constant 0 : i32
    %c0_i32_2 = arith.constant 0 : i32
    return %c0_i32, %c0_i32_0, %c0_i32_1 : i32, i32, i32
  }
  func.func @transform_7(%arg0: i32) -> (i32, i32, i32) {
    %c0_i32 = arith.constant 0 : i32
    %c0_i32_0 = arith.constant 0 : i32
    %c0_i32_1 = arith.constant 0 : i32
    %c0_i32_2 = arith.constant 0 : i32
    return %c0_i32, %c0_i32_0, %c0_i32_1 : i32, i32, i32
  }
  func.func @transform_8(%arg0: i32) -> (i32, i32) {
    %c0_i32 = arith.constant 0 : i32
    %c0_i32_0 = arith.constant 0 : i32
    %c0_i32_1 = arith.constant 0 : i32
    return %c0_i32, %c0_i32_0 : i32, i32
  }
  func.func @transform_9(%arg0: i32) -> (i32, i32) {
    %c0_i32 = arith.constant 0 : i32
    %c0_i32_0 = arith.constant 0 : i32
    return %c0_i32, %arg0 : i32, i32
  }
}

</mosaic_0001>

<llo_original>
// kernel: tpu_custom_call.1
$region0: #{tpu_custom_call.1}
  #allocation0 [shape = 'u32[]', space=smem, size = 0x4, offset = 0x4, fixed_abs, tag = 'smem constant byte address 0x4 - core index']
  #allocation1 [shape = 'u32[144,128]{1,0:T(1,128)}', space=vmem, size = 0x12000, scoped, tag = 'internal scratch']
  %s0 = inlined_call_operand.vmem [shape: f32[16,512], index: 0, kind: input, shape index: {}]
  %s1 = inlined_call_operand.vmem [shape: f32[12,16,1], index: 1, kind: input, shape index: {}]
  %s2 = inlined_call_operand.vmem [shape: f32[10,16,1], index: 2, kind: input, shape index: {}]
  %s3 = inlined_call_operand.vmem [shape: f32[10,16,1], index: 3, kind: input, shape index: {}]
  %s4 = inlined_call_operand.vmem [shape: f32[9,16,1], index: 4, kind: input, shape index: {}]
  %s5 = inlined_call_operand.vmem [shape: f32[9,16,1], index: 5, kind: input, shape index: {}]
  %s6 = inlined_call_operand.vmem [shape: f32[8,16,1], index: 6, kind: input, shape index: {}]
  %s7 = inlined_call_operand.vmem [shape: f32[8,16,1], index: 7, kind: input, shape index: {}]
  %s8 = inlined_call_operand.vmem [shape: f32[32,144], index: 8, kind: input, shape index: {}]
  %s9 = inlined_call_operand.hbm [shape: f32[32,512], index: 9, kind: output, shape index: {}]
  %s10 = sld [smem:[#allocation0]]
  $region46: #{tpu_custom_call.1} parent=0
    _
  %s12 = ssub.s32 1, %s10
  %s13 = scalar_select 0, %s12, %s10
  $region1: #{tpu_custom_call.1} parent=0
    #allocation2 [shape = 'u8[65536]{0}', space=vmem, size = 0x10000, scoped, tag = 'output window, operand 0, single buffered']
    #allocation3 [shape = 's32[1]{0}', space=sflag, size = 0x4, scoped, tag = 'scoped memory for tpu_custom_call.1']
    %14 = vsyncpa [#allocation3], 0
    // Predicated region
    $region2: #{tpu_custom_call.1} parent=1 // pred_check
      _
    $region3: #{tpu_custom_call.1} parent=1 // pred_check_branch
      %16 = sbr.rel (0) target = $region5
    $region4: #{tpu_custom_call.1} parent=1 // pred_region
      _
    $region5: #{tpu_custom_call.1} parent=1 // pred_fallthru
      _
    // Predicated region
    $region6: #{tpu_custom_call.1} parent=1 // pred_check
      _
    $region7: #{tpu_custom_call.1} parent=1 // pred_check_branch
      %18 = sbr.rel (0) target = $region9
    $region8: #{tpu_custom_call.1} parent=1 // pred_region
      _
    $region9: #{tpu_custom_call.1} parent=1 // pred_fallthru
      _
    // Predicated region
    $region10: #{tpu_custom_call.1} parent=1 // pred_check
      _
    $region11: #{tpu_custom_call.1} parent=1 // pred_check_branch
      %20 = sbr.rel (0) target = $region13
    $region12: #{tpu_custom_call.1} parent=1 // pred_region
      _
    $region13: #{tpu_custom_call.1} parent=1 // pred_fallthru
      _
    // Predicated region
    $region14: #{tpu_custom_call.1} parent=1 // pred_check
      _
    $region15: #{tpu_custom_call.1} parent=1 // pred_check_branch
      %22 = sbr.rel (0) target = $region17
    $region16: #{tpu_custom_call.1} parent=1 // pred_region
      _
    $region17: #{tpu_custom_call.1} parent=1 // pred_fallthru
      _
    // Predicated region
    $region18: #{tpu_custom_call.1} parent=1 // pred_check
      _
    $region19: #{tpu_custom_call.1} parent=1 // pred_check_branch
      %24 = sbr.rel (0) target = $region21
    $region20: #{tpu_custom_call.1} parent=1 // pred_region
      _
    $region21: #{tpu_custom_call.1} parent=1 // pred_fallthru
      _
    // Predicated region
    $region22: #{tpu_custom_call.1} parent=1 // pred_check
      _
    $region23: #{tpu_custom_call.1} parent=1 // pred_check_branch
      %26 = sbr.rel (0) target = $region25
    $region24: #{tpu_custom_call.1} parent=1 // pred_region
      _
    $region25: #{tpu_custom_call.1} parent=1 // pred_fallthru
      _
    // Predicated region
    $region26: #{tpu_custom_call.1} parent=1 // pred_check
      _
    $region27: #{tpu_custom_call.1} parent=1 // pred_check_branch
      %28 = sbr.rel (0) target = $region29
    $region28: #{tpu_custom_call.1} parent=1 // pred_region
      _
    $region29: #{tpu_custom_call.1} parent=1 // pred_fallthru
      _
    // Predicated region
    $region30: #{tpu_custom_call.1} parent=1 // pred_check
      _
    $region31: #{tpu_custom_call.1} parent=1 // pred_check_branch
      %30 = sbr.rel (0) target = $region33
    $region32: #{tpu_custom_call.1} parent=1 // pred_region
      _
    $region33: #{tpu_custom_call.1} parent=1 // pred_fallthru
      _
    // Predicated region
    $region34: #{tpu_custom_call.1} parent=1 // pred_check
      _
    $region35: #{tpu_custom_call.1} parent=1 // pred_check_branch
      %32 = sbr.rel (0) target = $region37
    $region36: #{tpu_custom_call.1} parent=1 // pred_region
      _
    $region37: #{tpu_custom_call.1} parent=1 // pred_fallthru
      _
    %v33 = vld [vmem:[%s0] sm:$0xff]
    %v34 = vld [vmem:[%s0 + $0x8] sm:$0xff]
    %v35 = vld [vmem:[%s0 + $0x10] sm:$0xff]
    %v36 = vld [vmem:[%s0 + $0x18] sm:$0xff]
    %v37 = vld [vmem:[%s0 + $0x20] sm:$0xff]
    %v38 = vld [vmem:[%s0 + $0x28] sm:$0xff]
    %v39 = vld [vmem:[%s0 + $0x30] sm:$0xff]
    %v40 = vld [vmem:[%s0 + $0x38] sm:$0xff]
    %v41 = vld [vmem:[%s1] sm:$0xff]
    %v42 = vld [vmem:[%s1 + $0x8] sm:$0xff]
    %v43 = vld [vmem:[%s1 + $0x10] sm:$0xff]
    %v44 = vld [vmem:[%s1 + $0x18] sm:$0xff]
    %v45 = vld [vmem:[%s1 + $0x20] sm:$0xff]
    %v46 = vld [vmem:[%s1 + $0x28] sm:$0xff]
    %v47 = vld [vmem:[%s1 + $0x30] sm:$0xff]
    %v48 = vld [vmem:[%s1 + $0x38] sm:$0xff]
    %v49 = vld [vmem:[%s1 + $0x40] sm:$0xff]
    %v50 = vld [vmem:[%s1 + $0x48] sm:$0xff]
    %v51 = vld [vmem:[%s1 + $0x50] sm:$0xff]
    %v52 = vld [vmem:[%s1 + $0x58] sm:$0xff]
    %v53 = vld [vmem:[%s1 + $0x60] sm:$0xff]
    %v54 = vld [vmem:[%s1 + $0x68] sm:$0xff]
    %v55 = vld [vmem:[%s1 + $0x70] sm:$0xff]
    %v56 = vld [vmem:[%s1 + $0x78] sm:$0xff]
    %v57 = vld [vmem:[%s1 + $0x80] sm:$0xff]
    %v58 = vld [vmem:[%s1 + $0x88] sm:$0xff]
    %v59 = vld [vmem:[%s1 + $0x90] sm:$0xff]
    %v60 = vld [vmem:[%s1 + $0x98] sm:$0xff]
    %v61 = vld [vmem:[%s1 + $0xa0] sm:$0xff]
    %v62 = vld [vmem:[%s1 + $0xa8] sm:$0xff]
    %v63 = vld [vmem:[%s1 + $0xb0] sm:$0xff]
    %v64 = vld [vmem:[%s1 + $0xb8] sm:$0xff]
    %v65 = vsub.f32 0.0, %v33
    %v66 = vsub.f32 0.0, %v34
    %v67 = vsub.f32 0.0, %v35
    %v68 = vsub.f32 0.0, %v36
    %v69 = vsub.f32 0.0, %v37
    %v70 = vsub.f32 0.0, %v38
    %v71 = vsub.f32 0.0, %v39
    %v72 = vsub.f32 0.0, %v40
    %v73 = vmul.f32 %v65, 1.442695
    %v74 = vpow.pop %v73
    %v75 = vmul.f32 %v66, 1.442695
    %v76 = vpow.pop %v75
    %v77 = vmul.f32 %v67, 1.442695
    %v78 = vpow.pop %v77
    %v79 = vmul.f32 %v68, 1.442695
    %v80 = vpow.pop %v79
    %v81 = vmul.f32 %v69, 1.442695
    %v82 = vpow.pop %v81
    %v83 = vmul.f32 %v70, 1.442695
    %v84 = vpow.pop %v83
    %v85 = vmul.f32 %v71, 1.442695
    %v86 = vpow.pop %v85
    %v87 = vmul.f32 %v72, 1.442695
    %v88 = vpow.pop %v87
    %v89 = vadd.f32 %v74, 1.0
    %v90 = vadd.f32 %v76, 1.0
    %v91 = vadd.f32 %v78, 1.0
    %v92 = vadd.f32 %v80, 1.0
    %v93 = vadd.f32 %v82, 1.0
    %v94 = vadd.f32 %v84, 1.0
    %v95 = vadd.f32 %v86, 1.0
    %v96 = vadd.f32 %v88, 1.0
    %v97 = vrcp.pop %v89
    %v98 = vmul.f32 %v33, %v97
    %v99 = vrcp.pop %v90
    %v100 = vmul.f32 %v34, %v99
    %v101 = vrcp.pop %v91
    %v102 = vmul.f32 %v35, %v101
    %v103 = vrcp.pop %v92
    %v104 = vmul.f32 %v36, %v103
    %v105 = vrcp.pop %v93
    %v106 = vmul.f32 %v37, %v105
    %v107 = vrcp.pop %v94
    %v108 = vmul.f32 %v38, %v107
    %v109 = vrcp.pop %v95
    %v110 = vmul.f32 %v39, %v109
    %v111 = vrcp.pop %v96
    %v112 = vmul.f32 %v40, %v111
    %114 = vset.pattern.permute.xlu0 0
    %115 = vperm.xlu0 %114, %v41
    %v116 = vpop.permute.xlu0 %115
    %119 = vset.pattern.permute.xlu0 0
    %120 = vperm.xlu0 %119, %v42
    %v121 = vpop.permute.xlu0 %120
    %124 = vset.pattern.permute.xlu0 0
    %125 = vperm.xlu0 %124, %v43
    %v126 = vpop.permute.xlu0 %125
    %129 = vset.pattern.permute.xlu0 0
    %130 = vperm.xlu0 %129, %v44
    %v131 = vpop.permute.xlu0 %130
    %134 = vset.pattern.permute.xlu0 0
    %135 = vperm.xlu0 %134, %v45
    %v136 = vpop.permute.xlu0 %135
    %139 = vset.pattern.permute.xlu0 0
    %140 = vperm.xlu0 %139, %v46
    %v141 = vpop.permute.xlu0 %140
    %144 = vset.pattern.permute.xlu0 0
    %145 = vperm.xlu0 %144, %v47
    %v146 = vpop.permute.xlu0 %145
    %149 = vset.pattern.permute.xlu0 0
    %150 = vperm.xlu0 %149, %v48
    %v151 = vpop.permute.xlu0 %150
    %154 = vset.pattern.permute.xlu0 0
    %155 = vperm.xlu0 %154, %v49
    %v156 = vpop.permute.xlu0 %155
    %159 = vset.pattern.permute.xlu0 0
    %160 = vperm.xlu0 %159, %v50
    %v161 = vpop.permute.xlu0 %160
    %164 = vset.pattern.permute.xlu0 0
    %165 = vperm.xlu0 %164, %v51
    %v166 = vpop.permute.xlu0 %165
    %169 = vset.pattern.permute.xlu0 0
    %170 = vperm.xlu0 %169, %v52
    %v171 = vpop.permute.xlu0 %170
    %174 = vset.pattern.permute.xlu0 0
    %175 = vperm.xlu0 %174, %v53
    %v176 = vpop.permute.xlu0 %175
    %179 = vset.pattern.permute.xlu0 0
    %180 = vperm.xlu0 %179, %v54
    %v181 = vpop.permute.xlu0 %180
    %184 = vset.pattern.permute.xlu0 0
    %185 = vperm.xlu0 %184, %v55
    %v186 = vpop.permute.xlu0 %185
    %189 = vset.pattern.permute.xlu0 0
    %190 = vperm.xlu0 %189, %v56
    %v191 = vpop.permute.xlu0 %190
    %194 = vset.pattern.permute.xlu0 0
    %195 = vperm.xlu0 %194, %v57
    %v196 = vpop.permute.xlu0 %195
    %199 = vset.pattern.permute.xlu0 0
    %200 = vperm.xlu0 %199, %v58
    %v201 = vpop.permute.xlu0 %200
    %204 = vset.pattern.permute.xlu0 0
    %205 = vperm.xlu0 %204, %v59
    %v206 = vpop.permute.xlu0 %205
    %209 = vset.pattern.permute.xlu0 0
    %210 = vperm.xlu0 %209, %v60
    %v211 = vpop.permute.xlu0 %210
    %214 = vset.pattern.permute.xlu0 0
    %215 = vperm.xlu0 %214, %v61
    %v216 = vpop.permute.xlu0 %215
    %219 = vset.pattern.permute.xlu0 0
    %220 = vperm.xlu0 %219, %v62
    %v221 = vpop.permute.xlu0 %220
    %vm223 = vcmp.ge.f32.partialorder %v33, %v116
    %vm224 = vcmp.ge.f32.partialorder %v34, %v116
    %vm225 = vcmp.ge.f32.partialorder %v35, %v116
    %vm226 = vcmp.ge.f32.partialorder %v36, %v116
    %vm227 = vcmp.ge.f32.partialorder %v37, %v121
    %vm228 = vcmp.ge.f32.partialorder %v38, %v121
    %vm229 = vcmp.ge.f32.partialorder %v39, %v121
    %vm230 = vcmp.ge.f32.partialorder %v40, %v121
    %vm231 = vcmp.ge.f32.partialorder %v33, %v126
    %vm232 = vcmp.ge.f32.partialorder %v34, %v126
    %vm233 = vcmp.ge.f32.partialorder %v35, %v126
    %vm234 = vcmp.ge.f32.partialorder %v36, %v126
    %vm235 = vcmp.ge.f32.partialorder %v37, %v131
    %vm236 = vcmp.ge.f32.partialorder %v38, %v131
    %vm237 = vcmp.ge.f32.partialorder %v39, %v131
    %vm238 = vcmp.ge.f32.partialorder %v40, %v131
    %vm239 = vcmp.ge.f32.partialorder %v33, %v136
    %vm240 = vcmp.ge.f32.partialorder %v34, %v136
    %vm241 = vcmp.ge.f32.partialorder %v35, %v136
    %vm242 = vcmp.ge.f32.partialorder %v36, %v136
    %vm243 = vcmp.ge.f32.partialorder %v37, %v141
    %vm244 = vcmp.ge.f32.partialorder %v38, %v141
    %vm245 = vcmp.ge.f32.partialorder %v39, %v141
    %vm246 = vcmp.ge.f32.partialorder %v40, %v141
    %vm247 = vcmp.ge.f32.partialorder %v33, %v146
    %vm248 = vcmp.ge.f32.partialorder %v34, %v146
    %vm249 = vcmp.ge.f32.partialorder %v35, %v146
    %vm250 = vcmp.ge.f32.partialorder %v36, %v146
    %vm251 = vcmp.ge.f32.partialorder %v37, %v151
    %vm252 = vcmp.ge.f32.partialorder %v38, %v151
    %vm253 = vcmp.ge.f32.partialorder %v39, %v151
    %vm254 = vcmp.ge.f32.partialorder %v40, %v151
    %vm255 = vcmp.ge.f32.partialorder %v33, %v156
    %vm256 = vcmp.ge.f32.partialorder %v34, %v156
    %vm257 = vcmp.ge.f32.partialorder %v35, %v156
    %vm258 = vcmp.ge.f32.partialorder %v36, %v156
    %vm259 = vcmp.ge.f32.partialorder %v37, %v161
    %vm260 = vcmp.ge.f32.partialorder %v38, %v161
    %vm261 = vcmp.ge.f32.partialorder %v39, %v161
    %vm262 = vcmp.ge.f32.partialorder %v40, %v161
    %vm263 = vcmp.ge.f32.partialorder %v33, %v166
    %vm264 = vcmp.ge.f32.partialorder %v34, %v166
    %vm265 = vcmp.ge.f32.partialorder %v35, %v166
    %vm266 = vcmp.ge.f32.partialorder %v36, %v166
    %vm267 = vcmp.ge.f32.partialorder %v37, %v171
    %vm268 = vcmp.ge.f32.partialorder %v38, %v171
    %vm269 = vcmp.ge.f32.partialorder %v39, %v171
    %vm270 = vcmp.ge.f32.partialorder %v40, %v171
    %vm271 = vcmp.ge.f32.partialorder %v33, %v176
    %vm272 = vcmp.ge.f32.partialorder %v34, %v176
    %vm273 = vcmp.ge.f32.partialorder %v35, %v176
    %vm274 = vcmp.ge.f32.partialorder %v36, %v176
    %vm275 = vcmp.ge.f32.partialorder %v37, %v181
    %vm276 = vcmp.ge.f32.partialorder %v38, %v181
    %vm277 = vcmp.ge.f32.partialorder %v39, %v181
    %vm278 = vcmp.ge.f32.partialorder %v40, %v181
    %vm279 = vcmp.ge.f32.partialorder %v33, %v186
    %vm280 = vcmp.ge.f32.partialorder %v34, %v186
    %vm281 = vcmp.ge.f32.partialorder %v35, %v186
    %vm282 = vcmp.ge.f32.partialorder %v36, %v186
    %vm283 = vcmp.ge.f32.partialorder %v37, %v191
    %vm284 = vcmp.ge.f32.partialorder %v38, %v191
    %vm285 = vcmp.ge.f32.partialorder %v39, %v191
    %vm286 = vcmp.ge.f32.partialorder %v40, %v191
    %vm287 = vcmp.ge.f32.partialorder %v33, %v196
    %vm288 = vcmp.ge.f32.partialorder %v34, %v196
    %vm289 = vcmp.ge.f32.partialorder %v35, %v196
    %vm290 = vcmp.ge.f32.partialorder %v36, %v196
    %vm291 = vcmp.ge.f32.partialorder %v37, %v201
    %vm292 = vcmp.ge.f32.partialorder %v38, %v201
    %vm293 = vcmp.ge.f32.partialorder %v39, %v201
    %vm294 = vcmp.ge.f32.partialorder %v40, %v201
    %vm295 = vcmp.ge.f32.partialorder %v33, %v206
    %vm296 = vcmp.ge.f32.partialorder %v34, %v206
    %vm297 = vcmp.ge.f32.partialorder %v35, %v206
    %vm298 = vcmp.ge.f32.partialorder %v36, %v206
    %vm299 = vcmp.ge.f32.partialorder %v37, %v211
    %vm300 = vcmp.ge.f32.partialorder %v38, %v211
    %vm301 = vcmp.ge.f32.partialorder %v39, %v211
    %vm302 = vcmp.ge.f32.partialorder %v40, %v211
    %vm303 = vcmp.ge.f32.partialorder %v33, %v216
    %vm304 = vcmp.ge.f32.partialorder %v34, %v216
    %vm305 = vcmp.ge.f32.partialorder %v35, %v216
    %vm306 = vcmp.ge.f32.partialorder %v36, %v216
    %vm307 = vcmp.ge.f32.partialorder %v37, %v221
    %vm308 = vcmp.ge.f32.partialorder %v38, %v221
    %vm309 = vcmp.ge.f32.partialorder %v39, %v221
    %vm310 = vcmp.ge.f32.partialorder %v40, %v221
    %312 = vset.pattern.permute.xlu0 0
    %313 = vperm.xlu0 %312, %v63
    %v314 = vpop.permute.xlu0 %313
    %317 = vset.pattern.permute.xlu0 0
    %318 = vperm.xlu0 %317, %v64
    %v319 = vpop.permute.xlu0 %318
    %vm321 = vcmp.lt.f32.partialorder %v33, %v126
    %vm322 = vcmp.lt.f32.partialorder %v34, %v126
    %vm323 = vcmp.lt.f32.partialorder %v35, %v126
    %vm324 = vcmp.lt.f32.partialorder %v36, %v126
    %vm325 = vcmp.lt.f32.partialorder %v37, %v131
    %vm326 = vcmp.lt.f32.partialorder %v38, %v131
    %vm327 = vcmp.lt.f32.partialorder %v39, %v131
    %vm328 = vcmp.lt.f32.partialorder %v40, %v131
    %vm329 = vcmp.lt.f32.partialorder %v33, %v136
    %vm330 = vcmp.lt.f32.partialorder %v34, %v136
    %vm331 = vcmp.lt.f32.partialorder %v35, %v136
    %vm332 = vcmp.lt.f32.partialorder %v36, %v136
    %vm333 = vcmp.lt.f32.partialorder %v37, %v141
    %vm334 = vcmp.lt.f32.partialorder %v38, %v141
    %vm335 = vcmp.lt.f32.partialorder %v39, %v141
    %vm336 = vcmp.lt.f32.partialorder %v40, %v141
    %vm337 = vcmp.lt.f32.partialorder %v33, %v146
    %vm338 = vcmp.lt.f32.partialorder %v34, %v146
    %vm339 = vcmp.lt.f32.partialorder %v35, %v146
    %vm340 = vcmp.lt.f32.partialorder %v36, %v146
    %vm341 = vcmp.lt.f32.partialorder %v37, %v151
    %vm342 = vcmp.lt.f32.partialorder %v38, %v151
    %vm343 = vcmp.lt.f32.partialorder %v39, %v151
    %vm344 = vcmp.lt.f32.partialorder %v40, %v151
    %vm345 = vcmp.lt.f32.partialorder %v33, %v156
    %vm346 = vcmp.lt.f32.partialorder %v34, %v156
    %vm347 = vcmp.lt.f32.partialorder %v35, %v156
    %vm348 = vcmp.lt.f32.partialorder %v36, %v156
    %vm349 = vcmp.lt.f32.partialorder %v37, %v161
    %vm350 = vcmp.lt.f32.partialorder %v38, %v161
    %vm351 = vcmp.lt.f32.partialorder %v39, %v161
    %vm352 = vcmp.lt.f32.partialorder %v40, %v161
    %vm353 = vcmp.lt.f32.partialorder %v33, %v166
    %vm354 = vcmp.lt.f32.partialorder %v34, %v166
    %vm355 = vcmp.lt.f32.partialorder %v35, %v166
    %vm356 = vcmp.lt.f32.partialorder %v36, %v166
    %vm357 = vcmp.lt.f32.partialorder %v37, %v171
    %vm358 = vcmp.lt.f32.partialorder %v38, %v171
    %vm359 = vcmp.lt.f32.partialorder %v39, %v171
    %vm360 = vcmp.lt.f32.partialorder %v40, %v171
    %vm361 = vcmp.lt.f32.partialorder %v33, %v176
    %vm362 = vcmp.lt.f32.partialorder %v34, %v176
    %vm363 = vcmp.lt.f32.partialorder %v35, %v176
    %vm364 = vcmp.lt.f32.partialorder %v36, %v176
    %vm365 = vcmp.lt.f32.partialorder %v37, %v181
    %vm366 = vcmp.lt.f32.partialorder %v38, %v181
    %vm367 = vcmp.lt.f32.partialorder %v39, %v181
    %vm368 = vcmp.lt.f32.partialorder %v40, %v181
    %vm369 = vcmp.lt.f32.partialorder %v33, %v186
    %vm370 = vcmp.lt.f32.partialorder %v34, %v186
    %vm371 = vcmp.lt.f32.partialorder %v35, %v186
    %vm372 = vcmp.lt.f32.partialorder %v36, %v186
    %vm373 = vcmp.lt.f32.partialorder %v37, %v191
    %vm374 = vcmp.lt.f32.partialorder %v38, %v191
    %vm375 = vcmp.lt.f32.partialorder %v39, %v191
    %vm376 = vcmp.lt.f32.partialorder %v40, %v191
    %vm377 = vcmp.lt.f32.partialorder %v33, %v196
    %vm378 = vcmp.lt.f32.partialorder %v34, %v196
    %vm379 = vcmp.lt.f32.partialorder %v35, %v196
    %vm380 = vcmp.lt.f32.partialorder %v36, %v196
    %vm381 = vcmp.lt.f32.partialorder %v37, %v201
    %vm382 = vcmp.lt.f32.partialorder %v38, %v201
    %vm383 = vcmp.lt.f32.partialorder %v39, %v201
    %vm384 = vcmp.lt.f32.partialorder %v40, %v201
    %vm385 = vcmp.lt.f32.partialorder %v33, %v206
    %vm386 = vcmp.lt.f32.partialorder %v34, %v206
    %vm387 = vcmp.lt.f32.partialorder %v35, %v206
    %vm388 = vcmp.lt.f32.partialorder %v36, %v206
    %vm389 = vcmp.lt.f32.partialorder %v37, %v211
    %vm390 = vcmp.lt.f32.partialorder %v38, %v211
    %vm391 = vcmp.lt.f32.partialorder %v39, %v211
    %vm392 = vcmp.lt.f32.partialorder %v40, %v211
    %vm393 = vcmp.lt.f32.partialorder %v33, %v216
    %vm394 = vcmp.lt.f32.partialorder %v34, %v216
    %vm395 = vcmp.lt.f32.partialorder %v35, %v216
    %vm396 = vcmp.lt.f32.partialorder %v36, %v216
    %vm397 = vcmp.lt.f32.partialorder %v37, %v221
    %vm398 = vcmp.lt.f32.partialorder %v38, %v221
    %vm399 = vcmp.lt.f32.partialorder %v39, %v221
    %vm400 = vcmp.lt.f32.partialorder %v40, %v221
    %vm401 = vcmp.lt.f32.partialorder %v33, %v314
    %vm402 = vcmp.lt.f32.partialorder %v34, %v314
    %vm403 = vcmp.lt.f32.partialorder %v35, %v314
    %vm404 = vcmp.lt.f32.partialorder %v36, %v314
    %vm405 = vcmp.lt.f32.partialorder %v37, %v319
    %vm406 = vcmp.lt.f32.partialorder %v38, %v319
    %vm407 = vcmp.lt.f32.partialorder %v39, %v319
    %vm408 = vcmp.lt.f32.partialorder %v40, %v319
    %vm409 = vmand %vm223, %vm321
    %vm410 = vmand %vm224, %vm322
    %vm411 = vmand %vm225, %vm323
    %vm412 = vmand %vm226, %vm324
    %vm413 = vmand %vm227, %vm325
    %vm414 = vmand %vm228, %vm326
    %vm415 = vmand %vm229, %vm327
    %vm416 = vmand %vm230, %vm328
    %vm417 = vmand %vm231, %vm329
    %vm418 = vmand %vm232, %vm330
    %vm419 = vmand %vm233, %vm331
    %vm420 = vmand %vm234, %vm332
    %vm421 = vmand %vm235, %vm333
    %vm422 = vmand %vm236, %vm334
    %vm423 = vmand %vm237, %vm335
    %vm424 = vmand %vm238, %vm336
    %vm425 = vmand %vm239, %vm337
    %vm426 = vmand %vm240, %vm338
    %vm427 = vmand %vm241, %vm339
    %vm428 = vmand %vm242, %vm340
    %vm429 = vmand %vm243, %vm341
    %vm430 = vmand %vm244, %vm342
    %vm431 = vmand %vm245, %vm343
    %vm432 = vmand %vm246, %vm344
    %vm433 = vmand %vm247, %vm345
    %vm434 = vmand %vm248, %vm346
    %vm435 = vmand %vm249, %vm347
    %vm436 = vmand %vm250, %vm348
    %vm437 = vmand %vm251, %vm349
    %vm438 = vmand %vm252, %vm350
    %vm439 = vmand %vm253, %vm351
    %vm440 = vmand %vm254, %vm352
    %vm441 = vmand %vm255, %vm353
    %vm442 = vmand %vm256, %vm354
    %vm443 = vmand %vm257, %vm355
    %vm444 = vmand %vm258, %vm356
    %vm445 = vmand %vm259, %vm357
    %vm446 = vmand %vm260, %vm358
    %vm447 = vmand %vm261, %vm359
    %vm448 = vmand %vm262, %vm360
    %vm449 = vmand %vm263, %vm361
    %vm450 = vmand %vm264, %vm362
    %vm451 = vmand %vm265, %vm363
    %vm452 = vmand %vm266, %vm364
    %vm453 = vmand %vm267, %vm365
    %vm454 = vmand %vm268, %vm366
    %vm455 = vmand %vm269, %vm367
    %vm456 = vmand %vm270, %vm368
    %vm457 = vmand %vm271, %vm369
    %vm458 = vmand %vm272, %vm370
    %vm459 = vmand %vm273, %vm371
    %vm460 = vmand %vm274, %vm372
    %vm461 = vmand %vm275, %vm373
    %vm462 = vmand %vm276, %vm374
    %vm463 = vmand %vm277, %vm375
    %vm464 = vmand %vm278, %vm376
    %vm465 = vmand %vm279, %vm377
    %vm466 = vmand %vm280, %vm378
    %vm467 = vmand %vm281, %vm379
    %vm468 = vmand %vm282, %vm380
    %vm469 = vmand %vm283, %vm381
    %vm470 = vmand %vm284, %vm382
    %vm471 = vmand %vm285, %vm383
    %vm472 = vmand %vm286, %vm384
    %vm473 = vmand %vm287, %vm385
    %vm474 = vmand %vm288, %vm386
    %vm475 = vmand %vm289, %vm387
    %vm476 = vmand %vm290, %vm388
    %vm477 = vmand %vm291, %vm389
    %vm478 = vmand %vm292, %vm390
    %vm479 = vmand %vm293, %vm391
    %vm480 = vmand %vm294, %vm392
    %vm481 = vmand %vm295, %vm393
    %vm482 = vmand %vm296, %vm394
    %vm483 = vmand %vm297, %vm395
    %vm484 = vmand %vm298, %vm396
    %vm485 = vmand %vm299, %vm397
    %vm486 = vmand %vm300, %vm398
    %vm487 = vmand %vm301, %vm399
    %vm488 = vmand %vm302, %vm400
    %vm489 = vmand %vm303, %vm401
    %vm490 = vmand %vm304, %vm402
    %vm491 = vmand %vm305, %vm403
    %vm492 = vmand %vm306, %vm404
    %vm493 = vmand %vm307, %vm405
    %vm494 = vmand %vm308, %vm406
    %vm495 = vmand %vm309, %vm407
    %vm496 = vmand %vm310, %vm408
    %v497 = vsel %vm409, 1, 0
    %v498 = vsel %vm410, 1, 0
    %v499 = vsel %vm411, 1, 0
    %v500 = vsel %vm412, 1, 0
    %v501 = vsel %vm413, 1, 0
    %v502 = vsel %vm414, 1, 0
    %v503 = vsel %vm415, 1, 0
    %v504 = vsel %vm416, 1, 0
    %v505 = vsel %vm417, 1, 0
    %v506 = vsel %vm418, 1, 0
    %v507 = vsel %vm419, 1, 0
    %v508 = vsel %vm420, 1, 0
    %v509 = vsel %vm421, 1, 0
    %v510 = vsel %vm422, 1, 0
    %v511 = vsel %vm423, 1, 0
    %v512 = vsel %vm424, 1, 0
    %v513 = vsel %vm425, 1, 0
    %v514 = vsel %vm426, 1, 0
    %v515 = vsel %vm427, 1, 0
    %v516 = vsel %vm428, 1, 0
    %v517 = vsel %vm429, 1, 0
    %v518 = vsel %vm430, 1, 0
    %v519 = vsel %vm431, 1, 0
    %v520 = vsel %vm432, 1, 0
    %v521 = vsel %vm433, 1, 0
    %v522 = vsel %vm434, 1, 0
    %v523 = vsel %vm435, 1, 0
    %v524 = vsel %vm436, 1, 0
    %v525 = vsel %vm437, 1, 0
    %v526 = vsel %vm438, 1, 0
    %v527 = vsel %vm439, 1, 0
    %v528 = vsel %vm440, 1, 0
    %v529 = vsel %vm441, 1, 0
    %v530 = vsel %vm442, 1, 0
    %v531 = vsel %vm443, 1, 0
    %v532 = vsel %vm444, 1, 0
    %v533 = vsel %vm445, 1, 0
    %v534 = vsel %vm446, 1, 0
    %v535 = vsel %vm447, 1, 0
    %v536 = vsel %vm448, 1, 0
    %v537 = vsel %vm449, 1, 0
    %v538 = vsel %vm450, 1, 0
    %v539 = vsel %vm451, 1, 0
    %v540 = vsel %vm452, 1, 0
    %v541 = vsel %vm453, 1, 0
    %v542 = vsel %vm454, 1, 0
    %v543 = vsel %vm455, 1, 0
    %v544 = vsel %vm456, 1, 0
    %v545 = vsel %vm457, 1, 0
    %v546 = vsel %vm458, 1, 0
    %v547 = vsel %vm459, 1, 0
    %v548 = vsel %vm460, 1, 0
    %v549 = vsel %vm461, 1, 0
    %v550 = vsel %vm462, 1, 0
    %v551 = vsel %vm463, 1, 0
    %v552 = vsel %vm464, 1, 0
    %v553 = vsel %vm465, 1, 0
    %v554 = vsel %vm466, 1, 0
    %v555 = vsel %vm467, 1, 0
    %v556 = vsel %vm468, 1, 0
    %v557 = vsel %vm469, 1, 0
    %v558 = vsel %vm470, 1, 0
    %v559 = vsel %vm471, 1, 0
    %v560 = vsel %vm472, 1, 0
    %v561 = vsel %vm473, 1, 0
    %v562 = vsel %vm474, 1, 0
    %v563 = vsel %vm475, 1, 0
    %v564 = vsel %vm476, 1, 0
    %v565 = vsel %vm477, 1, 0
    %v566 = vsel %vm478, 1, 0
    %v567 = vsel %vm479, 1, 0
    %v568 = vsel %vm480, 1, 0
    %v569 = vsel %vm481, 1, 0
    %v570 = vsel %vm482, 1, 0
    %v571 = vsel %vm483, 1, 0
    %v572 = vsel %vm484, 1, 0
    %v573 = vsel %vm485, 1, 0
    %v574 = vsel %vm486, 1, 0
    %v575 = vsel %vm487, 1, 0
    %v576 = vsel %vm488, 1, 0
    %v577 = vsel %vm489, 1, 0
    %v578 = vsel %vm490, 1, 0
    %v579 = vsel %vm491, 1, 0
    %v580 = vsel %vm492, 1, 0
    %v581 = vsel %vm493, 1, 0
    %v582 = vsel %vm494, 1, 0
    %v583 = vsel %vm495, 1, 0
    %v584 = vsel %vm496, 1, 0
    %v585 = vcvt.s32.f32 %v497
    %v586 = vcvt.s32.f32 %v498
    %v587 = vcvt.s32.f32 %v499
    %v588 = vcvt.s32.f32 %v500
    %v589 = vcvt.s32.f32 %v501
    %v590 = vcvt.s32.f32 %v502
    %v591 = vcvt.s32.f32 %v503
    %v592 = vcvt.s32.f32 %v504
    %v593 = vcvt.s32.f32 %v505
    %v594 = vcvt.s32.f32 %v506
    %v595 = vcvt.s32.f32 %v507
    %v596 = vcvt.s32.f32 %v508
    %v597 = vcvt.s32.f32 %v509
    %v598 = vcvt.s32.f32 %v510
    %v599 = vcvt.s32.f32 %v511
    %v600 = vcvt.s32.f32 %v512
    %v601 = vcvt.s32.f32 %v513
    %v602 = vcvt.s32.f32 %v514
    %v603 = vcvt.s32.f32 %v515
    %v604 = vcvt.s32.f32 %v516
    %v605 = vcvt.s32.f32 %v517
    %v606 = vcvt.s32.f32 %v518
    %v607 = vcvt.s32.f32 %v519
    %v608 = vcvt.s32.f32 %v520
    %v609 = vcvt.s32.f32 %v521
    %v610 = vcvt.s32.f32 %v522
    %v611 = vcvt.s32.f32 %v523
    %v612 = vcvt.s32.f32 %v524
    %v613 = vcvt.s32.f32 %v525
    %v614 = vcvt.s32.f32 %v526
    %v615 = vcvt.s32.f32 %v527
    %v616 = vcvt.s32.f32 %v528
    %v617 = vcvt.s32.f32 %v529
    %v618 = vcvt.s32.f32 %v530
    %v619 = vcvt.s32.f32 %v531
    %v620 = vcvt.s32.f32 %v532
    %v621 = vcvt.s32.f32 %v533
    %v622 = vcvt.s32.f32 %v534
    %v623 = vcvt.s32.f32 %v535
    %v624 = vcvt.s32.f32 %v536
    %v625 = vcvt.s32.f32 %v537
    %v626 = vcvt.s32.f32 %v538
    %v627 = vcvt.s32.f32 %v539
    %v628 = vcvt.s32.f32 %v540
    %v629 = vcvt.s32.f32 %v541
    %v630 = vcvt.s32.f32 %v542
    %v631 = vcvt.s32.f32 %v543
    %v632 = vcvt.s32.f32 %v544
    %v633 = vcvt.s32.f32 %v545
    %v634 = vcvt.s32.f32 %v546
    %v635 = vcvt.s32.f32 %v547
    %v636 = vcvt.s32.f32 %v548
    %v637 = vcvt.s32.f32 %v549
    %v638 = vcvt.s32.f32 %v550
    %v639 = vcvt.s32.f32 %v551
    %v640 = vcvt.s32.f32 %v552
    %v641 = vcvt.s32.f32 %v553
    %v642 = vcvt.s32.f32 %v554
    %v643 = vcvt.s32.f32 %v555
    %v644 = vcvt.s32.f32 %v556
    %v645 = vcvt.s32.f32 %v557
    %v646 = vcvt.s32.f32 %v558
    %v647 = vcvt.s32.f32 %v559
    %v648 = vcvt.s32.f32 %v560
    %v649 = vcvt.s32.f32 %v561
    %v650 = vcvt.s32.f32 %v562
    %v651 = vcvt.s32.f32 %v563
    %v652 = vcvt.s32.f32 %v564
    %v653 = vcvt.s32.f32 %v565
    %v654 = vcvt.s32.f32 %v566
    %v655 = vcvt.s32.f32 %v567
    %v656 = vcvt.s32.f32 %v568
    %v657 = vcvt.s32.f32 %v569
    %v658 = vcvt.s32.f32 %v570
    %v659 = vcvt.s32.f32 %v571
    %v660 = vcvt.s32.f32 %v572
    %v661 = vcvt.s32.f32 %v573
    %v662 = vcvt.s32.f32 %v574
    %v663 = vcvt.s32.f32 %v575
    %v664 = vcvt.s32.f32 %v576
    %v665 = vcvt.s32.f32 %v577
    %v666 = vcvt.s32.f32 %v578
    %v667 = vcvt.s32.f32 %v579
    %v668 = vcvt.s32.f32 %v580
    %v669 = vcvt.s32.f32 %v581
    %v670 = vcvt.s32.f32 %v582
    %v671 = vcvt.s32.f32 %v583
    %v672 = vcvt.s32.f32 %v584
    %v673 = vld [vmem:[%s2] sm:$0xff]
    %v674 = vld [vmem:[%s2 + $0x8] sm:$0xff]
    %v675 = vld [vmem:[%s2 + $0x10] sm:$0xff]
    %v676 = vld [vmem:[%s2 + $0x18] sm:$0xff]
    %v677 = vld [vmem:[%s2 + $0x20] sm:$0xff]
    %v678 = vld [vmem:[%s2 + $0x28] sm:$0xff]
    %v679 = vld [vmem:[%s2 + $0x30] sm:$0xff]
    %v680 = vld [vmem:[%s2 + $0x38] sm:$0xff]
    %v681 = vld [vmem:[%s2 + $0x40] sm:$0xff]
    %v682 = vld [vmem:[%s2 + $0x48] sm:$0xff]
    %v683 = vld [vmem:[%s2 + $0x50] sm:$0xff]
    %v684 = vld [vmem:[%s2 + $0x58] sm:$0xff]
    %v685 = vld [vmem:[%s2 + $0x60] sm:$0xff]
    %v686 = vld [vmem:[%s2 + $0x68] sm:$0xff]
    %v687 = vld [vmem:[%s2 + $0x70] sm:$0xff]
    %v688 = vld [vmem:[%s2 + $0x78] sm:$0xff]
    %v689 = vld [vmem:[%s2 + $0x80] sm:$0xff]
    %v690 = vld [vmem:[%s2 + $0x88] sm:$0xff]
    %v691 = vld [vmem:[%s2 + $0x90] sm:$0xff]
    %v692 = vld [vmem:[%s2 + $0x98] sm:$0xff]
    %v693 = vld [vmem:[%s4] sm:$0xff]
    %v694 = vld [vmem:[%s4 + $0x8] sm:$0xff]
    %v695 = vld [vmem:[%s4 + $0x10] sm:$0xff]
    %v696 = vld [vmem:[%s4 + $0x18] sm:$0xff]
    %v697 = vld [vmem:[%s4 + $0x20] sm:$0xff]
    %v698 = vld [vmem:[%s4 + $0x28] sm:$0xff]
    %v699 = vld [vmem:[%s4 + $0x30] sm:$0xff]
    %v700 = vld [vmem:[%s4 + $0x38] sm:$0xff]
    %v701 = vld [vmem:[%s4 + $0x40] sm:$0xff]
    %v702 = vld [vmem:[%s4 + $0x48] sm:$0xff]
    %v703 = vld [vmem:[%s4 + $0x50] sm:$0xff]
    %v704 = vld [vmem:[%s4 + $0x58] sm:$0xff]
    %v705 = vld [vmem:[%s4 + $0x60] sm:$0xff]
    %v706 = vld [vmem:[%s4 + $0x68] sm:$0xff]
    %v707 = vld [vmem:[%s4 + $0x70] sm:$0xff]
    %v708 = vld [vmem:[%s4 + $0x78] sm:$0xff]
    %v709 = vld [vmem:[%s4 + $0x80] sm:$0xff]
    %v710 = vld [vmem:[%s4 + $0x88] sm:$0xff]
    %v711 = vld [vmem:[%s6] sm:$0xff]
    %v712 = vld [vmem:[%s6 + $0x8] sm:$0xff]
    %v713 = vld [vmem:[%s6 + $0x10] sm:$0xff]
    %v714 = vld [vmem:[%s6 + $0x18] sm:$0xff]
    %v715 = vld [vmem:[%s6 + $0x20] sm:$0xff]
    %v716 = vld [vmem:[%s6 + $0x28] sm:$0xff]
    %v717 = vld [vmem:[%s6 + $0x30] sm:$0xff]
    %v718 = vld [vmem:[%s6 + $0x38] sm:$0xff]
    %v719 = vld [vmem:[%s6 + $0x40] sm:$0xff]
    %v720 = vld [vmem:[%s6 + $0x48] sm:$0xff]
    %v721 = vld [vmem:[%s6 + $0x50] sm:$0xff]
    %v722 = vld [vmem:[%s6 + $0x58] sm:$0xff]
    %v723 = vld [vmem:[%s6 + $0x60] sm:$0xff]
    %v724 = vld [vmem:[%s6 + $0x68] sm:$0xff]
    %v725 = vld [vmem:[%s6 + $0x70] sm:$0xff]
    %v726 = vld [vmem:[%s6 + $0x78] sm:$0xff]
    %v727 = vld [vmem:[%s3] sm:$0xff]
    %v728 = vld [vmem:[%s3 + $0x8] sm:$0xff]
    %v729 = vld [vmem:[%s3 + $0x10] sm:$0xff]
    %v730 = vld [vmem:[%s3 + $0x18] sm:$0xff]
    %v731 = vld [vmem:[%s3 + $0x20] sm:$0xff]
    %v732 = vld [vmem:[%s3 + $0x28] sm:$0xff]
    %v733 = vld [vmem:[%s3 + $0x30] sm:$0xff]
    %v734 = vld [vmem:[%s3 + $0x38] sm:$0xff]
    %v735 = vld [vmem:[%s3 + $0x40] sm:$0xff]
    %v736 = vld [vmem:[%s3 + $0x48] sm:$0xff]
    %v737 = vld [vmem:[%s3 + $0x50] sm:$0xff]
    %v738 = vld [vmem:[%s3 + $0x58] sm:$0xff]
    %v739 = vld [vmem:[%s3 + $0x60] sm:$0xff]
    %v740 = vld [vmem:[%s3 + $0x68] sm:$0xff]
    %v741 = vld [vmem:[%s3 + $0x70] sm:$0xff]
    %v742 = vld [vmem:[%s3 + $0x78] sm:$0xff]
    %v743 = vld [vmem:[%s3 + $0x80] sm:$0xff]
    %v744 = vld [vmem:[%s3 + $0x88] sm:$0xff]
    %v745 = vld [vmem:[%s3 + $0x90] sm:$0xff]
    %v746 = vld [vmem:[%s3 + $0x98] sm:$0xff]
    %v747 = vld [vmem:[%s5] sm:$0xff]
    %v748 = vld [vmem:[%s5 + $0x8] sm:$0xff]
    %v749 = vld [vmem:[%s5 + $0x10] sm:$0xff]
    %v750 = vld [vmem:[%s5 + $0x18] sm:$0xff]
    %v751 = vld [vmem:[%s5 + $0x20] sm:$0xff]
    %v752 = vld [vmem:[%s5 + $0x28] sm:$0xff]
    %v753 = vld [vmem:[%s5 + $0x30] sm:$0xff]
    %v754 = vld [vmem:[%s5 + $0x38] sm:$0xff]
    %v755 = vld [vmem:[%s5 + $0x40] sm:$0xff]
    %v756 = vld [vmem:[%s5 + $0x48] sm:$0xff]
    %v757 = vld [vmem:[%s5 + $0x50] sm:$0xff]
    %v758 = vld [vmem:[%s5 + $0x58] sm:$0xff]
    %v759 = vld [vmem:[%s5 + $0x60] sm:$0xff]
    %v760 = vld [vmem:[%s5 + $0x68] sm:$0xff]
    %v761 = vld [vmem:[%s5 + $0x70] sm:$0xff]
    %v762 = vld [vmem:[%s5 + $0x78] sm:$0xff]
    %v763 = vld [vmem:[%s5 + $0x80] sm:$0xff]
    %v764 = vld [vmem:[%s5 + $0x88] sm:$0xff]
    %v765 = vld [vmem:[%s7] sm:$0xff]
    %v766 = vld [vmem:[%s7 + $0x8] sm:$0xff]
    %v767 = vld [vmem:[%s7 + $0x10] sm:$0xff]
    %v768 = vld [vmem:[%s7 + $0x18] sm:$0xff]
    %v769 = vld [vmem:[%s7 + $0x20] sm:$0xff]
    %v770 = vld [vmem:[%s7 + $0x28] sm:$0xff]
    %v771 = vld [vmem:[%s7 + $0x30] sm:$0xff]
    %v772 = vld [vmem:[%s7 + $0x38] sm:$0xff]
    %v773 = vld [vmem:[%s7 + $0x40] sm:$0xff]
    %v774 = vld [vmem:[%s7 + $0x48] sm:$0xff]
    %v775 = vld [vmem:[%s7 + $0x50] sm:$0xff]
    %v776 = vld [vmem:[%s7 + $0x58] sm:$0xff]
    %v777 = vld [vmem:[%s7 + $0x60] sm:$0xff]
    %v778 = vld [vmem:[%s7 + $0x68] sm:$0xff]
    %v779 = vld [vmem:[%s7 + $0x70] sm:$0xff]
    %v780 = vld [vmem:[%s7 + $0x78] sm:$0xff]
    %v781 = vsub.f32 %v33, %v116
    %v782 = vsub.f32 %v34, %v116
    %v783 = vsub.f32 %v35, %v116
    %v784 = vsub.f32 %v36, %v116
    %v785 = vsub.f32 %v37, %v121
    %v786 = vsub.f32 %v38, %v121
    %v787 = vsub.f32 %v39, %v121
    %v788 = vsub.f32 %v40, %v121
    %v789 = vsub.f32 %v33, %v126
    %v790 = vsub.f32 %v34, %v126
    %v791 = vsub.f32 %v35, %v126
    %v792 = vsub.f32 %v36, %v126
    %v793 = vsub.f32 %v37, %v131
    %v794 = vsub.f32 %v38, %v131
    %v795 = vsub.f32 %v39, %v131
    %v796 = vsub.f32 %v40, %v131
    %v797 = vsub.f32 %v33, %v136
    %v798 = vsub.f32 %v34, %v136
    %v799 = vsub.f32 %v35, %v136
    %v800 = vsub.f32 %v36, %v136
    %v801 = vsub.f32 %v37, %v141
    %v802 = vsub.f32 %v38, %v141
    %v803 = vsub.f32 %v39, %v141
    %v804 = vsub.f32 %v40, %v141
    %v805 = vsub.f32 %v33, %v146
    %v806 = vsub.f32 %v34, %v146
    %v807 = vsub.f32 %v35, %v146
    %v808 = vsub.f32 %v36, %v146
    %v809 = vsub.f32 %v37, %v151
    %v810 = vsub.f32 %v38, %v151
    %v811 = vsub.f32 %v39, %v151
    %v812 = vsub.f32 %v40, %v151
    %v813 = vsub.f32 %v33, %v156
    %v814 = vsub.f32 %v34, %v156
    %v815 = vsub.f32 %v35, %v156
    %v816 = vsub.f32 %v36, %v156
    %v817 = vsub.f32 %v37, %v161
    %v818 = vsub.f32 %v38, %v161
    %v819 = vsub.f32 %v39, %v161
    %v820 = vsub.f32 %v40, %v161
    %v821 = vsub.f32 %v33, %v166
    %v822 = vsub.f32 %v34, %v166
    %v823 = vsub.f32 %v35, %v166
    %v824 = vsub.f32 %v36, %v166
    %v825 = vsub.f32 %v37, %v171
    %v826 = vsub.f32 %v38, %v171
    %v827 = vsub.f32 %v39, %v171
    %v828 = vsub.f32 %v40, %v171
    %v829 = vsub.f32 %v33, %v176
    %v830 = vsub.f32 %v34, %v176
    %v831 = vsub.f32 %v35, %v176
    %v832 = vsub.f32 %v36, %v176
    %v833 = vsub.f32 %v37, %v181
    %v834 = vsub.f32 %v38, %v181
    %v835 = vsub.f32 %v39, %v181
    %v836 = vsub.f32 %v40, %v181
    %v837 = vsub.f32 %v33, %v186
    %v838 = vsub.f32 %v34, %v186
    %v839 = vsub.f32 %v35, %v186
    %v840 = vsub.f32 %v36, %v186
    %v841 = vsub.f32 %v37, %v191
    %v842 = vsub.f32 %v38, %v191
    %v843 = vsub.f32 %v39, %v191
    %v844 = vsub.f32 %v40, %v191
    %v845 = vsub.f32 %v33, %v196
    %v846 = vsub.f32 %v34, %v196
    %v847 = vsub.f32 %v35, %v196
    %v848 = vsub.f32 %v36, %v196
    %v849 = vsub.f32 %v37, %v201
    %v850 = vsub.f32 %v38, %v201
    %v851 = vsub.f32 %v39, %v201
    %v852 = vsub.f32 %v40, %v201
    %v853 = vsub.f32 %v33, %v206
    %v854 = vsub.f32 %v34, %v206
    %v855 = vsub.f32 %v35, %v206
    %v856 = vsub.f32 %v36, %v206
    %v857 = vsub.f32 %v37, %v211
    %v858 = vsub.f32 %v38, %v211
    %v859 = vsub.f32 %v39, %v211
    %v860 = vsub.f32 %v40, %v211
    %862 = vset.pattern.permute.xlu0 0
    %863 = vperm.xlu0 %862, %v673
    %v864 = vpop.permute.xlu0 %863
    %867 = vset.pattern.permute.xlu0 0
    %868 = vperm.xlu0 %867, %v674
    %v869 = vpop.permute.xlu0 %868
    %872 = vset.pattern.permute.xlu0 0
    %873 = vperm.xlu0 %872, %v675
    %v874 = vpop.permute.xlu0 %873
    %877 = vset.pattern.permute.xlu0 0
    %878 = vperm.xlu0 %877, %v676
    %v879 = vpop.permute.xlu0 %878
    %882 = vset.pattern.permute.xlu0 0
    %883 = vperm.xlu0 %882, %v677
    %v884 = vpop.permute.xlu0 %883
    %887 = vset.pattern.permute.xlu0 0
    %888 = vperm.xlu0 %887, %v678
    %v889 = vpop.permute.xlu0 %888
    %892 = vset.pattern.permute.xlu0 0
    %893 = vperm.xlu0 %892, %v679
    %v894 = vpop.permute.xlu0 %893
    %897 = vset.pattern.permute.xlu0 0
    %898 = vperm.xlu0 %897, %v680
    %v899 = vpop.permute.xlu0 %898
    %902 = vset.pattern.permute.xlu0 0
    %903 = vperm.xlu0 %902, %v681
    %v904 = vpop.permute.xlu0 %903
    %907 = vset.pattern.permute.xlu0 0
    %908 = vperm.xlu0 %907, %v682
    %v909 = vpop.permute.xlu0 %908
    %912 = vset.pattern.permute.xlu0 0
    %913 = vperm.xlu0 %912, %v683
    %v914 = vpop.permute.xlu0 %913
    %917 = vset.pattern.permute.xlu0 0
    %918 = vperm.xlu0 %917, %v684
    %v919 = vpop.permute.xlu0 %918
    %922 = vset.pattern.permute.xlu0 0
    %923 = vperm.xlu0 %922, %v685
    %v924 = vpop.permute.xlu0 %923
    %927 = vset.pattern.permute.xlu0 0
    %928 = vperm.xlu0 %927, %v686
    %v929 = vpop.permute.xlu0 %928
    %932 = vset.pattern.permute.xlu0 0
    %933 = vperm.xlu0 %932, %v687
    %v934 = vpop.permute.xlu0 %933
    %937 = vset.pattern.permute.xlu0 0
    %938 = vperm.xlu0 %937, %v688
    %v939 = vpop.permute.xlu0 %938
    %942 = vset.pattern.permute.xlu0 0
    %943 = vperm.xlu0 %942, %v689
    %v944 = vpop.permute.xlu0 %943
    %947 = vset.pattern.permute.xlu0 0
    %948 = vperm.xlu0 %947, %v690
    %v949 = vpop.permute.xlu0 %948
    %952 = vset.pattern.permute.xlu0 0
    %953 = vperm.xlu0 %952, %v691
    %v954 = vpop.permute.xlu0 %953
    %957 = vset.pattern.permute.xlu0 0
    %958 = vperm.xlu0 %957, %v692
    %v959 = vpop.permute.xlu0 %958
    %v961 = vmul.f32 %v781, %v864
    %v962 = vmul.f32 %v782, %v864
    %v963 = vmul.f32 %v783, %v864
    %v964 = vmul.f32 %v784, %v864
    %v965 = vmul.f32 %v785, %v869
    %v966 = vmul.f32 %v786, %v869
    %v967 = vmul.f32 %v787, %v869
    %v968 = vmul.f32 %v788, %v869
    %v969 = vmul.f32 %v789, %v874
    %v970 = vmul.f32 %v790, %v874
    %v971 = vmul.f32 %v791, %v874
    %v972 = vmul.f32 %v792, %v874
    %v973 = vmul.f32 %v793, %v879
    %v974 = vmul.f32 %v794, %v879
    %v975 = vmul.f32 %v795, %v879
    %v976 = vmul.f32 %v796, %v879
    %v977 = vmul.f32 %v797, %v884
    %v978 = vmul.f32 %v798, %v884
    %v979 = vmul.f32 %v799, %v884
    %v980 = vmul.f32 %v800, %v884
    %v981 = vmul.f32 %v801, %v889
    %v982 = vmul.f32 %v802, %v889
    %v983 = vmul.f32 %v803, %v889
    %v984 = vmul.f32 %v804, %v889
    %v985 = vmul.f32 %v805, %v894
    %v986 = vmul.f32 %v806, %v894
    %v987 = vmul.f32 %v807, %v894
    %v988 = vmul.f32 %v808, %v894
    %v989 = vmul.f32 %v809, %v899
    %v990 = vmul.f32 %v810, %v899
    %v991 = vmul.f32 %v811, %v899
    %v992 = vmul.f32 %v812, %v899
    %v993 = vmul.f32 %v813, %v904
    %v994 = vmul.f32 %v814, %v904
    %v995 = vmul.f32 %v815, %v904
    %v996 = vmul.f32 %v816, %v904
    %v997 = vmul.f32 %v817, %v909
    %v998 = vmul.f32 %v818, %v909
    %v999 = vmul.f32 %v819, %v909
    %v1000 = vmul.f32 %v820, %v909
    %v1001 = vmul.f32 %v821, %v914
    %v1002 = vmul.f32 %v822, %v914
    %v1003 = vmul.f32 %v823, %v914
    %v1004 = vmul.f32 %v824, %v914
    %v1005 = vmul.f32 %v825, %v919
    %v1006 = vmul.f32 %v826, %v919
    %v1007 = vmul.f32 %v827, %v919
    %v1008 = vmul.f32 %v828, %v919
    %v1009 = vmul.f32 %v829, %v924
    %v1010 = vmul.f32 %v830, %v924
    %v1011 = vmul.f32 %v831, %v924
    %v1012 = vmul.f32 %v832, %v924
    %v1013 = vmul.f32 %v833, %v929
    %v1014 = vmul.f32 %v834, %v929
    %v1015 = vmul.f32 %v835, %v929
    %v1016 = vmul.f32 %v836, %v929
    %v1017 = vmul.f32 %v837, %v934
    %v1018 = vmul.f32 %v838, %v934
    %v1019 = vmul.f32 %v839, %v934
    %v1020 = vmul.f32 %v840, %v934
    %v1021 = vmul.f32 %v841, %v939
    %v1022 = vmul.f32 %v842, %v939
    %v1023 = vmul.f32 %v843, %v939
    %v1024 = vmul.f32 %v844, %v939
    %v1025 = vmul.f32 %v845, %v944
    %v1026 = vmul.f32 %v846, %v944
    %v1027 = vmul.f32 %v847, %v944
    %v1028 = vmul.f32 %v848, %v944
    %v1029 = vmul.f32 %v849, %v949
    %v1030 = vmul.f32 %v850, %v949
    %v1031 = vmul.f32 %v851, %v949
    %v1032 = vmul.f32 %v852, %v949
    %v1033 = vmul.f32 %v853, %v954
    %v1034 = vmul.f32 %v854, %v954
    %v1035 = vmul.f32 %v855, %v954
    %v1036 = vmul.f32 %v856, %v954
    %v1037 = vmul.f32 %v857, %v959
    %v1038 = vmul.f32 %v858, %v959
    %v1039 = vmul.f32 %v859, %v959
    %v1040 = vmul.f32 %v860, %v959
    %v1041 = vsub.f32 %v136, %v33
    %v1042 = vsub.f32 %v136, %v34
    %v1043 = vsub.f32 %v136, %v35
    %v1044 = vsub.f32 %v136, %v36
    %v1045 = vsub.f32 %v141, %v37
    %v1046 = vsub.f32 %v141, %v38
    %v1047 = vsub.f32 %v141, %v39
    %v1048 = vsub.f32 %v141, %v40
    %v1049 = vsub.f32 %v146, %v33
    %v1050 = vsub.f32 %v146, %v34
    %v1051 = vsub.f32 %v146, %v35
    %v1052 = vsub.f32 %v146, %v36
    %v1053 = vsub.f32 %v151, %v37
    %v1054 = vsub.f32 %v151, %v38
    %v1055 = vsub.f32 %v151, %v39
    %v1056 = vsub.f32 %v151, %v40
    %v1057 = vsub.f32 %v156, %v33
    %v1058 = vsub.f32 %v156, %v34
    %v1059 = vsub.f32 %v156, %v35
    %v1060 = vsub.f32 %v156, %v36
    %v1061 = vsub.f32 %v161, %v37
    %v1062 = vsub.f32 %v161, %v38
    %v1063 = vsub.f32 %v161, %v39
    %v1064 = vsub.f32 %v161, %v40
    %v1065 = vsub.f32 %v166, %v33
    %v1066 = vsub.f32 %v166, %v34
    %v1067 = vsub.f32 %v166, %v35
    %v1068 = vsub.f32 %v166, %v36
    %v1069 = vsub.f32 %v171, %v37
    %v1070 = vsub.f32 %v171, %v38
    %v1071 = vsub.f32 %v171, %v39
    %v1072 = vsub.f32 %v171, %v40
    %v1073 = vsub.f32 %v176, %v33
    %v1074 = vsub.f32 %v176, %v34
    %v1075 = vsub.f32 %v176, %v35
    %v1076 = vsub.f32 %v176, %v36
    %v1077 = vsub.f32 %v181, %v37
    %v1078 = vsub.f32 %v181, %v38
    %v1079 = vsub.f32 %v181, %v39
    %v1080 = vsub.f32 %v181, %v40
    %v1081 = vsub.f32 %v186, %v33
    %v1082 = vsub.f32 %v186, %v34
    %v1083 = vsub.f32 %v186, %v35
    %v1084 = vsub.f32 %v186, %v36
    %v1085 = vsub.f32 %v191, %v37
    %v1086 = vsub.f32 %v191, %v38
    %v1087 = vsub.f32 %v191, %v39
    %v1088 = vsub.f32 %v191, %v40
    %v1089 = vsub.f32 %v196, %v33
    %v1090 = vsub.f32 %v196, %v34
    %v1091 = vsub.f32 %v196, %v35
    %v1092 = vsub.f32 %v196, %v36
    %v1093 = vsub.f32 %v201, %v37
    %v1094 = vsub.f32 %v201, %v38
    %v1095 = vsub.f32 %v201, %v39
    %v1096 = vsub.f32 %v201, %v40
    %v1097 = vsub.f32 %v206, %v33
    %v1098 = vsub.f32 %v206, %v34
    %v1099 = vsub.f32 %v206, %v35
    %v1100 = vsub.f32 %v206, %v36
    %v1101 = vsub.f32 %v211, %v37
    %v1102 = vsub.f32 %v211, %v38
    %v1103 = vsub.f32 %v211, %v39
    %v1104 = vsub.f32 %v211, %v40
    %v1105 = vsub.f32 %v216, %v33
    %v1106 = vsub.f32 %v216, %v34
    %v1107 = vsub.f32 %v216, %v35
    %v1108 = vsub.f32 %v216, %v36
    %v1109 = vsub.f32 %v221, %v37
    %v1110 = vsub.f32 %v221, %v38
    %v1111 = vsub.f32 %v221, %v39
    %v1112 = vsub.f32 %v221, %v40
    %v1113 = vsub.f32 %v314, %v33
    %v1114 = vsub.f32 %v314, %v34
    %v1115 = vsub.f32 %v314, %v35
    %v1116 = vsub.f32 %v314, %v36
    %v1117 = vsub.f32 %v319, %v37
    %v1118 = vsub.f32 %v319, %v38
    %v1119 = vsub.f32 %v319, %v39
    %v1120 = vsub.f32 %v319, %v40
    %1122 = vset.pattern.permute.xlu0 0
    %1123 = vperm.xlu0 %1122, %v727
    %v1124 = vpop.permute.xlu0 %1123
    %1127 = vset.pattern.permute.xlu0 0
    %1128 = vperm.xlu0 %1127, %v728
    %v1129 = vpop.permute.xlu0 %1128
    %1132 = vset.pattern.permute.xlu0 0
    %1133 = vperm.xlu0 %1132, %v729
    %v1134 = vpop.permute.xlu0 %1133
    %1137 = vset.pattern.permute.xlu0 0
    %1138 = vperm.xlu0 %1137, %v730
    %v1139 = vpop.permute.xlu0 %1138
    %1142 = vset.pattern.permute.xlu0 0
    %1143 = vperm.xlu0 %1142, %v731
    %v1144 = vpop.permute.xlu0 %1143
    %1147 = vset.pattern.permute.xlu0 0
    %1148 = vperm.xlu0 %1147, %v732
    %v1149 = vpop.permute.xlu0 %1148
    %1152 = vset.pattern.permute.xlu0 0
    %1153 = vperm.xlu0 %1152, %v733
    %v1154 = vpop.permute.xlu0 %1153
    %1157 = vset.pattern.permute.xlu0 0
    %1158 = vperm.xlu0 %1157, %v734
    %v1159 = vpop.permute.xlu0 %1158
    %1162 = vset.pattern.permute.xlu0 0
    %1163 = vperm.xlu0 %1162, %v735
    %v1164 = vpop.permute.xlu0 %1163
    %1167 = vset.pattern.permute.xlu0 0
    %1168 = vperm.xlu0 %1167, %v736
    %v1169 = vpop.permute.xlu0 %1168
    %1172 = vset.pattern.permute.xlu0 0
    %1173 = vperm.xlu0 %1172, %v737
    %v1174 = vpop.permute.xlu0 %1173
    %1177 = vset.pattern.permute.xlu0 0
    %1178 = vperm.xlu0 %1177, %v738
    %v1179 = vpop.permute.xlu0 %1178
    %1182 = vset.pattern.permute.xlu0 0
    %1183 = vperm.xlu0 %1182, %v739
    %v1184 = vpop.permute.xlu0 %1183
    %1187 = vset.pattern.permute.xlu0 0
    %1188 = vperm.xlu0 %1187, %v740
    %v1189 = vpop.permute.xlu0 %1188
    %1192 = vset.pattern.permute.xlu0 0
    %1193 = vperm.xlu0 %1192, %v741
    %v1194 = vpop.permute.xlu0 %1193
    %1197 = vset.pattern.permute.xlu0 0
    %1198 = vperm.xlu0 %1197, %v742
    %v1199 = vpop.permute.xlu0 %1198
    %1202 = vset.pattern.permute.xlu0 0
    %1203 = vperm.xlu0 %1202, %v743
    %v1204 = vpop.permute.xlu0 %1203
    %1207 = vset.pattern.permute.xlu0 0
    %1208 = vperm.xlu0 %1207, %v744
    %v1209 = vpop.permute.xlu0 %1208
    %1212 = vset.pattern.permute.xlu0 0
    %1213 = vperm.xlu0 %1212, %v745
    %v1214 = vpop.permute.xlu0 %1213
    %1217 = vset.pattern.permute.xlu0 0
    %1218 = vperm.xlu0 %1217, %v746
    %v1219 = vpop.permute.xlu0 %1218
    %v1221 = vmul.f32 %v1041, %v1124
    %v1222 = vmul.f32 %v1042, %v1124
    %v1223 = vmul.f32 %v1043, %v1124
    %v1224 = vmul.f32 %v1044, %v1124
    %v1225 = vmul.f32 %v1045, %v1129
    %v1226 = vmul.f32 %v1046, %v1129
    %v1227 = vmul.f32 %v1047, %v1129
    %v1228 = vmul.f32 %v1048, %v1129
    %v1229 = vmul.f32 %v1049, %v1134
    %v1230 = vmul.f32 %v1050, %v1134
    %v1231 = vmul.f32 %v1051, %v1134
    %v1232 = vmul.f32 %v1052, %v1134
    %v1233 = vmul.f32 %v1053, %v1139
    %v1234 = vmul.f32 %v1054, %v1139
    %v1235 = vmul.f32 %v1055, %v1139
    %v1236 = vmul.f32 %v1056, %v1139
    %v1237 = vmul.f32 %v1057, %v1144
    %v1238 = vmul.f32 %v1058, %v1144
    %v1239 = vmul.f32 %v1059, %v1144
    %v1240 = vmul.f32 %v1060, %v1144
    %v1241 = vmul.f32 %v1061, %v1149
    %v1242 = vmul.f32 %v1062, %v1149
    %v1243 = vmul.f32 %v1063, %v1149
    %v1244 = vmul.f32 %v1064, %v1149
    %v1245 = vmul.f32 %v1065, %v1154
    %v1246 = vmul.f32 %v1066, %v1154
    %v1247 = vmul.f32 %v1067, %v1154
    %v1248 = vmul.f32 %v1068, %v1154
    %v1249 = vmul.f32 %v1069, %v1159
    %v1250 = vmul.f32 %v1070, %v1159
    %v1251 = vmul.f32 %v1071, %v1159
    %v1252 = vmul.f32 %v1072, %v1159
    %v1253 = vmul.f32 %v1073, %v1164
    %v1254 = vmul.f32 %v1074, %v1164
    %v1255 = vmul.f32 %v1075, %v1164
    %v1256 = vmul.f32 %v1076, %v1164
    %v1257 = vmul.f32 %v1077, %v1169
    %v1258 = vmul.f32 %v1078, %v1169
    %v1259 = vmul.f32 %v1079, %v1169
    %v1260 = vmul.f32 %v1080, %v1169
    %v1261 = vmul.f32 %v1081, %v1174
    %v1262 = vmul.f32 %v1082, %v1174
    %v1263 = vmul.f32 %v1083, %v1174
    %v1264 = vmul.f32 %v1084, %v1174
    %v1265 = vmul.f32 %v1085, %v1179
    %v1266 = vmul.f32 %v1086, %v1179
    %v1267 = vmul.f32 %v1087, %v1179
    %v1268 = vmul.f32 %v1088, %v1179
    %v1269 = vmul.f32 %v1089, %v1184
    %v1270 = vmul.f32 %v1090, %v1184
    %v1271 = vmul.f32 %v1091, %v1184
    %v1272 = vmul.f32 %v1092, %v1184
    %v1273 = vmul.f32 %v1093, %v1189
    %v1274 = vmul.f32 %v1094, %v1189
    %v1275 = vmul.f32 %v1095, %v1189
    %v1276 = vmul.f32 %v1096, %v1189
    %v1277 = vmul.f32 %v1097, %v1194
    %v1278 = vmul.f32 %v1098, %v1194
    %v1279 = vmul.f32 %v1099, %v1194
    %v1280 = vmul.f32 %v1100, %v1194
    %v1281 = vmul.f32 %v1101, %v1199
    %v1282 = vmul.f32 %v1102, %v1199
    %v1283 = vmul.f32 %v1103, %v1199
    %v1284 = vmul.f32 %v1104, %v1199
    %v1285 = vmul.f32 %v1105, %v1204
    %v1286 = vmul.f32 %v1106, %v1204
    %v1287 = vmul.f32 %v1107, %v1204
    %v1288 = vmul.f32 %v1108, %v1204
    %v1289 = vmul.f32 %v1109, %v1209
    %v1290 = vmul.f32 %v1110, %v1209
    %v1291 = vmul.f32 %v1111, %v1209
    %v1292 = vmul.f32 %v1112, %v1209
    %v1293 = vmul.f32 %v1113, %v1214
    %v1294 = vmul.f32 %v1114, %v1214
    %v1295 = vmul.f32 %v1115, %v1214
    %v1296 = vmul.f32 %v1116, %v1214
    %v1297 = vmul.f32 %v1117, %v1219
    %v1298 = vmul.f32 %v1118, %v1219
    %v1299 = vmul.f32 %v1119, %v1219
    %v1300 = vmul.f32 %v1120, %v1219
    %v1301 = vmul.f32 %v961, %v585
    %v1302 = vmul.f32 %v962, %v586
    %v1303 = vmul.f32 %v963, %v587
    %v1304 = vmul.f32 %v964, %v588
    %v1305 = vmul.f32 %v965, %v589
    %v1306 = vmul.f32 %v966, %v590
    %v1307 = vmul.f32 %v967, %v591
    %v1308 = vmul.f32 %v968, %v592
    %v1309 = vmul.f32 %v969, %v593
    %v1310 = vmul.f32 %v970, %v594
    %v1311 = vmul.f32 %v971, %v595
    %v1312 = vmul.f32 %v972, %v596
    %v1313 = vmul.f32 %v973, %v597
    %v1314 = vmul.f32 %v974, %v598
    %v1315 = vmul.f32 %v975, %v599
    %v1316 = vmul.f32 %v976, %v600
    %v1317 = vmul.f32 %v977, %v601
    %v1318 = vmul.f32 %v978, %v602
    %v1319 = vmul.f32 %v979, %v603
    %v1320 = vmul.f32 %v980, %v604
    %v1321 = vmul.f32 %v981, %v605
    %v1322 = vmul.f32 %v982, %v606
    %v1323 = vmul.f32 %v983, %v607
    %v1324 = vmul.f32 %v984, %v608
    %v1325 = vmul.f32 %v985, %v609
    %v1326 = vmul.f32 %v986, %v610
    %v1327 = vmul.f32 %v987, %v611
    %v1328 = vmul.f32 %v988, %v612
    %v1329 = vmul.f32 %v989, %v613
    %v1330 = vmul.f32 %v990, %v614
    %v1331 = vmul.f32 %v991, %v615
    %v1332 = vmul.f32 %v992, %v616
    %v1333 = vmul.f32 %v993, %v617
    %v1334 = vmul.f32 %v994, %v618
    %v1335 = vmul.f32 %v995, %v619
    %v1336 = vmul.f32 %v996, %v620
    %v1337 = vmul.f32 %v997, %v621
    %v1338 = vmul.f32 %v998, %v622
    %v1339 = vmul.f32 %v999, %v623
    %v1340 = vmul.f32 %v1000, %v624
    %v1341 = vmul.f32 %v1001, %v625
    %v1342 = vmul.f32 %v1002, %v626
    %v1343 = vmul.f32 %v1003, %v627
    %v1344 = vmul.f32 %v1004, %v628
    %v1345 = vmul.f32 %v1005, %v629
    %v1346 = vmul.f32 %v1006, %v630
    %v1347 = vmul.f32 %v1007, %v631
    %v1348 = vmul.f32 %v1008, %v632
    %v1349 = vmul.f32 %v1009, %v633
    %v1350 = vmul.f32 %v1010, %v634
    %v1351 = vmul.f32 %v1011, %v635
    %v1352 = vmul.f32 %v1012, %v636
    %v1353 = vmul.f32 %v1013, %v637
    %v1354 = vmul.f32 %v1014, %v638
    %v1355 = vmul.f32 %v1015, %v639
    %v1356 = vmul.f32 %v1016, %v640
    %v1357 = vmul.f32 %v1017, %v641
    %v1358 = vmul.f32 %v1018, %v642
    %v1359 = vmul.f32 %v1019, %v643
    %v1360 = vmul.f32 %v1020, %v644
    %v1361 = vmul.f32 %v1021, %v645
    %v1362 = vmul.f32 %v1022, %v646
    %v1363 = vmul.f32 %v1023, %v647
    %v1364 = vmul.f32 %v1024, %v648
    %v1365 = vmul.f32 %v1025, %v649
    %v1366 = vmul.f32 %v1026, %v650
    %v1367 = vmul.f32 %v1027, %v651
    %v1368 = vmul.f32 %v1028, %v652
    %v1369 = vmul.f32 %v1029, %v653
    %v1370 = vmul.f32 %v1030, %v654
    %v1371 = vmul.f32 %v1031, %v655
    %v1372 = vmul.f32 %v1032, %v656
    %v1373 = vmul.f32 %v1033, %v657
    %v1374 = vmul.f32 %v1034, %v658
    %v1375 = vmul.f32 %v1035, %v659
    %v1376 = vmul.f32 %v1036, %v660
    %v1377 = vmul.f32 %v1037, %v661
    %v1378 = vmul.f32 %v1038, %v662
    %v1379 = vmul.f32 %v1039, %v663
    %v1380 = vmul.f32 %v1040, %v664
    %v1381 = vmul.f32 %v1221, %v593
    %v1382 = vmul.f32 %v1222, %v594
    %v1383 = vmul.f32 %v1223, %v595
    %v1384 = vmul.f32 %v1224, %v596
    %v1385 = vmul.f32 %v1225, %v597
    %v1386 = vmul.f32 %v1226, %v598
    %v1387 = vmul.f32 %v1227, %v599
    %v1388 = vmul.f32 %v1228, %v600
    %v1389 = vmul.f32 %v1229, %v601
    %v1390 = vmul.f32 %v1230, %v602
    %v1391 = vmul.f32 %v1231, %v603
    %v1392 = vmul.f32 %v1232, %v604
    %v1393 = vmul.f32 %v1233, %v605
    %v1394 = vmul.f32 %v1234, %v606
    %v1395 = vmul.f32 %v1235, %v607
    %v1396 = vmul.f32 %v1236, %v608
    %v1397 = vmul.f32 %v1237, %v609
    %v1398 = vmul.f32 %v1238, %v610
    %v1399 = vmul.f32 %v1239, %v611
    %v1400 = vmul.f32 %v1240, %v612
    %v1401 = vmul.f32 %v1241, %v613
    %v1402 = vmul.f32 %v1242, %v614
    %v1403 = vmul.f32 %v1243, %v615
    %v1404 = vmul.f32 %v1244, %v616
    %v1405 = vmul.f32 %v1245, %v617
    %v1406 = vmul.f32 %v1246, %v618
    %v1407 = vmul.f32 %v1247, %v619
    %v1408 = vmul.f32 %v1248, %v620
    %v1409 = vmul.f32 %v1249, %v621
    %v1410 = vmul.f32 %v1250, %v622
    %v1411 = vmul.f32 %v1251, %v623
    %v1412 = vmul.f32 %v1252, %v624
    %v1413 = vmul.f32 %v1253, %v625
    %v1414 = vmul.f32 %v1254, %v626
    %v1415 = vmul.f32 %v1255, %v627
    %v1416 = vmul.f32 %v1256, %v628
    %v1417 = vmul.f32 %v1257, %v629
    %v1418 = vmul.f32 %v1258, %v630
    %v1419 = vmul.f32 %v1259, %v631
    %v1420 = vmul.f32 %v1260, %v632
    %v1421 = vmul.f32 %v1261, %v633
    %v1422 = vmul.f32 %v1262, %v634
    %v1423 = vmul.f32 %v1263, %v635
    %v1424 = vmul.f32 %v1264, %v636
    %v1425 = vmul.f32 %v1265, %v637
    %v1426 = vmul.f32 %v1266, %v638
    %v1427 = vmul.f32 %v1267, %v639
    %v1428 = vmul.f32 %v1268, %v640
    %v1429 = vmul.f32 %v1269, %v641
    %v1430 = vmul.f32 %v1270, %v642
    %v1431 = vmul.f32 %v1271, %v643
    %v1432 = vmul.f32 %v1272, %v644
    %v1433 = vmul.f32 %v1273, %v645
    %v1434 = vmul.f32 %v1274, %v646
    %v1435 = vmul.f32 %v1275, %v647
    %v1436 = vmul.f32 %v1276, %v648
    %v1437 = vmul.f32 %v1277, %v649
    %v1438 = vmul.f32 %v1278, %v650
    %v1439 = vmul.f32 %v1279, %v651
    %v1440 = vmul.f32 %v1280, %v652
    %v1441 = vmul.f32 %v1281, %v653
    %v1442 = vmul.f32 %v1282, %v654
    %v1443 = vmul.f32 %v1283, %v655
    %v1444 = vmul.f32 %v1284, %v656
    %v1445 = vmul.f32 %v1285, %v657
    %v1446 = vmul.f32 %v1286, %v658
    %v1447 = vmul.f32 %v1287, %v659
    %v1448 = vmul.f32 %v1288, %v660
    %v1449 = vmul.f32 %v1289, %v661
    %v1450 = vmul.f32 %v1290, %v662
    %v1451 = vmul.f32 %v1291, %v663
    %v1452 = vmul.f32 %v1292, %v664
    %v1453 = vmul.f32 %v1293, %v665
    %v1454 = vmul.f32 %v1294, %v666
    %v1455 = vmul.f32 %v1295, %v667
    %v1456 = vmul.f32 %v1296, %v668
    %v1457 = vmul.f32 %v1297, %v669
    %v1458 = vmul.f32 %v1298, %v670
    %v1459 = vmul.f32 %v1299, %v671
    %v1460 = vmul.f32 %v1300, %v672
    %v1461 = vadd.f32 %v1301, %v1381
    %v1462 = vadd.f32 %v1302, %v1382
    %v1463 = vadd.f32 %v1303, %v1383
    %v1464 = vadd.f32 %v1304, %v1384
    %v1465 = vadd.f32 %v1305, %v1385
    %v1466 = vadd.f32 %v1306, %v1386
    %v1467 = vadd.f32 %v1307, %v1387
    %v1468 = vadd.f32 %v1308, %v1388
    %v1469 = vadd.f32 %v1309, %v1389
    %v1470 = vadd.f32 %v1310, %v1390
    %v1471 = vadd.f32 %v1311, %v1391
    %v1472 = vadd.f32 %v1312, %v1392
    %v1473 = vadd.f32 %v1313, %v1393
    %v1474 = vadd.f32 %v1314, %v1394
    %v1475 = vadd.f32 %v1315, %v1395
    %v1476 = vadd.f32 %v1316, %v1396
    %v1477 = vadd.f32 %v1317, %v1397
    %v1478 = vadd.f32 %v1318, %v1398
    %v1479 = vadd.f32 %v1319, %v1399
    %v1480 = vadd.f32 %v1320, %v1400
    %v1481 = vadd.f32 %v1321, %v1401
    %v1482 = vadd.f32 %v1322, %v1402
    %v1483 = vadd.f32 %v1323, %v1403
    %v1484 = vadd.f32 %v1324, %v1404
    %v1485 = vadd.f32 %v1325, %v1405
    %v1486 = vadd.f32 %v1326, %v1406
    %v1487 = vadd.f32 %v1327, %v1407
    %v1488 = vadd.f32 %v1328, %v1408
    %v1489 = vadd.f32 %v1329, %v1409
    %v1490 = vadd.f32 %v1330, %v1410
    %v1491 = vadd.f32 %v1331, %v1411
    %v1492 = vadd.f32 %v1332, %v1412
    %v1493 = vadd.f32 %v1333, %v1413
    %v1494 = vadd.f32 %v1334, %v1414
    %v1495 = vadd.f32 %v1335, %v1415
    %v1496 = vadd.f32 %v1336, %v1416
    %v1497 = vadd.f32 %v1337, %v1417
    %v1498 = vadd.f32 %v1338, %v1418
    %v1499 = vadd.f32 %v1339, %v1419
    %v1500 = vadd.f32 %v1340, %v1420
    %v1501 = vadd.f32 %v1341, %v1421
    %v1502 = vadd.f32 %v1342, %v1422
    %v1503 = vadd.f32 %v1343, %v1423
    %v1504 = vadd.f32 %v1344, %v1424
    %v1505 = vadd.f32 %v1345, %v1425
    %v1506 = vadd.f32 %v1346, %v1426
    %v1507 = vadd.f32 %v1347, %v1427
    %v1508 = vadd.f32 %v1348, %v1428
    %v1509 = vadd.f32 %v1349, %v1429
    %v1510 = vadd.f32 %v1350, %v1430
    %v1511 = vadd.f32 %v1351, %v1431
    %v1512 = vadd.f32 %v1352, %v1432
    %v1513 = vadd.f32 %v1353, %v1433
    %v1514 = vadd.f32 %v1354, %v1434
    %v1515 = vadd.f32 %v1355, %v1435
    %v1516 = vadd.f32 %v1356, %v1436
    %v1517 = vadd.f32 %v1357, %v1437
    %v1518 = vadd.f32 %v1358, %v1438
    %v1519 = vadd.f32 %v1359, %v1439
    %v1520 = vadd.f32 %v1360, %v1440
    %v1521 = vadd.f32 %v1361, %v1441
    %v1522 = vadd.f32 %v1362, %v1442
    %v1523 = vadd.f32 %v1363, %v1443
    %v1524 = vadd.f32 %v1364, %v1444
    %v1525 = vadd.f32 %v1365, %v1445
    %v1526 = vadd.f32 %v1366, %v1446
    %v1527 = vadd.f32 %v1367, %v1447
    %v1528 = vadd.f32 %v1368, %v1448
    %v1529 = vadd.f32 %v1369, %v1449
    %v1530 = vadd.f32 %v1370, %v1450
    %v1531 = vadd.f32 %v1371, %v1451
    %v1532 = vadd.f32 %v1372, %v1452
    %v1533 = vadd.f32 %v1373, %v1453
    %v1534 = vadd.f32 %v1374, %v1454
    %v1535 = vadd.f32 %v1375, %v1455
    %v1536 = vadd.f32 %v1376, %v1456
    %v1537 = vadd.f32 %v1377, %v1457
    %v1538 = vadd.f32 %v1378, %v1458
    %v1539 = vadd.f32 %v1379, %v1459
    %v1540 = vadd.f32 %v1380, %v1460
    %1542 = vset.pattern.permute.xlu0 0
    %1543 = vperm.xlu0 %1542, %v693
    %v1544 = vpop.permute.xlu0 %1543
    %1547 = vset.pattern.permute.xlu0 0
    %1548 = vperm.xlu0 %1547, %v694
    %v1549 = vpop.permute.xlu0 %1548
    %1552 = vset.pattern.permute.xlu0 0
    %1553 = vperm.xlu0 %1552, %v695
    %v1554 = vpop.permute.xlu0 %1553
    %1557 = vset.pattern.permute.xlu0 0
    %1558 = vperm.xlu0 %1557, %v696
    %v1559 = vpop.permute.xlu0 %1558
    %1562 = vset.pattern.permute.xlu0 0
    %1563 = vperm.xlu0 %1562, %v697
    %v1564 = vpop.permute.xlu0 %1563
    %1567 = vset.pattern.permute.xlu0 0
    %1568 = vperm.xlu0 %1567, %v698
    %v1569 = vpop.permute.xlu0 %1568
    %1572 = vset.pattern.permute.xlu0 0
    %1573 = vperm.xlu0 %1572, %v699
    %v1574 = vpop.permute.xlu0 %1573
    %1577 = vset.pattern.permute.xlu0 0
    %1578 = vperm.xlu0 %1577, %v700
    %v1579 = vpop.permute.xlu0 %1578
    %1582 = vset.pattern.permute.xlu0 0
    %1583 = vperm.xlu0 %1582, %v701
    %v1584 = vpop.permute.xlu0 %1583
    %1587 = vset.pattern.permute.xlu0 0
    %1588 = vperm.xlu0 %1587, %v702
    %v1589 = vpop.permute.xlu0 %1588
    %1592 = vset.pattern.permute.xlu0 0
    %1593 = vperm.xlu0 %1592, %v703
    %v1594 = vpop.permute.xlu0 %1593
    %1597 = vset.pattern.permute.xlu0 0
    %1598 = vperm.xlu0 %1597, %v704
    %v1599 = vpop.permute.xlu0 %1598
    %1602 = vset.pattern.permute.xlu0 0
    %1603 = vperm.xlu0 %1602, %v705
    %v1604 = vpop.permute.xlu0 %1603
    %1607 = vset.pattern.permute.xlu0 0
    %1608 = vperm.xlu0 %1607, %v706
    %v1609 = vpop.permute.xlu0 %1608
    %1612 = vset.pattern.permute.xlu0 0
    %1613 = vperm.xlu0 %1612, %v707
    %v1614 = vpop.permute.xlu0 %1613
    %1617 = vset.pattern.permute.xlu0 0
    %1618 = vperm.xlu0 %1617, %v708
    %v1619 = vpop.permute.xlu0 %1618
    %1622 = vset.pattern.permute.xlu0 0
    %1623 = vperm.xlu0 %1622, %v709
    %v1624 = vpop.permute.xlu0 %1623
    %1627 = vset.pattern.permute.xlu0 0
    %1628 = vperm.xlu0 %1627, %v710
    %v1629 = vpop.permute.xlu0 %1628
    %v1631 = vmul.f32 %v781, %v1544
    %v1632 = vmul.f32 %v782, %v1544
    %v1633 = vmul.f32 %v783, %v1544
    %v1634 = vmul.f32 %v784, %v1544
    %v1635 = vmul.f32 %v785, %v1549
    %v1636 = vmul.f32 %v786, %v1549
    %v1637 = vmul.f32 %v787, %v1549
    %v1638 = vmul.f32 %v788, %v1549
    %v1639 = vmul.f32 %v789, %v1554
    %v1640 = vmul.f32 %v790, %v1554
    %v1641 = vmul.f32 %v791, %v1554
    %v1642 = vmul.f32 %v792, %v1554
    %v1643 = vmul.f32 %v793, %v1559
    %v1644 = vmul.f32 %v794, %v1559
    %v1645 = vmul.f32 %v795, %v1559
    %v1646 = vmul.f32 %v796, %v1559
    %v1647 = vmul.f32 %v797, %v1564
    %v1648 = vmul.f32 %v798, %v1564
    %v1649 = vmul.f32 %v799, %v1564
    %v1650 = vmul.f32 %v800, %v1564
    %v1651 = vmul.f32 %v801, %v1569
    %v1652 = vmul.f32 %v802, %v1569
    %v1653 = vmul.f32 %v803, %v1569
    %v1654 = vmul.f32 %v804, %v1569
    %v1655 = vmul.f32 %v805, %v1574
    %v1656 = vmul.f32 %v806, %v1574
    %v1657 = vmul.f32 %v807, %v1574
    %v1658 = vmul.f32 %v808, %v1574
    %v1659 = vmul.f32 %v809, %v1579
    %v1660 = vmul.f32 %v810, %v1579
    %v1661 = vmul.f32 %v811, %v1579
    %v1662 = vmul.f32 %v812, %v1579
    %v1663 = vmul.f32 %v813, %v1584
    %v1664 = vmul.f32 %v814, %v1584
    %v1665 = vmul.f32 %v815, %v1584
    %v1666 = vmul.f32 %v816, %v1584
    %v1667 = vmul.f32 %v817, %v1589
    %v1668 = vmul.f32 %v818, %v1589
    %v1669 = vmul.f32 %v819, %v1589
    %v1670 = vmul.f32 %v820, %v1589
    %v1671 = vmul.f32 %v821, %v1594
    %v1672 = vmul.f32 %v822, %v1594
    %v1673 = vmul.f32 %v823, %v1594
    %v1674 = vmul.f32 %v824, %v1594
    %v1675 = vmul.f32 %v825, %v1599
    %v1676 = vmul.f32 %v826, %v1599
    %v1677 = vmul.f32 %v827, %v1599
    %v1678 = vmul.f32 %v828, %v1599
    %v1679 = vmul.f32 %v829, %v1604
    %v1680 = vmul.f32 %v830, %v1604
    %v1681 = vmul.f32 %v831, %v1604
    %v1682 = vmul.f32 %v832, %v1604
    %v1683 = vmul.f32 %v833, %v1609
    %v1684 = vmul.f32 %v834, %v1609
    %v1685 = vmul.f32 %v835, %v1609
    %v1686 = vmul.f32 %v836, %v1609
    %v1687 = vmul.f32 %v837, %v1614
    %v1688 = vmul.f32 %v838, %v1614
    %v1689 = vmul.f32 %v839, %v1614
    %v1690 = vmul.f32 %v840, %v1614
    %v1691 = vmul.f32 %v841, %v1619
    %v1692 = vmul.f32 %v842, %v1619
    %v1693 = vmul.f32 %v843, %v1619
    %v1694 = vmul.f32 %v844, %v1619
    %v1695 = vmul.f32 %v845, %v1624
    %v1696 = vmul.f32 %v846, %v1624
    %v1697 = vmul.f32 %v847, %v1624
    %v1698 = vmul.f32 %v848, %v1624
    %v1699 = vmul.f32 %v849, %v1629
    %v1700 = vmul.f32 %v850, %v1629
    %v1701 = vmul.f32 %v851, %v1629
    %v1702 = vmul.f32 %v852, %v1629
    %1704 = vset.pattern.permute.xlu0 0
    %1705 = vperm.xlu0 %1704, %v747
    %v1706 = vpop.permute.xlu0 %1705
    %1709 = vset.pattern.permute.xlu0 0
    %1710 = vperm.xlu0 %1709, %v748
    %v1711 = vpop.permute.xlu0 %1710
    %1714 = vset.pattern.permute.xlu0 0
    %1715 = vperm.xlu0 %1714, %v749
    %v1716 = vpop.permute.xlu0 %1715
    %1719 = vset.pattern.permute.xlu0 0
    %1720 = vperm.xlu0 %1719, %v750
    %v1721 = vpop.permute.xlu0 %1720
    %1724 = vset.pattern.permute.xlu0 0
    %1725 = vperm.xlu0 %1724, %v751
    %v1726 = vpop.permute.xlu0 %1725
    %1729 = vset.pattern.permute.xlu0 0
    %1730 = vperm.xlu0 %1729, %v752
    %v1731 = vpop.permute.xlu0 %1730
    %1734 = vset.pattern.permute.xlu0 0
    %1735 = vperm.xlu0 %1734, %v753
    %v1736 = vpop.permute.xlu0 %1735
    %1739 = vset.pattern.permute.xlu0 0
    %1740 = vperm.xlu0 %1739, %v754
    %v1741 = vpop.permute.xlu0 %1740
    %1744 = vset.pattern.permute.xlu0 0
    %1745 = vperm.xlu0 %1744, %v755
    %v1746 = vpop.permute.xlu0 %1745
    %1749 = vset.pattern.permute.xlu0 0
    %1750 = vperm.xlu0 %1749, %v756
    %v1751 = vpop.permute.xlu0 %1750
    %1754 = vset.pattern.permute.xlu0 0
    %1755 = vperm.xlu0 %1754, %v757
    %v1756 = vpop.permute.xlu0 %1755
    %1759 = vset.pattern.permute.xlu0 0
    %1760 = vperm.xlu0 %1759, %v758
    %v1761 = vpop.permute.xlu0 %1760
    %1764 = vset.pattern.permute.xlu0 0
    %1765 = vperm.xlu0 %1764, %v759
    %v1766 = vpop.permute.xlu0 %1765
    %1769 = vset.pattern.permute.xlu0 0
    %1770 = vperm.xlu0 %1769, %v760
    %v1771 = vpop.permute.xlu0 %1770
    %1774 = vset.pattern.permute.xlu0 0
    %1775 = vperm.xlu0 %1774, %v761
    %v1776 = vpop.permute.xlu0 %1775
    %1779 = vset.pattern.permute.xlu0 0
    %1780 = vperm.xlu0 %1779, %v762
    %v1781 = vpop.permute.xlu0 %1780
    %1784 = vset.pattern.permute.xlu0 0
    %1785 = vperm.xlu0 %1784, %v763
    %v1786 = vpop.permute.xlu0 %1785
    %1789 = vset.pattern.permute.xlu0 0
    %1790 = vperm.xlu0 %1789, %v764
    %v1791 = vpop.permute.xlu0 %1790
    %v1793 = vmul.f32 %v1049, %v1706
    %v1794 = vmul.f32 %v1050, %v1706
    %v1795 = vmul.f32 %v1051, %v1706
    %v1796 = vmul.f32 %v1052, %v1706
    %v1797 = vmul.f32 %v1053, %v1711
    %v1798 = vmul.f32 %v1054, %v1711
    %v1799 = vmul.f32 %v1055, %v1711
    %v1800 = vmul.f32 %v1056, %v1711
    %v1801 = vmul.f32 %v1057, %v1716
    %v1802 = vmul.f32 %v1058, %v1716
    %v1803 = vmul.f32 %v1059, %v1716
    %v1804 = vmul.f32 %v1060, %v1716
    %v1805 = vmul.f32 %v1061, %v1721
    %v1806 = vmul.f32 %v1062, %v1721
    %v1807 = vmul.f32 %v1063, %v1721
    %v1808 = vmul.f32 %v1064, %v1721
    %v1809 = vmul.f32 %v1065, %v1726
    %v1810 = vmul.f32 %v1066, %v1726
    %v1811 = vmul.f32 %v1067, %v1726
    %v1812 = vmul.f32 %v1068, %v1726
    %v1813 = vmul.f32 %v1069, %v1731
    %v1814 = vmul.f32 %v1070, %v1731
    %v1815 = vmul.f32 %v1071, %v1731
    %v1816 = vmul.f32 %v1072, %v1731
    %v1817 = vmul.f32 %v1073, %v1736
    %v1818 = vmul.f32 %v1074, %v1736
    %v1819 = vmul.f32 %v1075, %v1736
    %v1820 = vmul.f32 %v1076, %v1736
    %v1821 = vmul.f32 %v1077, %v1741
    %v1822 = vmul.f32 %v1078, %v1741
    %v1823 = vmul.f32 %v1079, %v1741
    %v1824 = vmul.f32 %v1080, %v1741
    %v1825 = vmul.f32 %v1081, %v1746
    %v1826 = vmul.f32 %v1082, %v1746
    %v1827 = vmul.f32 %v1083, %v1746
    %v1828 = vmul.f32 %v1084, %v1746
    %v1829 = vmul.f32 %v1085, %v1751
    %v1830 = vmul.f32 %v1086, %v1751
    %v1831 = vmul.f32 %v1087, %v1751
    %v1832 = vmul.f32 %v1088, %v1751
    %v1833 = vmul.f32 %v1089, %v1756
    %v1834 = vmul.f32 %v1090, %v1756
    %v1835 = vmul.f32 %v1091, %v1756
    %v1836 = vmul.f32 %v1092, %v1756
    %v1837 = vmul.f32 %v1093, %v1761
    %v1838 = vmul.f32 %v1094, %v1761
    %v1839 = vmul.f32 %v1095, %v1761
    %v1840 = vmul.f32 %v1096, %v1761
    %v1841 = vmul.f32 %v1097, %v1766
    %v1842 = vmul.f32 %v1098, %v1766
    %v1843 = vmul.f32 %v1099, %v1766
    %v1844 = vmul.f32 %v1100, %v1766
    %v1845 = vmul.f32 %v1101, %v1771
    %v1846 = vmul.f32 %v1102, %v1771
    %v1847 = vmul.f32 %v1103, %v1771
    %v1848 = vmul.f32 %v1104, %v1771
    %v1849 = vmul.f32 %v1105, %v1776
    %v1850 = vmul.f32 %v1106, %v1776
    %v1851 = vmul.f32 %v1107, %v1776
    %v1852 = vmul.f32 %v1108, %v1776
    %v1853 = vmul.f32 %v1109, %v1781
    %v1854 = vmul.f32 %v1110, %v1781
    %v1855 = vmul.f32 %v1111, %v1781
    %v1856 = vmul.f32 %v1112, %v1781
    %v1857 = vmul.f32 %v1113, %v1786
    %v1858 = vmul.f32 %v1114, %v1786
    %v1859 = vmul.f32 %v1115, %v1786
    %v1860 = vmul.f32 %v1116, %v1786
    %v1861 = vmul.f32 %v1117, %v1791
    %v1862 = vmul.f32 %v1118, %v1791
    %v1863 = vmul.f32 %v1119, %v1791
    %v1864 = vmul.f32 %v1120, %v1791
    %v1865 = vmul.f32 %v1631, %v1461
    %v1866 = vmul.f32 %v1632, %v1462
    %v1867 = vmul.f32 %v1633, %v1463
    %v1868 = vmul.f32 %v1634, %v1464
    %v1869 = vmul.f32 %v1635, %v1465
    %v1870 = vmul.f32 %v1636, %v1466
    %v1871 = vmul.f32 %v1637, %v1467
    %v1872 = vmul.f32 %v1638, %v1468
    %v1873 = vmul.f32 %v1639, %v1469
    %v1874 = vmul.f32 %v1640, %v1470
    %v1875 = vmul.f32 %v1641, %v1471
    %v1876 = vmul.f32 %v1642, %v1472
    %v1877 = vmul.f32 %v1643, %v1473
    %v1878 = vmul.f32 %v1644, %v1474
    %v1879 = vmul.f32 %v1645, %v1475
    %v1880 = vmul.f32 %v1646, %v1476
    %v1881 = vmul.f32 %v1647, %v1477
    %v1882 = vmul.f32 %v1648, %v1478
    %v1883 = vmul.f32 %v1649, %v1479
    %v1884 = vmul.f32 %v1650, %v1480
    %v1885 = vmul.f32 %v1651, %v1481
    %v1886 = vmul.f32 %v1652, %v1482
    %v1887 = vmul.f32 %v1653, %v1483
    %v1888 = vmul.f32 %v1654, %v1484
    %v1889 = vmul.f32 %v1655, %v1485
    %v1890 = vmul.f32 %v1656, %v1486
    %v1891 = vmul.f32 %v1657, %v1487
    %v1892 = vmul.f32 %v1658, %v1488
    %v1893 = vmul.f32 %v1659, %v1489
    %v1894 = vmul.f32 %v1660, %v1490
    %v1895 = vmul.f32 %v1661, %v1491
    %v1896 = vmul.f32 %v1662, %v1492
    %v1897 = vmul.f32 %v1663, %v1493
    %v1898 = vmul.f32 %v1664, %v1494
    %v1899 = vmul.f32 %v1665, %v1495
    %v1900 = vmul.f32 %v1666, %v1496
    %v1901 = vmul.f32 %v1667, %v1497
    %v1902 = vmul.f32 %v1668, %v1498
    %v1903 = vmul.f32 %v1669, %v1499
    %v1904 = vmul.f32 %v1670, %v1500
    %v1905 = vmul.f32 %v1671, %v1501
    %v1906 = vmul.f32 %v1672, %v1502
    %v1907 = vmul.f32 %v1673, %v1503
    %v1908 = vmul.f32 %v1674, %v1504
    %v1909 = vmul.f32 %v1675, %v1505
    %v1910 = vmul.f32 %v1676, %v1506
    %v1911 = vmul.f32 %v1677, %v1507
    %v1912 = vmul.f32 %v1678, %v1508
    %v1913 = vmul.f32 %v1679, %v1509
    %v1914 = vmul.f32 %v1680, %v1510
    %v1915 = vmul.f32 %v1681, %v1511
    %v1916 = vmul.f32 %v1682, %v1512
    %v1917 = vmul.f32 %v1683, %v1513
    %v1918 = vmul.f32 %v1684, %v1514
    %v1919 = vmul.f32 %v1685, %v1515
    %v1920 = vmul.f32 %v1686, %v1516
    %v1921 = vmul.f32 %v1687, %v1517
    %v1922 = vmul.f32 %v1688, %v1518
    %v1923 = vmul.f32 %v1689, %v1519
    %v1924 = vmul.f32 %v1690, %v1520
    %v1925 = vmul.f32 %v1691, %v1521
    %v1926 = vmul.f32 %v1692, %v1522
    %v1927 = vmul.f32 %v1693, %v1523
    %v1928 = vmul.f32 %v1694, %v1524
    %v1929 = vmul.f32 %v1695, %v1525
    %v1930 = vmul.f32 %v1696, %v1526
    %v1931 = vmul.f32 %v1697, %v1527
    %v1932 = vmul.f32 %v1698, %v1528
    %v1933 = vmul.f32 %v1699, %v1529
    %v1934 = vmul.f32 %v1700, %v1530
    %v1935 = vmul.f32 %v1701, %v1531
    %v1936 = vmul.f32 %v1702, %v1532
    %v1937 = vmul.f32 %v1793, %v1469
    %v1938 = vmul.f32 %v1794, %v1470
    %v1939 = vmul.f32 %v1795, %v1471
    %v1940 = vmul.f32 %v1796, %v1472
    %v1941 = vmul.f32 %v1797, %v1473
    %v1942 = vmul.f32 %v1798, %v1474
    %v1943 = vmul.f32 %v1799, %v1475
    %v1944 = vmul.f32 %v1800, %v1476
    %v1945 = vmul.f32 %v1801, %v1477
    %v1946 = vmul.f32 %v1802, %v1478
    %v1947 = vmul.f32 %v1803, %v1479
    %v1948 = vmul.f32 %v1804, %v1480
    %v1949 = vmul.f32 %v1805, %v1481
    %v1950 = vmul.f32 %v1806, %v1482
    %v1951 = vmul.f32 %v1807, %v1483
    %v1952 = vmul.f32 %v1808, %v1484
    %v1953 = vmul.f32 %v1809, %v1485
    %v1954 = vmul.f32 %v1810, %v1486
    %v1955 = vmul.f32 %v1811, %v1487
    %v1956 = vmul.f32 %v1812, %v1488
    %v1957 = vmul.f32 %v1813, %v1489
    %v1958 = vmul.f32 %v1814, %v1490
    %v1959 = vmul.f32 %v1815, %v1491
    %v1960 = vmul.f32 %v1816, %v1492
    %v1961 = vmul.f32 %v1817, %v1493
    %v1962 = vmul.f32 %v1818, %v1494
    %v1963 = vmul.f32 %v1819, %v1495
    %v1964 = vmul.f32 %v1820, %v1496
    %v1965 = vmul.f32 %v1821, %v1497
    %v1966 = vmul.f32 %v1822, %v1498
    %v1967 = vmul.f32 %v1823, %v1499
    %v1968 = vmul.f32 %v1824, %v1500
    %v1969 = vmul.f32 %v1825, %v1501
    %v1970 = vmul.f32 %v1826, %v1502
    %v1971 = vmul.f32 %v1827, %v1503
    %v1972 = vmul.f32 %v1828, %v1504
    %v1973 = vmul.f32 %v1829, %v1505
    %v1974 = vmul.f32 %v1830, %v1506
    %v1975 = vmul.f32 %v1831, %v1507
    %v1976 = vmul.f32 %v1832, %v1508
    %v1977 = vmul.f32 %v1833, %v1509
    %v1978 = vmul.f32 %v1834, %v1510
    %v1979 = vmul.f32 %v1835, %v1511
    %v1980 = vmul.f32 %v1836, %v1512
    %v1981 = vmul.f32 %v1837, %v1513
    %v1982 = vmul.f32 %v1838, %v1514
    %v1983 = vmul.f32 %v1839, %v1515
    %v1984 = vmul.f32 %v1840, %v1516
    %v1985 = vmul.f32 %v1841, %v1517
    %v1986 = vmul.f32 %v1842, %v1518
    %v1987 = vmul.f32 %v1843, %v1519
    %v1988 = vmul.f32 %v1844, %v1520
    %v1989 = vmul.f32 %v1845, %v1521
    %v1990 = vmul.f32 %v1846, %v1522
    %v1991 = vmul.f32 %v1847, %v1523
    %v1992 = vmul.f32 %v1848, %v1524
    %v1993 = vmul.f32 %v1849, %v1525
    %v1994 = vmul.f32 %v1850, %v1526
    %v1995 = vmul.f32 %v1851, %v1527
    %v1996 = vmul.f32 %v1852, %v1528
    %v1997 = vmul.f32 %v1853, %v1529
    %v1998 = vmul.f32 %v1854, %v1530
    %v1999 = vmul.f32 %v1855, %v1531
    %v2000 = vmul.f32 %v1856, %v1532
    %v2001 = vmul.f32 %v1857, %v1533
    %v2002 = vmul.f32 %v1858, %v1534
    %v2003 = vmul.f32 %v1859, %v1535
    %v2004 = vmul.f32 %v1860, %v1536
    %v2005 = vmul.f32 %v1861, %v1537
    %v2006 = vmul.f32 %v1862, %v1538
    %v2007 = vmul.f32 %v1863, %v1539
    %v2008 = vmul.f32 %v1864, %v1540
    %v2009 = vadd.f32 %v1865, %v1937
    %v2010 = vadd.f32 %v1866, %v1938
    %v2011 = vadd.f32 %v1867, %v1939
    %v2012 = vadd.f32 %v1868, %v1940
    %v2013 = vadd.f32 %v1869, %v1941
    %v2014 = vadd.f32 %v1870, %v1942
    %v2015 = vadd.f32 %v1871, %v1943
    %v2016 = vadd.f32 %v1872, %v1944
    %v2017 = vadd.f32 %v1873, %v1945
    %v2018 = vadd.f32 %v1874, %v1946
    %v2019 = vadd.f32 %v1875, %v1947
    %v2020 = vadd.f32 %v1876, %v1948
    %v2021 = vadd.f32 %v1877, %v1949
    %v2022 = vadd.f32 %v1878, %v1950
    %v2023 = vadd.f32 %v1879, %v1951
    %v2024 = vadd.f32 %v1880, %v1952
    %v2025 = vadd.f32 %v1881, %v1953
    %v2026 = vadd.f32 %v1882, %v1954
    %v2027 = vadd.f32 %v1883, %v1955
    %v2028 = vadd.f32 %v1884, %v1956
    %v2029 = vadd.f32 %v1885, %v1957
    %v2030 = vadd.f32 %v1886, %v1958
    %v2031 = vadd.f32 %v1887, %v1959
    %v2032 = vadd.f32 %v1888, %v1960
    %v2033 = vadd.f32 %v1889, %v1961
    %v2034 = vadd.f32 %v1890, %v1962
    %v2035 = vadd.f32 %v1891, %v1963
    %v2036 = vadd.f32 %v1892, %v1964
    %v2037 = vadd.f32 %v1893, %v1965
    %v2038 = vadd.f32 %v1894, %v1966
    %v2039 = vadd.f32 %v1895, %v1967
    %v2040 = vadd.f32 %v1896, %v1968
    %v2041 = vadd.f32 %v1897, %v1969
    %v2042 = vadd.f32 %v1898, %v1970
    %v2043 = vadd.f32 %v1899, %v1971
    %v2044 = vadd.f32 %v1900, %v1972
    %v2045 = vadd.f32 %v1901, %v1973
    %v2046 = vadd.f32 %v1902, %v1974
    %v2047 = vadd.f32 %v1903, %v1975
    %v2048 = vadd.f32 %v1904, %v1976
    %v2049 = vadd.f32 %v1905, %v1977
    %v2050 = vadd.f32 %v1906, %v1978
    %v2051 = vadd.f32 %v1907, %v1979
    %v2052 = vadd.f32 %v1908, %v1980
    %v2053 = vadd.f32 %v1909, %v1981
    %v2054 = vadd.f32 %v1910, %v1982
    %v2055 = vadd.f32 %v1911, %v1983
    %v2056 = vadd.f32 %v1912, %v1984
    %v2057 = vadd.f32 %v1913, %v1985
    %v2058 = vadd.f32 %v1914, %v1986
    %v2059 = vadd.f32 %v1915, %v1987
    %v2060 = vadd.f32 %v1916, %v1988
    %v2061 = vadd.f32 %v1917, %v1989
    %v2062 = vadd.f32 %v1918, %v1990
    %v2063 = vadd.f32 %v1919, %v1991
    %v2064 = vadd.f32 %v1920, %v1992
    %v2065 = vadd.f32 %v1921, %v1993
    %v2066 = vadd.f32 %v1922, %v1994
    %v2067 = vadd.f32 %v1923, %v1995
    %v2068 = vadd.f32 %v1924, %v1996
    %v2069 = vadd.f32 %v1925, %v1997
    %v2070 = vadd.f32 %v1926, %v1998
    %v2071 = vadd.f32 %v1927, %v1999
    %v2072 = vadd.f32 %v1928, %v2000
    %v2073 = vadd.f32 %v1929, %v2001
    %v2074 = vadd.f32 %v1930, %v2002
    %v2075 = vadd.f32 %v1931, %v2003
    %v2076 = vadd.f32 %v1932, %v2004
    %v2077 = vadd.f32 %v1933, %v2005
    %v2078 = vadd.f32 %v1934, %v2006
    %v2079 = vadd.f32 %v1935, %v2007
    %v2080 = vadd.f32 %v1936, %v2008
    %2082 = vset.pattern.permute.xlu0 0
    %2083 = vperm.xlu0 %2082, %v711
    %v2084 = vpop.permute.xlu0 %2083
    %2087 = vset.pattern.permute.xlu0 0
    %2088 = vperm.xlu0 %2087, %v712
    %v2089 = vpop.permute.xlu0 %2088
    %2092 = vset.pattern.permute.xlu0 0
    %2093 = vperm.xlu0 %2092, %v713
    %v2094 = vpop.permute.xlu0 %2093
    %2097 = vset.pattern.permute.xlu0 0
    %2098 = vperm.xlu0 %2097, %v714
    %v2099 = vpop.permute.xlu0 %2098
    %2102 = vset.pattern.permute.xlu0 0
    %2103 = vperm.xlu0 %2102, %v715
    %v2104 = vpop.permute.xlu0 %2103
    %2107 = vset.pattern.permute.xlu0 0
    %2108 = vperm.xlu0 %2107, %v716
    %v2109 = vpop.permute.xlu0 %2108
    %2112 = vset.pattern.permute.xlu0 0
    %2113 = vperm.xlu0 %2112, %v717
    %v2114 = vpop.permute.xlu0 %2113
    %2117 = vset.pattern.permute.xlu0 0
    %2118 = vperm.xlu0 %2117, %v718
    %v2119 = vpop.permute.xlu0 %2118
    %2122 = vset.pattern.permute.xlu0 0
    %2123 = vperm.xlu0 %2122, %v719
    %v2124 = vpop.permute.xlu0 %2123
    %2127 = vset.pattern.permute.xlu0 0
    %2128 = vperm.xlu0 %2127, %v720
    %v2129 = vpop.permute.xlu0 %2128
    %2132 = vset.pattern.permute.xlu0 0
    %2133 = vperm.xlu0 %2132, %v721
    %v2134 = vpop.permute.xlu0 %2133
    %2137 = vset.pattern.permute.xlu0 0
    %2138 = vperm.xlu0 %2137, %v722
    %v2139 = vpop.permute.xlu0 %2138
    %2142 = vset.pattern.permute.xlu0 0
    %2143 = vperm.xlu0 %2142, %v723
    %v2144 = vpop.permute.xlu0 %2143
    %2147 = vset.pattern.permute.xlu0 0
    %2148 = vperm.xlu0 %2147, %v724
    %v2149 = vpop.permute.xlu0 %2148
    %2152 = vset.pattern.permute.xlu0 0
    %2153 = vperm.xlu0 %2152, %v725
    %v2154 = vpop.permute.xlu0 %2153
    %2157 = vset.pattern.permute.xlu0 0
    %2158 = vperm.xlu0 %2157, %v726
    %v2159 = vpop.permute.xlu0 %2158
    %v2161 = vmul.f32 %v781, %v2084
    %v2162 = vmul.f32 %v782, %v2084
    %v2163 = vmul.f32 %v783, %v2084
    %v2164 = vmul.f32 %v784, %v2084
    %v2165 = vmul.f32 %v785, %v2089
    %v2166 = vmul.f32 %v786, %v2089
    %v2167 = vmul.f32 %v787, %v2089
    %v2168 = vmul.f32 %v788, %v2089
    %v2169 = vmul.f32 %v789, %v2094
    %v2170 = vmul.f32 %v790, %v2094
    %v2171 = vmul.f32 %v791, %v2094
    %v2172 = vmul.f32 %v792, %v2094
    %v2173 = vmul.f32 %v793, %v2099
    %v2174 = vmul.f32 %v794, %v2099
    %v2175 = vmul.f32 %v795, %v2099
    %v2176 = vmul.f32 %v796, %v2099
    %v2177 = vmul.f32 %v797, %v2104
    %v2178 = vmul.f32 %v798, %v2104
    %v2179 = vmul.f32 %v799, %v2104
    %v2180 = vmul.f32 %v800, %v2104
    %v2181 = vmul.f32 %v801, %v2109
    %v2182 = vmul.f32 %v802, %v2109
    %v2183 = vmul.f32 %v803, %v2109
    %v2184 = vmul.f32 %v804, %v2109
    %v2185 = vmul.f32 %v805, %v2114
    %v2186 = vmul.f32 %v806, %v2114
    %v2187 = vmul.f32 %v807, %v2114
    %v2188 = vmul.f32 %v808, %v2114
    %v2189 = vmul.f32 %v809, %v2119
    %v2190 = vmul.f32 %v810, %v2119
    %v2191 = vmul.f32 %v811, %v2119
    %v2192 = vmul.f32 %v812, %v2119
    %v2193 = vmul.f32 %v813, %v2124
    %v2194 = vmul.f32 %v814, %v2124
    %v2195 = vmul.f32 %v815, %v2124
    %v2196 = vmul.f32 %v816, %v2124
    %v2197 = vmul.f32 %v817, %v2129
    %v2198 = vmul.f32 %v818, %v2129
    %v2199 = vmul.f32 %v819, %v2129
    %v2200 = vmul.f32 %v820, %v2129
    %v2201 = vmul.f32 %v821, %v2134
    %v2202 = vmul.f32 %v822, %v2134
    %v2203 = vmul.f32 %v823, %v2134
    %v2204 = vmul.f32 %v824, %v2134
    %v2205 = vmul.f32 %v825, %v2139
    %v2206 = vmul.f32 %v826, %v2139
    %v2207 = vmul.f32 %v827, %v2139
    %v2208 = vmul.f32 %v828, %v2139
    %v2209 = vmul.f32 %v829, %v2144
    %v2210 = vmul.f32 %v830, %v2144
    %v2211 = vmul.f32 %v831, %v2144
    %v2212 = vmul.f32 %v832, %v2144
    %v2213 = vmul.f32 %v833, %v2149
    %v2214 = vmul.f32 %v834, %v2149
    %v2215 = vmul.f32 %v835, %v2149
    %v2216 = vmul.f32 %v836, %v2149
    %v2217 = vmul.f32 %v837, %v2154
    %v2218 = vmul.f32 %v838, %v2154
    %v2219 = vmul.f32 %v839, %v2154
    %v2220 = vmul.f32 %v840, %v2154
    %v2221 = vmul.f32 %v841, %v2159
    %v2222 = vmul.f32 %v842, %v2159
    %v2223 = vmul.f32 %v843, %v2159
    %v2224 = vmul.f32 %v844, %v2159
    %2226 = vset.pattern.permute.xlu0 0
    %2227 = vperm.xlu0 %2226, %v765
    %v2228 = vpop.permute.xlu0 %2227
    %2231 = vset.pattern.permute.xlu0 0
    %2232 = vperm.xlu0 %2231, %v766
    %v2233 = vpop.permute.xlu0 %2232
    %2236 = vset.pattern.permute.xlu0 0
    %2237 = vperm.xlu0 %2236, %v767
    %v2238 = vpop.permute.xlu0 %2237
    %2241 = vset.pattern.permute.xlu0 0
    %2242 = vperm.xlu0 %2241, %v768
    %v2243 = vpop.permute.xlu0 %2242
    %2246 = vset.pattern.permute.xlu0 0
    %2247 = vperm.xlu0 %2246, %v769
    %v2248 = vpop.permute.xlu0 %2247
    %2251 = vset.pattern.permute.xlu0 0
    %2252 = vperm.xlu0 %2251, %v770
    %v2253 = vpop.permute.xlu0 %2252
    %2256 = vset.pattern.permute.xlu0 0
    %2257 = vperm.xlu0 %2256, %v771
    %v2258 = vpop.permute.xlu0 %2257
    %2261 = vset.pattern.permute.xlu0 0
    %2262 = vperm.xlu0 %2261, %v772
    %v2263 = vpop.permute.xlu0 %2262
    %2266 = vset.pattern.permute.xlu0 0
    %2267 = vperm.xlu0 %2266, %v773
    %v2268 = vpop.permute.xlu0 %2267
    %2271 = vset.pattern.permute.xlu0 0
    %2272 = vperm.xlu0 %2271, %v774
    %v2273 = vpop.permute.xlu0 %2272
    %2276 = vset.pattern.permute.xlu0 0
    %2277 = vperm.xlu0 %2276, %v775
    %v2278 = vpop.permute.xlu0 %2277
    %2281 = vset.pattern.permute.xlu0 0
    %2282 = vperm.xlu0 %2281, %v776
    %v2283 = vpop.permute.xlu0 %2282
    %2286 = vset.pattern.permute.xlu0 0
    %2287 = vperm.xlu0 %2286, %v777
    %v2288 = vpop.permute.xlu0 %2287
    %2291 = vset.pattern.permute.xlu0 0
    %2292 = vperm.xlu0 %2291, %v778
    %v2293 = vpop.permute.xlu0 %2292
    %2296 = vset.pattern.permute.xlu0 0
    %2297 = vperm.xlu0 %2296, %v779
    %v2298 = vpop.permute.xlu0 %2297
    %2301 = vset.pattern.permute.xlu0 0
    %2302 = vperm.xlu0 %2301, %v780
    %v2303 = vpop.permute.xlu0 %2302
    %v2305 = vmul.f32 %v1057, %v2228
    %v2306 = vmul.f32 %v1058, %v2228
    %v2307 = vmul.f32 %v1059, %v2228
    %v2308 = vmul.f32 %v1060, %v2228
    %v2309 = vmul.f32 %v1061, %v2233
    %v2310 = vmul.f32 %v1062, %v2233
    %v2311 = vmul.f32 %v1063, %v2233
    %v2312 = vmul.f32 %v1064, %v2233
    %v2313 = vmul.f32 %v1065, %v2238
    %v2314 = vmul.f32 %v1066, %v2238
    %v2315 = vmul.f32 %v1067, %v2238
    %v2316 = vmul.f32 %v1068, %v2238
    %v2317 = vmul.f32 %v1069, %v2243
    %v2318 = vmul.f32 %v1070, %v2243
    %v2319 = vmul.f32 %v1071, %v2243
    %v2320 = vmul.f32 %v1072, %v2243
    %v2321 = vmul.f32 %v1073, %v2248
    %v2322 = vmul.f32 %v1074, %v2248
    %v2323 = vmul.f32 %v1075, %v2248
    %v2324 = vmul.f32 %v1076, %v2248
    %v2325 = vmul.f32 %v1077, %v2253
    %v2326 = vmul.f32 %v1078, %v2253
    %v2327 = vmul.f32 %v1079, %v2253
    %v2328 = vmul.f32 %v1080, %v2253
    %v2329 = vmul.f32 %v1081, %v2258
    %v2330 = vmul.f32 %v1082, %v2258
    %v2331 = vmul.f32 %v1083, %v2258
    %v2332 = vmul.f32 %v1084, %v2258
    %v2333 = vmul.f32 %v1085, %v2263
    %v2334 = vmul.f32 %v1086, %v2263
    %v2335 = vmul.f32 %v1087, %v2263
    %v2336 = vmul.f32 %v1088, %v2263
    %v2337 = vmul.f32 %v1089, %v2268
    %v2338 = vmul.f32 %v1090, %v2268
    %v2339 = vmul.f32 %v1091, %v2268
    %v2340 = vmul.f32 %v1092, %v2268
    %v2341 = vmul.f32 %v1093, %v2273
    %v2342 = vmul.f32 %v1094, %v2273
    %v2343 = vmul.f32 %v1095, %v2273
    %v2344 = vmul.f32 %v1096, %v2273
    %v2345 = vmul.f32 %v1097, %v2278
    %v2346 = vmul.f32 %v1098, %v2278
    %v2347 = vmul.f32 %v1099, %v2278
    %v2348 = vmul.f32 %v1100, %v2278
    %v2349 = vmul.f32 %v1101, %v2283
    %v2350 = vmul.f32 %v1102, %v2283
    %v2351 = vmul.f32 %v1103, %v2283
    %v2352 = vmul.f32 %v1104, %v2283
    %v2353 = vmul.f32 %v1105, %v2288
    %v2354 = vmul.f32 %v1106, %v2288
    %v2355 = vmul.f32 %v1107, %v2288
    %v2356 = vmul.f32 %v1108, %v2288
    %v2357 = vmul.f32 %v1109, %v2293
    %v2358 = vmul.f32 %v1110, %v2293
    %v2359 = vmul.f32 %v1111, %v2293
    %v2360 = vmul.f32 %v1112, %v2293
    %v2361 = vmul.f32 %v1113, %v2298
    %v2362 = vmul.f32 %v1114, %v2298
    %v2363 = vmul.f32 %v1115, %v2298
    %v2364 = vmul.f32 %v1116, %v2298
    %v2365 = vmul.f32 %v1117, %v2303
    %v2366 = vmul.f32 %v1118, %v2303
    %v2367 = vmul.f32 %v1119, %v2303
    %v2368 = vmul.f32 %v1120, %v2303
    %v2369 = vmul.f32 %v2161, %v2009
    %v2370 = vmul.f32 %v2162, %v2010
    %v2371 = vmul.f32 %v2163, %v2011
    %v2372 = vmul.f32 %v2164, %v2012
    %v2373 = vmul.f32 %v2165, %v2013
    %v2374 = vmul.f32 %v2166, %v2014
    %v2375 = vmul.f32 %v2167, %v2015
    %v2376 = vmul.f32 %v2168, %v2016
    %v2377 = vmul.f32 %v2169, %v2017
    %v2378 = vmul.f32 %v2170, %v2018
    %v2379 = vmul.f32 %v2171, %v2019
    %v2380 = vmul.f32 %v2172, %v2020
    %v2381 = vmul.f32 %v2173, %v2021
    %v2382 = vmul.f32 %v2174, %v2022
    %v2383 = vmul.f32 %v2175, %v2023
    %v2384 = vmul.f32 %v2176, %v2024
    %v2385 = vmul.f32 %v2177, %v2025
    %v2386 = vmul.f32 %v2178, %v2026
    %v2387 = vmul.f32 %v2179, %v2027
    %v2388 = vmul.f32 %v2180, %v2028
    %v2389 = vmul.f32 %v2181, %v2029
    %v2390 = vmul.f32 %v2182, %v2030
    %v2391 = vmul.f32 %v2183, %v2031
    %v2392 = vmul.f32 %v2184, %v2032
    %v2393 = vmul.f32 %v2185, %v2033
    %v2394 = vmul.f32 %v2186, %v2034
    %v2395 = vmul.f32 %v2187, %v2035
    %v2396 = vmul.f32 %v2188, %v2036
    %v2397 = vmul.f32 %v2189, %v2037
    %v2398 = vmul.f32 %v2190, %v2038
    %v2399 = vmul.f32 %v2191, %v2039
    %v2400 = vmul.f32 %v2192, %v2040
    %v2401 = vmul.f32 %v2193, %v2041
    %v2402 = vmul.f32 %v2194, %v2042
    %v2403 = vmul.f32 %v2195, %v2043
    %v2404 = vmul.f32 %v2196, %v2044
    %v2405 = vmul.f32 %v2197, %v2045
    %v2406 = vmul.f32 %v2198, %v2046
    %v2407 = vmul.f32 %v2199, %v2047
    %v2408 = vmul.f32 %v2200, %v2048
    %v2409 = vmul.f32 %v2201, %v2049
    %v2410 = vmul.f32 %v2202, %v2050
    %v2411 = vmul.f32 %v2203, %v2051
    %v2412 = vmul.f32 %v2204, %v2052
    %v2413 = vmul.f32 %v2205, %v2053
    %v2414 = vmul.f32 %v2206, %v2054
    %v2415 = vmul.f32 %v2207, %v2055
    %v2416 = vmul.f32 %v2208, %v2056
    %v2417 = vmul.f32 %v2209, %v2057
    %v2418 = vmul.f32 %v2210, %v2058
    %v2419 = vmul.f32 %v2211, %v2059
    %v2420 = vmul.f32 %v2212, %v2060
    %v2421 = vmul.f32 %v2213, %v2061
    %v2422 = vmul.f32 %v2214, %v2062
    %v2423 = vmul.f32 %v2215, %v2063
    %v2424 = vmul.f32 %v2216, %v2064
    %v2425 = vmul.f32 %v2217, %v2065
    %v2426 = vmul.f32 %v2218, %v2066
    %v2427 = vmul.f32 %v2219, %v2067
    %v2428 = vmul.f32 %v2220, %v2068
    %v2429 = vmul.f32 %v2221, %v2069
    %v2430 = vmul.f32 %v2222, %v2070
    %v2431 = vmul.f32 %v2223, %v2071
    %v2432 = vmul.f32 %v2224, %v2072
    %v2433 = vmul.f32 %v2305, %v2017
    %v2434 = vmul.f32 %v2306, %v2018
    %v2435 = vmul.f32 %v2307, %v2019
    %v2436 = vmul.f32 %v2308, %v2020
    %v2437 = vmul.f32 %v2309, %v2021
    %v2438 = vmul.f32 %v2310, %v2022
    %v2439 = vmul.f32 %v2311, %v2023
    %v2440 = vmul.f32 %v2312, %v2024
    %v2441 = vmul.f32 %v2313, %v2025
    %v2442 = vmul.f32 %v2314, %v2026
    %v2443 = vmul.f32 %v2315, %v2027
    %v2444 = vmul.f32 %v2316, %v2028
    %v2445 = vmul.f32 %v2317, %v2029
    %v2446 = vmul.f32 %v2318, %v2030
    %v2447 = vmul.f32 %v2319, %v2031
    %v2448 = vmul.f32 %v2320, %v2032
    %v2449 = vmul.f32 %v2321, %v2033
    %v2450 = vmul.f32 %v2322, %v2034
    %v2451 = vmul.f32 %v2323, %v2035
    %v2452 = vmul.f32 %v2324, %v2036
    %v2453 = vmul.f32 %v2325, %v2037
    %v2454 = vmul.f32 %v2326, %v2038
    %v2455 = vmul.f32 %v2327, %v2039
    %v2456 = vmul.f32 %v2328, %v2040
    %v2457 = vmul.f32 %v2329, %v2041
    %v2458 = vmul.f32 %v2330, %v2042
    %v2459 = vmul.f32 %v2331, %v2043
    %v2460 = vmul.f32 %v2332, %v2044
    %v2461 = vmul.f32 %v2333, %v2045
    %v2462 = vmul.f32 %v2334, %v2046
    %v2463 = vmul.f32 %v2335, %v2047
    %v2464 = vmul.f32 %v2336, %v2048
    %v2465 = vmul.f32 %v2337, %v2049
    %v2466 = vmul.f32 %v2338, %v2050
    %v2467 = vmul.f32 %v2339, %v2051
    %v2468 = vmul.f32 %v2340, %v2052
    %v2469 = vmul.f32 %v2341, %v2053
    %v2470 = vmul.f32 %v2342, %v2054
    %v2471 = vmul.f32 %v2343, %v2055
    %v2472 = vmul.f32 %v2344, %v2056
    %v2473 = vmul.f32 %v2345, %v2057
    %v2474 = vmul.f32 %v2346, %v2058
    %v2475 = vmul.f32 %v2347, %v2059
    %v2476 = vmul.f32 %v2348, %v2060
    %v2477 = vmul.f32 %v2349, %v2061
    %v2478 = vmul.f32 %v2350, %v2062
    %v2479 = vmul.f32 %v2351, %v2063
    %v2480 = vmul.f32 %v2352, %v2064
    %v2481 = vmul.f32 %v2353, %v2065
    %v2482 = vmul.f32 %v2354, %v2066
    %v2483 = vmul.f32 %v2355, %v2067
    %v2484 = vmul.f32 %v2356, %v2068
    %v2485 = vmul.f32 %v2357, %v2069
    %v2486 = vmul.f32 %v2358, %v2070
    %v2487 = vmul.f32 %v2359, %v2071
    %v2488 = vmul.f32 %v2360, %v2072
    %v2489 = vmul.f32 %v2361, %v2073
    %v2490 = vmul.f32 %v2362, %v2074
    %v2491 = vmul.f32 %v2363, %v2075
    %v2492 = vmul.f32 %v2364, %v2076
    %v2493 = vmul.f32 %v2365, %v2077
    %v2494 = vmul.f32 %v2366, %v2078
    %v2495 = vmul.f32 %v2367, %v2079
    %v2496 = vmul.f32 %v2368, %v2080
    %v2497 = vadd.f32 %v2369, %v2433
    %v2498 = vadd.f32 %v2370, %v2434
    %v2499 = vadd.f32 %v2371, %v2435
    %v2500 = vadd.f32 %v2372, %v2436
    %v2501 = vadd.f32 %v2373, %v2437
    %v2502 = vadd.f32 %v2374, %v2438
    %v2503 = vadd.f32 %v2375, %v2439
    %v2504 = vadd.f32 %v2376, %v2440
    %v2505 = vadd.f32 %v2377, %v2441
    %v2506 = vadd.f32 %v2378, %v2442
    %v2507 = vadd.f32 %v2379, %v2443
    %v2508 = vadd.f32 %v2380, %v2444
    %v2509 = vadd.f32 %v2381, %v2445
    %v2510 = vadd.f32 %v2382, %v2446
    %v2511 = vadd.f32 %v2383, %v2447
    %v2512 = vadd.f32 %v2384, %v2448
    %v2513 = vadd.f32 %v2385, %v2449
    %v2514 = vadd.f32 %v2386, %v2450
    %v2515 = vadd.f32 %v2387, %v2451
    %v2516 = vadd.f32 %v2388, %v2452
    %v2517 = vadd.f32 %v2389, %v2453
    %v2518 = vadd.f32 %v2390, %v2454
    %v2519 = vadd.f32 %v2391, %v2455
    %v2520 = vadd.f32 %v2392, %v2456
    %v2521 = vadd.f32 %v2393, %v2457
    %v2522 = vadd.f32 %v2394, %v2458
    %v2523 = vadd.f32 %v2395, %v2459
    %v2524 = vadd.f32 %v2396, %v2460
    %v2525 = vadd.f32 %v2397, %v2461
    %v2526 = vadd.f32 %v2398, %v2462
    %v2527 = vadd.f32 %v2399, %v2463
    %v2528 = vadd.f32 %v2400, %v2464
    %v2529 = vadd.f32 %v2401, %v2465
    %v2530 = vadd.f32 %v2402, %v2466
    %v2531 = vadd.f32 %v2403, %v2467
    %v2532 = vadd.f32 %v2404, %v2468
    %v2533 = vadd.f32 %v2405, %v2469
    %v2534 = vadd.f32 %v2406, %v2470
    %v2535 = vadd.f32 %v2407, %v2471
    %v2536 = vadd.f32 %v2408, %v2472
    %v2537 = vadd.f32 %v2409, %v2473
    %v2538 = vadd.f32 %v2410, %v2474
    %v2539 = vadd.f32 %v2411, %v2475
    %v2540 = vadd.f32 %v2412, %v2476
    %v2541 = vadd.f32 %v2413, %v2477
    %v2542 = vadd.f32 %v2414, %v2478
    %v2543 = vadd.f32 %v2415, %v2479
    %v2544 = vadd.f32 %v2416, %v2480
    %v2545 = vadd.f32 %v2417, %v2481
    %v2546 = vadd.f32 %v2418, %v2482
    %v2547 = vadd.f32 %v2419, %v2483
    %v2548 = vadd.f32 %v2420, %v2484
    %v2549 = vadd.f32 %v2421, %v2485
    %v2550 = vadd.f32 %v2422, %v2486
    %v2551 = vadd.f32 %v2423, %v2487
    %v2552 = vadd.f32 %v2424, %v2488
    %v2553 = vadd.f32 %v2425, %v2489
    %v2554 = vadd.f32 %v2426, %v2490
    %v2555 = vadd.f32 %v2427, %v2491
    %v2556 = vadd.f32 %v2428, %v2492
    %v2557 = vadd.f32 %v2429, %v2493
    %v2558 = vadd.f32 %v2430, %v2494
    %v2559 = vadd.f32 %v2431, %v2495
    %v2560 = vadd.f32 %v2432, %v2496
    %v2561 = vld [vmem:[%s8] sm:$0xff]
    %v2562 = vld [vmem:[%s8 + $0x8] sm:$0xff]
    %v2563 = vld [vmem:[%s8 + $0x10] sm:$0xff]
    %v2564 = vld [vmem:[%s8 + $0x18] sm:$0xff]
    %v2565 = vld [vmem:[%s8 + $0x20] sm:$0xff]
    %v2566 = vld [vmem:[%s8 + $0x28] sm:$0xff]
    %v2567 = vld [vmem:[%s8 + $0x30] sm:$0xff]
    %v2568 = vld [vmem:[%s8 + $0x38] sm:$0xff]
    %vm2569 = vcmask 130048
    %v2571 = vsel %vm2569, %v2562, 0
    %v2574 = vsel %vm2569, %v2564, 0
    %v2577 = vsel %vm2569, %v2566, 0
    %v2580 = vsel %vm2569, %v2568, 0
    %v2582 = vand.u32 %v2558, 4294901760
    %2583 = vmatprep.subr.mxu0 %v2582
    %v2584 = vand.u32 %v2557, 4294901760
    %2585 = vmatpush1.msra.mxu0 %v2584
    %v2586 = vand.u32 %v2554, 4294901760
    %2587 = vmatprep.subr.mxu0 %v2586
    %v2588 = vand.u32 %v2553, 4294901760
    %2589 = vmatpush1.msra.mxu0 %v2588
    %v2590 = vand.u32 %v2550, 4294901760
    %2591 = vmatprep.subr.mxu0 %v2590
    %v2592 = vand.u32 %v2549, 4294901760
    %2593 = vmatpush1.msra.mxu0 %v2592
    %v2594 = vand.u32 %v2546, 4294901760
    %2595 = vmatprep.subr.mxu0 %v2594
    %v2596 = vand.u32 %v2545, 4294901760
    %2597 = vmatpush1.msra.mxu0 %v2596
    %v2598 = vand.u32 %v2542, 4294901760
    %2599 = vmatprep.subr.mxu0 %v2598
    %v2600 = vand.u32 %v2541, 4294901760
    %2601 = vmatpush1.msra.mxu0 %v2600
    %v2602 = vand.u32 %v2538, 4294901760
    %2603 = vmatprep.subr.mxu0 %v2602
    %v2604 = vand.u32 %v2537, 4294901760
    %2605 = vmatpush1.msra.mxu0 %v2604
    %v2606 = vand.u32 %v2534, 4294901760
    %2607 = vmatprep.subr.mxu0 %v2606
    %v2608 = vand.u32 %v2533, 4294901760
    %2609 = vmatpush1.msra.mxu0 %v2608
    %v2610 = vand.u32 %v2530, 4294901760
    %2611 = vmatprep.subr.mxu0 %v2610
    %v2612 = vand.u32 %v2529, 4294901760
    %2613 = vmatpush1.msra.mxu0 %v2612
    %v2614 = vand.u32 %v2526, 4294901760
    %2615 = vmatprep.subr.mxu0 %v2614
    %v2616 = vand.u32 %v2525, 4294901760
    %2617 = vmatpush1.msra.mxu0 %v2616
    %v2618 = vand.u32 %v2522, 4294901760
    %2619 = vmatprep.subr.mxu0 %v2618
    %v2620 = vand.u32 %v2521, 4294901760
    %2621 = vmatpush1.msra.mxu0 %v2620
    %v2622 = vand.u32 %v2518, 4294901760
    %2623 = vmatprep.subr.mxu0 %v2622
    %v2624 = vand.u32 %v2517, 4294901760
    %2625 = vmatpush1.msra.mxu0 %v2624
    %v2626 = vand.u32 %v2514, 4294901760
    %2627 = vmatprep.subr.mxu0 %v2626
    %v2628 = vand.u32 %v2513, 4294901760
    %2629 = vmatpush1.msra.mxu0 %v2628
    %v2630 = vand.u32 %v2510, 4294901760
    %2631 = vmatprep.subr.mxu0 %v2630
    %v2632 = vand.u32 %v2509, 4294901760
    %2633 = vmatpush1.msra.mxu0 %v2632
    %v2634 = vand.u32 %v2506, 4294901760
    %2635 = vmatprep.subr.mxu0 %v2634
    %v2636 = vand.u32 %v2505, 4294901760
    %2637 = vmatpush1.msra.mxu0 %v2636
    %v2638 = vand.u32 %v2502, 4294901760
    %2639 = vmatprep.subr.mxu0 %v2638
    %v2640 = vand.u32 %v2501, 4294901760
    %2641 = vmatpush1.msra.mxu0 %v2640
    %v2642 = vand.u32 %v2498, 4294901760
    %2643 = vmatprep.subr.mxu0 %v2642
    %v2644 = vand.u32 %v2497, 4294901760
    %2645 = vmatpush1.msra.mxu0 %v2644
    %2646 = vmatprep.subr.mxu0 0.0
    %2647 = vmatpush2.msra.mxu0 0.0
    %2648 = vmatprep.subr.mxu0 0.0
    %2649 = vmatpush2.msra.mxu0 0.0
    %2650 = vmatprep.subr.mxu0 0.0
    %2651 = vmatpush2.msra.mxu0 0.0
    %2652 = vmatprep.subr.mxu0 0.0
    %2653 = vmatpush2.msra.mxu0 0.0
    %2654 = vmatprep.subr.mxu0 0.0
    %2655 = vmatpush2.msra.mxu0 0.0
    %2656 = vmatprep.subr.mxu0 0.0
    %2657 = vmatpush2.msra.mxu0 0.0
    %2658 = vmatprep.subr.mxu0 0.0
    %2659 = vmatpush2.msra.mxu0 0.0
    %2660 = vmatprep.subr.mxu0 0.0
    %2661 = vmatpush2.msra.mxu0 0.0
    %2662 = vmatprep.subr.mxu0 0.0
    %2663 = vmatpush2.msra.mxu0 0.0
    %2664 = vmatprep.subr.mxu0 0.0
    %2665 = vmatpush2.msra.mxu0 0.0
    %2666 = vmatprep.subr.mxu0 0.0
    %2667 = vmatpush2.msra.mxu0 0.0
    %2668 = vmatprep.subr.mxu0 0.0
    %2669 = vmatpush2.msra.mxu0 0.0
    %2670 = vmatprep.subr.mxu0 0.0
    %2671 = vmatpush2.msra.mxu0 0.0
    %2672 = vmatprep.subr.mxu0 0.0
    %2673 = vmatpush2.msra.mxu0 0.0
    %v2674 = vand.u32 %v108, 4294901760
    %2675 = vmatprep.subr.mxu0 %v2674
    %v2676 = vand.u32 %v106, 4294901760
    %2677 = vmatpush2.msra.mxu0 %v2676
    %v2678 = vand.u32 %v100, 4294901760
    %2679 = vmatprep.subr.mxu0 %v2678
    %v2680 = vand.u32 %v98, 4294901760
    %2681 = vmatpush2.msra.mxu0 %v2680
    %v2682 = vand.u32 %v2571, 4294901760
    %v2683 = vsub.f32 %v2571, %v2682
    %v2684 = vand.u32 %v2683, 4294901760
    %v2685 = vsub.f32 %v2683, %v2684
    %v2686 = vand.u32 %v2685, 4294901760
    %2687 = vmatprep.mubr.f32.mxu0 %v2686
    %v2688 = vand.u32 %v2561, 4294901760
    %v2689 = vsub.f32 %v2561, %v2688
    %v2690 = vand.u32 %v2689, 4294901760
    %v2691 = vsub.f32 %v2689, %v2690
    %v2692 = vand.u32 %v2691, 4294901760
    %2693 = vmatmul.mubr.f32.gmra.mxu0 %v2692
    %v2694 = vpop.f32.mrf.mxu0
    %v2695 = vadd.f32 0.0, %v2694
    %v2696 = vpop.f32.mrf.mxu0
    %v2697 = vadd.f32 0.0, %v2696
    %v2698 = vand.u32 %v2574, 4294901760
    %v2699 = vsub.f32 %v2574, %v2698
    %v2700 = vand.u32 %v2699, 4294901760
    %v2701 = vsub.f32 %v2699, %v2700
    %v2702 = vand.u32 %v2701, 4294901760
    %2703 = vmatprep.mubr.f32.mxu0 %v2702
    %v2704 = vand.u32 %v2563, 4294901760
    %v2705 = vsub.f32 %v2563, %v2704
    %v2706 = vand.u32 %v2705, 4294901760
    %v2707 = vsub.f32 %v2705, %v2706
    %v2708 = vand.u32 %v2707, 4294901760
    %2709 = vmatmul.mubr.f32.gmra.mxu0 %v2708
    %v2710 = vpop.f32.mrf.mxu0
    %v2711 = vadd.f32 0.0, %v2710
    %v2712 = vpop.f32.mrf.mxu0
    %v2713 = vadd.f32 0.0, %v2712
    %v2714 = vand.u32 %v2577, 4294901760
    %v2715 = vsub.f32 %v2577, %v2714
    %v2716 = vand.u32 %v2715, 4294901760
    %v2717 = vsub.f32 %v2715, %v2716
    %v2718 = vand.u32 %v2717, 4294901760
    %2719 = vmatprep.mubr.f32.mxu0 %v2718
    %v2720 = vand.u32 %v2565, 4294901760
    %v2721 = vsub.f32 %v2565, %v2720
    %v2722 = vand.u32 %v2721, 4294901760
    %v2723 = vsub.f32 %v2721, %v2722
    %v2724 = vand.u32 %v2723, 4294901760
    %2725 = vmatmul.mubr.f32.gmra.mxu0 %v2724
    %v2726 = vpop.f32.mrf.mxu0
    %v2727 = vadd.f32 0.0, %v2726
    %v2728 = vpop.f32.mrf.mxu0
    %v2729 = vadd.f32 0.0, %v2728
    %v2730 = vand.u32 %v2580, 4294901760
    %v2731 = vsub.f32 %v2580, %v2730
    %v2732 = vand.u32 %v2731, 4294901760
    %v2733 = vsub.f32 %v2731, %v2732
    %v2734 = vand.u32 %v2733, 4294901760
    %2735 = vmatprep.mubr.f32.mxu0 %v2734
    %v2736 = vand.u32 %v2567, 4294901760
    %v2737 = vsub.f32 %v2567, %v2736
    %v2738 = vand.u32 %v2737, 4294901760
    %v2739 = vsub.f32 %v2737, %v2738
    %v2740 = vand.u32 %v2739, 4294901760
    %2741 = vmatmul.mubr.f32.gmra.mxu0 %v2740
    %v2742 = vpop.f32.mrf.mxu0
    %v2743 = vadd.f32 0.0, %v2742
    %v2744 = vpop.f32.mrf.mxu0
    %v2745 = vadd.f32 0.0, %v2744
    %2746 = vdwg.mxu0
    %v2747 = vand.u32 %v2558, 4294901760
    %v2748 = vsub.f32 %v2558, %v2747
    %v2749 = vand.u32 %v2748, 4294901760
    %v2750 = vsub.f32 %v2748, %v2749
    %v2751 = vand.u32 %v2750, 4294901760
    %2752 = vmatprep.subr.mxu0 %v2751
    %v2753 = vand.u32 %v2557, 4294901760
    %v2754 = vsub.f32 %v2557, %v2753
    %v2755 = vand.u32 %v2754, 4294901760
    %v2756 = vsub.f32 %v2754, %v2755
    %v2757 = vand.u32 %v2756, 4294901760
    %2758 = vmatpush1.msra.mxu0 %v2757
    %v2759 = vand.u32 %v2554, 4294901760
    %v2760 = vsub.f32 %v2554, %v2759
    %v2761 = vand.u32 %v2760, 4294901760
    %v2762 = vsub.f32 %v2760, %v2761
    %v2763 = vand.u32 %v2762, 4294901760
    %2764 = vmatprep.subr.mxu0 %v2763
    %v2765 = vand.u32 %v2553, 4294901760
    %v2766 = vsub.f32 %v2553, %v2765
    %v2767 = vand.u32 %v2766, 4294901760
    %v2768 = vsub.f32 %v2766, %v2767
    %v2769 = vand.u32 %v2768, 4294901760
    %2770 = vmatpush1.msra.mxu0 %v2769
    %v2771 = vand.u32 %v2550, 4294901760
    %v2772 = vsub.f32 %v2550, %v2771
    %v2773 = vand.u32 %v2772, 4294901760
    %v2774 = vsub.f32 %v2772, %v2773
    %v2775 = vand.u32 %v2774, 4294901760
    %2776 = vmatprep.subr.mxu0 %v2775
    %v2777 = vand.u32 %v2549, 4294901760
    %v2778 = vsub.f32 %v2549, %v2777
    %v2779 = vand.u32 %v2778, 4294901760
    %v2780 = vsub.f32 %v2778, %v2779
    %v2781 = vand.u32 %v2780, 4294901760
    %2782 = vmatpush1.msra.mxu0 %v2781
    %v2783 = vand.u32 %v2546, 4294901760
    %v2784 = vsub.f32 %v2546, %v2783
    %v2785 = vand.u32 %v2784, 4294901760
    %v2786 = vsub.f32 %v2784, %v2785
    %v2787 = vand.u32 %v2786, 4294901760
    %2788 = vmatprep.subr.mxu0 %v2787
    %v2789 = vand.u32 %v2545, 4294901760
    %v2790 = vsub.f32 %v2545, %v2789
    %v2791 = vand.u32 %v2790, 4294901760
    %v2792 = vsub.f32 %v2790, %v2791
    %v2793 = vand.u32 %v2792, 4294901760
    %2794 = vmatpush1.msra.mxu0 %v2793
    %v2795 = vand.u32 %v2542, 4294901760
    %v2796 = vsub.f32 %v2542, %v2795
    %v2797 = vand.u32 %v2796, 4294901760
    %v2798 = vsub.f32 %v2796, %v2797
    %v2799 = vand.u32 %v2798, 4294901760
    %2800 = vmatprep.subr.mxu0 %v2799
    %v2801 = vand.u32 %v2541, 4294901760
    %v2802 = vsub.f32 %v2541, %v2801
    %v2803 = vand.u32 %v2802, 4294901760
    %v2804 = vsub.f32 %v2802, %v2803
    %v2805 = vand.u32 %v2804, 4294901760
    %2806 = vmatpush1.msra.mxu0 %v2805
    %v2807 = vand.u32 %v2538, 4294901760
    %v2808 = vsub.f32 %v2538, %v2807
    %v2809 = vand.u32 %v2808, 4294901760
    %v2810 = vsub.f32 %v2808, %v2809
    %v2811 = vand.u32 %v2810, 4294901760
    %2812 = vmatprep.subr.mxu0 %v2811
    %v2813 = vand.u32 %v2537, 4294901760
    %v2814 = vsub.f32 %v2537, %v2813
    %v2815 = vand.u32 %v2814, 4294901760
    %v2816 = vsub.f32 %v2814, %v2815
    %v2817 = vand.u32 %v2816, 4294901760
    %2818 = vmatpush1.msra.mxu0 %v2817
    %v2819 = vand.u32 %v2534, 4294901760
    %v2820 = vsub.f32 %v2534, %v2819
    %v2821 = vand.u32 %v2820, 4294901760
    %v2822 = vsub.f32 %v2820, %v2821
    %v2823 = vand.u32 %v2822, 4294901760
    %2824 = vmatprep.subr.mxu0 %v2823
    %v2825 = vand.u32 %v2533, 4294901760
    %v2826 = vsub.f32 %v2533, %v2825
    %v2827 = vand.u32 %v2826, 4294901760
    %v2828 = vsub.f32 %v2826, %v2827
    %v2829 = vand.u32 %v2828, 4294901760
    %2830 = vmatpush1.msra.mxu0 %v2829
    %v2831 = vand.u32 %v2530, 4294901760
    %v2832 = vsub.f32 %v2530, %v2831
    %v2833 = vand.u32 %v2832, 4294901760
    %v2834 = vsub.f32 %v2832, %v2833
    %v2835 = vand.u32 %v2834, 4294901760
    %2836 = vmatprep.subr.mxu0 %v2835
    %v2837 = vand.u32 %v2529, 4294901760
    %v2838 = vsub.f32 %v2529, %v2837
    %v2839 = vand.u32 %v2838, 4294901760
    %v2840 = vsub.f32 %v2838, %v2839
    %v2841 = vand.u32 %v2840, 4294901760
    %2842 = vmatpush1.msra.mxu0 %v2841
    %v2843 = vand.u32 %v2526, 4294901760
    %v2844 = vsub.f32 %v2526, %v2843
    %v2845 = vand.u32 %v2844, 4294901760
    %v2846 = vsub.f32 %v2844, %v2845
    %v2847 = vand.u32 %v2846, 4294901760
    %2848 = vmatprep.subr.mxu0 %v2847
    %v2849 = vand.u32 %v2525, 4294901760
    %v2850 = vsub.f32 %v2525, %v2849
    %v2851 = vand.u32 %v2850, 4294901760
    %v2852 = vsub.f32 %v2850, %v2851
    %v2853 = vand.u32 %v2852, 4294901760
    %2854 = vmatpush1.msra.mxu0 %v2853
    %v2855 = vand.u32 %v2522, 4294901760
    %v2856 = vsub.f32 %v2522, %v2855
    %v2857 = vand.u32 %v2856, 4294901760
    %v2858 = vsub.f32 %v2856, %v2857
    %v2859 = vand.u32 %v2858, 4294901760
    %2860 = vmatprep.subr.mxu0 %v2859
    %v2861 = vand.u32 %v2521, 4294901760
    %v2862 = vsub.f32 %v2521, %v2861
    %v2863 = vand.u32 %v2862, 4294901760
    %v2864 = vsub.f32 %v2862, %v2863
    %v2865 = vand.u32 %v2864, 4294901760
    %2866 = vmatpush1.msra.mxu0 %v2865
    %v2867 = vand.u32 %v2518, 4294901760
    %v2868 = vsub.f32 %v2518, %v2867
    %v2869 = vand.u32 %v2868, 4294901760
    %v2870 = vsub.f32 %v2868, %v2869
    %v2871 = vand.u32 %v2870, 4294901760
    %2872 = vmatprep.subr.mxu0 %v2871
    %v2873 = vand.u32 %v2517, 4294901760
    %v2874 = vsub.f32 %v2517, %v2873
    %v2875 = vand.u32 %v2874, 4294901760
    %v2876 = vsub.f32 %v2874, %v2875
    %v2877 = vand.u32 %v2876, 4294901760
    %2878 = vmatpush1.msra.mxu0 %v2877
    %v2879 = vand.u32 %v2514, 4294901760
    %v2880 = vsub.f32 %v2514, %v2879
    %v2881 = vand.u32 %v2880, 4294901760
    %v2882 = vsub.f32 %v2880, %v2881
    %v2883 = vand.u32 %v2882, 4294901760
    %2884 = vmatprep.subr.mxu0 %v2883
    %v2885 = vand.u32 %v2513, 4294901760
    %v2886 = vsub.f32 %v2513, %v2885
    %v2887 = vand.u32 %v2886, 4294901760
    %v2888 = vsub.f32 %v2886, %v2887
    %v2889 = vand.u32 %v2888, 4294901760
    %2890 = vmatpush1.msra.mxu0 %v2889
    %v2891 = vand.u32 %v2510, 4294901760
    %v2892 = vsub.f32 %v2510, %v2891
    %v2893 = vand.u32 %v2892, 4294901760
    %v2894 = vsub.f32 %v2892, %v2893
    %v2895 = vand.u32 %v2894, 4294901760
    %2896 = vmatprep.subr.mxu0 %v2895
    %v2897 = vand.u32 %v2509, 4294901760
    %v2898 = vsub.f32 %v2509, %v2897
    %v2899 = vand.u32 %v2898, 4294901760
    %v2900 = vsub.f32 %v2898, %v2899
    %v2901 = vand.u32 %v2900, 4294901760
    %2902 = vmatpush1.msra.mxu0 %v2901
    %v2903 = vand.u32 %v2506, 4294901760
    %v2904 = vsub.f32 %v2506, %v2903
    %v2905 = vand.u32 %v2904, 4294901760
    %v2906 = vsub.f32 %v2904, %v2905
    %v2907 = vand.u32 %v2906, 4294901760
    %2908 = vmatprep.subr.mxu0 %v2907
    %v2909 = vand.u32 %v2505, 4294901760
    %v2910 = vsub.f32 %v2505, %v2909
    %v2911 = vand.u32 %v2910, 4294901760
    %v2912 = vsub.f32 %v2910, %v2911
    %v2913 = vand.u32 %v2912, 4294901760
    %2914 = vmatpush1.msra.mxu0 %v2913
    %v2915 = vand.u32 %v2502, 4294901760
    %v2916 = vsub.f32 %v2502, %v2915
    %v2917 = vand.u32 %v2916, 4294901760
    %v2918 = vsub.f32 %v2916, %v2917
    %v2919 = vand.u32 %v2918, 4294901760
    %2920 = vmatprep.subr.mxu0 %v2919
    %v2921 = vand.u32 %v2501, 4294901760
    %v2922 = vsub.f32 %v2501, %v2921
    %v2923 = vand.u32 %v2922, 4294901760
    %v2924 = vsub.f32 %v2922, %v2923
    %v2925 = vand.u32 %v2924, 4294901760
    %2926 = vmatpush1.msra.mxu0 %v2925
    %v2927 = vand.u32 %v2498, 4294901760
    %v2928 = vsub.f32 %v2498, %v2927
    %v2929 = vand.u32 %v2928, 4294901760
    %v2930 = vsub.f32 %v2928, %v2929
    %v2931 = vand.u32 %v2930, 4294901760
    %2932 = vmatprep.subr.mxu0 %v2931
    %v2933 = vand.u32 %v2497, 4294901760
    %v2934 = vsub.f32 %v2497, %v2933
    %v2935 = vand.u32 %v2934, 4294901760
    %v2936 = vsub.f32 %v2934, %v2935
    %v2937 = vand.u32 %v2936, 4294901760
    %2938 = vmatpush1.msra.mxu0 %v2937
    %2939 = vmatprep.subr.mxu0 0.0
    %2940 = vmatpush2.msra.mxu0 0.0
    %2941 = vmatprep.subr.mxu0 0.0
    %2942 = vmatpush2.msra.mxu0 0.0
    %2943 = vmatprep.subr.mxu0 0.0
    %2944 = vmatpush2.msra.mxu0 0.0
    %2945 = vmatprep.subr.mxu0 0.0
    %2946 = vmatpush2.msra.mxu0 0.0
    %2947 = vmatprep.subr.mxu0 0.0
    %2948 = vmatpush2.msra.mxu0 0.0
    %2949 = vmatprep.subr.mxu0 0.0
    %2950 = vmatpush2.msra.mxu0 0.0
    %2951 = vmatprep.subr.mxu0 0.0
    %2952 = vmatpush2.msra.mxu0 0.0
    %2953 = vmatprep.subr.mxu0 0.0
    %2954 = vmatpush2.msra.mxu0 0.0
    %2955 = vmatprep.subr.mxu0 0.0
    %2956 = vmatpush2.msra.mxu0 0.0
    %2957 = vmatprep.subr.mxu0 0.0
    %2958 = vmatpush2.msra.mxu0 0.0
    %2959 = vmatprep.subr.mxu0 0.0
    %2960 = vmatpush2.msra.mxu0 0.0
    %2961 = vmatprep.subr.mxu0 0.0
    %2962 = vmatpush2.msra.mxu0 0.0
    %2963 = vmatprep.subr.mxu0 0.0
    %2964 = vmatpush2.msra.mxu0 0.0
    %2965 = vmatprep.subr.mxu0 0.0
    %2966 = vmatpush2.msra.mxu0 0.0
    %v2967 = vand.u32 %v108, 4294901760
    %v2968 = vsub.f32 %v108, %v2967
    %v2969 = vand.u32 %v2968, 4294901760
    %v2970 = vsub.f32 %v2968, %v2969
    %v2971 = vand.u32 %v2970, 4294901760
    %2972 = vmatprep.subr.mxu0 %v2971
    %v2973 = vand.u32 %v106, 4294901760
    %v2974 = vsub.f32 %v106, %v2973
    %v2975 = vand.u32 %v2974, 4294901760
    %v2976 = vsub.f32 %v2974, %v2975
    %v2977 = vand.u32 %v2976, 4294901760
    %2978 = vmatpush2.msra.mxu0 %v2977
    %v2979 = vand.u32 %v100, 4294901760
    %v2980 = vsub.f32 %v100, %v2979
    %v2981 = vand.u32 %v2980, 4294901760
    %v2982 = vsub.f32 %v2980, %v2981
    %v2983 = vand.u32 %v2982, 4294901760
    %2984 = vmatprep.subr.mxu0 %v2983
    %v2985 = vand.u32 %v98, 4294901760
    %v2986 = vsub.f32 %v98, %v2985
    %v2987 = vand.u32 %v2986, 4294901760
    %v2988 = vsub.f32 %v2986, %v2987
    %v2989 = vand.u32 %v2988, 4294901760
    %2990 = vmatpush2.msra.mxu0 %v2989
    %v2991 = vand.u32 %v2571, 4294901760
    %2992 = vmatprep.mubr.f32.mxu0 %v2991
    %v2993 = vand.u32 %v2561, 4294901760
    %2994 = vmatmul.mubr.f32.gmra.mxu0 %v2993
    %v2995 = vpop.f32.mrf.mxu0
    %v2996 = vadd.f32 %v2695, %v2995
    %v2997 = vpop.f32.mrf.mxu0
    %v2998 = vadd.f32 %v2697, %v2997
    %v2999 = vand.u32 %v2574, 4294901760
    %3000 = vmatprep.mubr.f32.mxu0 %v2999
    %v3001 = vand.u32 %v2563, 4294901760
    %3002 = vmatmul.mubr.f32.gmra.mxu0 %v3001
    %v3003 = vpop.f32.mrf.mxu0
    %v3004 = vadd.f32 %v2711, %v3003
    %v3005 = vpop.f32.mrf.mxu0
    %v3006 = vadd.f32 %v2713, %v3005
    %v3007 = vand.u32 %v2577, 4294901760
    %3008 = vmatprep.mubr.f32.mxu0 %v3007
    %v3009 = vand.u32 %v2565, 4294901760
    %3010 = vmatmul.mubr.f32.gmra.mxu0 %v3009
    %v3011 = vpop.f32.mrf.mxu0
    %v3012 = vadd.f32 %v2727, %v3011
    %v3013 = vpop.f32.mrf.mxu0
    %v3014 = vadd.f32 %v2729, %v3013
    %v3015 = vand.u32 %v2580, 4294901760
    %3016 = vmatprep.mubr.f32.mxu0 %v3015
    %v3017 = vand.u32 %v2567, 4294901760
    %3018 = vmatmul.mubr.f32.gmra.mxu0 %v3017
    %v3019 = vpop.f32.mrf.mxu0
    %v3020 = vadd.f32 %v2743, %v3019
    %v3021 = vpop.f32.mrf.mxu0
    %v3022 = vadd.f32 %v2745, %v3021
    %3023 = vdwg.mxu0
    %v3024 = vand.u32 %v2558, 4294901760
    %v3025 = vsub.f32 %v2558, %v3024
    %3026 = vmatprep.subr.mxu0 %v3025
    %v3027 = vand.u32 %v2557, 4294901760
    %v3028 = vsub.f32 %v2557, %v3027
    %3029 = vmatpush1.msra.mxu0 %v3028
    %v3030 = vand.u32 %v2554, 4294901760
    %v3031 = vsub.f32 %v2554, %v3030
    %3032 = vmatprep.subr.mxu0 %v3031
    %v3033 = vand.u32 %v2553, 4294901760
    %v3034 = vsub.f32 %v2553, %v3033
    %3035 = vmatpush1.msra.mxu0 %v3034
    %v3036 = vand.u32 %v2550, 4294901760
    %v3037 = vsub.f32 %v2550, %v3036
    %3038 = vmatprep.subr.mxu0 %v3037
    %v3039 = vand.u32 %v2549, 4294901760
    %v3040 = vsub.f32 %v2549, %v3039
    %3041 = vmatpush1.msra.mxu0 %v3040
    %v3042 = vand.u32 %v2546, 4294901760
    %v3043 = vsub.f32 %v2546, %v3042
    %3044 = vmatprep.subr.mxu0 %v3043
    %v3045 = vand.u32 %v2545, 4294901760
    %v3046 = vsub.f32 %v2545, %v3045
    %3047 = vmatpush1.msra.mxu0 %v3046
    %v3048 = vand.u32 %v2542, 4294901760
    %v3049 = vsub.f32 %v2542, %v3048
    %3050 = vmatprep.subr.mxu0 %v3049
    %v3051 = vand.u32 %v2541, 4294901760
    %v3052 = vsub.f32 %v2541, %v3051
    %3053 = vmatpush1.msra.mxu0 %v3052
    %v3054 = vand.u32 %v2538, 4294901760
    %v3055 = vsub.f32 %v2538, %v3054
    %3056 = vmatprep.subr.mxu0 %v3055
    %v3057 = vand.u32 %v2537, 4294901760
    %v3058 = vsub.f32 %v2537, %v3057
    %3059 = vmatpush1.msra.mxu0 %v3058
    %v3060 = vand.u32 %v2534, 4294901760
    %v3061 = vsub.f32 %v2534, %v3060
    %3062 = vmatprep.subr.mxu0 %v3061
    %v3063 = vand.u32 %v2533, 4294901760
    %v3064 = vsub.f32 %v2533, %v3063
    %3065 = vmatpush1.msra.mxu0 %v3064
    %v3066 = vand.u32 %v2530, 4294901760
    %v3067 = vsub.f32 %v2530, %v3066
    %3068 = vmatprep.subr.mxu0 %v3067
    %v3069 = vand.u32 %v2529, 4294901760
    %v3070 = vsub.f32 %v2529, %v3069
    %3071 = vmatpush1.msra.mxu0 %v3070
    %v3072 = vand.u32 %v2526, 4294901760
    %v3073 = vsub.f32 %v2526, %v3072
    %3074 = vmatprep.subr.mxu0 %v3073
    %v3075 = vand.u32 %v2525, 4294901760
    %v3076 = vsub.f32 %v2525, %v3075
    %3077 = vmatpush1.msra.mxu0 %v3076
    %v3078 = vand.u32 %v2522, 4294901760
    %v3079 = vsub.f32 %v2522, %v3078
    %3080 = vmatprep.subr.mxu0 %v3079
    %v3081 = vand.u32 %v2521, 4294901760
    %v3082 = vsub.f32 %v2521, %v3081
    %3083 = vmatpush1.msra.mxu0 %v3082
    %v3084 = vand.u32 %v2518, 4294901760
    %v3085 = vsub.f32 %v2518, %v3084
    %3086 = vmatprep.subr.mxu0 %v3085
    %v3087 = vand.u32 %v2517, 4294901760
    %v3088 = vsub.f32 %v2517, %v3087
    %3089 = vmatpush1.msra.mxu0 %v3088
    %v3090 = vand.u32 %v2514, 4294901760
    %v3091 = vsub.f32 %v2514, %v3090
    %3092 = vmatprep.subr.mxu0 %v3091
    %v3093 = vand.u32 %v2513, 4294901760
    %v3094 = vsub.f32 %v2513, %v3093
    %3095 = vmatpush1.msra.mxu0 %v3094
    %v3096 = vand.u32 %v2510, 4294901760
    %v3097 = vsub.f32 %v2510, %v3096
    %3098 = vmatprep.subr.mxu0 %v3097
    %v3099 = vand.u32 %v2509, 4294901760
    %v3100 = vsub.f32 %v2509, %v3099
    %3101 = vmatpush1.msra.mxu0 %v3100
    %v3102 = vand.u32 %v2506, 4294901760
    %v3103 = vsub.f32 %v2506, %v3102
    %3104 = vmatprep.subr.mxu0 %v3103
    %v3105 = vand.u32 %v2505, 4294901760
    %v3106 = vsub.f32 %v2505, %v3105
    %3107 = vmatpush1.msra.mxu0 %v3106
    %v3108 = vand.u32 %v2502, 4294901760
    %v3109 = vsub.f32 %v2502, %v3108
    %3110 = vmatprep.subr.mxu0 %v3109
    %v3111 = vand.u32 %v2501, 4294901760
    %v3112 = vsub.f32 %v2501, %v3111
    %3113 = vmatpush1.msra.mxu0 %v3112
    %v3114 = vand.u32 %v2498, 4294901760
    %v3115 = vsub.f32 %v2498, %v3114
    %3116 = vmatprep.subr.mxu0 %v3115
    %v3117 = vand.u32 %v2497, 4294901760
    %v3118 = vsub.f32 %v2497, %v3117
    %3119 = vmatpush1.msra.mxu0 %v3118
    %3120 = vmatprep.subr.mxu0 0.0
    %3121 = vmatpush2.msra.mxu0 0.0
    %3122 = vmatprep.subr.mxu0 0.0
    %3123 = vmatpush2.msra.mxu0 0.0
    %3124 = vmatprep.subr.mxu0 0.0
    %3125 = vmatpush2.msra.mxu0 0.0
    %3126 = vmatprep.subr.mxu0 0.0
    %3127 = vmatpush2.msra.mxu0 0.0
    %3128 = vmatprep.subr.mxu0 0.0
    %3129 = vmatpush2.msra.mxu0 0.0
    %3130 = vmatprep.subr.mxu0 0.0
    %3131 = vmatpush2.msra.mxu0 0.0
    %3132 = vmatprep.subr.mxu0 0.0
    %3133 = vmatpush2.msra.mxu0 0.0
    %3134 = vmatprep.subr.mxu0 0.0
    %3135 = vmatpush2.msra.mxu0 0.0
    %3136 = vmatprep.subr.mxu0 0.0
    %3137 = vmatpush2.msra.mxu0 0.0
    %3138 = vmatprep.subr.mxu0 0.0
    %3139 = vmatpush2.msra.mxu0 0.0
    %3140 = vmatprep.subr.mxu0 0.0
    %3141 = vmatpush2.msra.mxu0 0.0
    %3142 = vmatprep.subr.mxu0 0.0
    %3143 = vmatpush2.msra.mxu0 0.0
    %3144 = vmatprep.subr.mxu0 0.0
    %3145 = vmatpush2.msra.mxu0 0.0
    %3146 = vmatprep.subr.mxu0 0.0
    %3147 = vmatpush2.msra.mxu0 0.0
    %v3148 = vand.u32 %v108, 4294901760
    %v3149 = vsub.f32 %v108, %v3148
    %3150 = vmatprep.subr.mxu0 %v3149
    %v3151 = vand.u32 %v106, 4294901760
    %v3152 = vsub.f32 %v106, %v3151
    %3153 = vmatpush2.msra.mxu0 %v3152
    %v3154 = vand.u32 %v100, 4294901760
    %v3155 = vsub.f32 %v100, %v3154
    %3156 = vmatprep.subr.mxu0 %v3155
    %v3157 = vand.u32 %v98, 4294901760
    %v3158 = vsub.f32 %v98, %v3157
    %3159 = vmatpush2.msra.mxu0 %v3158
    %v3160 = vand.u32 %v2571, 4294901760
    %v3161 = vsub.f32 %v2571, %v3160
    %3162 = vmatprep.mubr.f32.mxu0 %v3161
    %v3163 = vand.u32 %v2561, 4294901760
    %v3164 = vsub.f32 %v2561, %v3163
    %3165 = vmatmul.mubr.f32.gmra.mxu0 %v3164
    %v3166 = vpop.f32.mrf.mxu0
    %v3167 = vadd.f32 %v2996, %v3166
    %v3168 = vpop.f32.mrf.mxu0
    %v3169 = vadd.f32 %v2998, %v3168
    %v3170 = vand.u32 %v2574, 4294901760
    %v3171 = vsub.f32 %v2574, %v3170
    %3172 = vmatprep.mubr.f32.mxu0 %v3171
    %v3173 = vand.u32 %v2563, 4294901760
    %v3174 = vsub.f32 %v2563, %v3173
    %3175 = vmatmul.mubr.f32.gmra.mxu0 %v3174
    %v3176 = vpop.f32.mrf.mxu0
    %v3177 = vadd.f32 %v3004, %v3176
    %v3178 = vpop.f32.mrf.mxu0
    %v3179 = vadd.f32 %v3006, %v3178
    %v3180 = vand.u32 %v2577, 4294901760
    %v3181 = vsub.f32 %v2577, %v3180
    %3182 = vmatprep.mubr.f32.mxu0 %v3181
    %v3183 = vand.u32 %v2565, 4294901760
    %v3184 = vsub.f32 %v2565, %v3183
    %3185 = vmatmul.mubr.f32.gmra.mxu0 %v3184
    %v3186 = vpop.f32.mrf.mxu0
    %v3187 = vadd.f32 %v3012, %v3186
    %v3188 = vpop.f32.mrf.mxu0
    %v3189 = vadd.f32 %v3014, %v3188
    %v3190 = vand.u32 %v2580, 4294901760
    %v3191 = vsub.f32 %v2580, %v3190
    %3192 = vmatprep.mubr.f32.mxu0 %v3191
    %v3193 = vand.u32 %v2567, 4294901760
    %v3194 = vsub.f32 %v2567, %v3193
    %3195 = vmatmul.mubr.f32.gmra.mxu0 %v3194
    %v3196 = vpop.f32.mrf.mxu0
    %v3197 = vadd.f32 %v3020, %v3196
    %v3198 = vpop.f32.mrf.mxu0
    %v3199 = vadd.f32 %v3022, %v3198
    %3200 = vdwg.mxu0
    %v3201 = vand.u32 %v2558, 4294901760
    %3202 = vmatprep.subr.mxu0 %v3201
    %v3203 = vand.u32 %v2557, 4294901760
    %3204 = vmatpush1.msra.mxu0 %v3203
    %v3205 = vand.u32 %v2554, 4294901760
    %3206 = vmatprep.subr.mxu0 %v3205
    %v3207 = vand.u32 %v2553, 4294901760
    %3208 = vmatpush1.msra.mxu0 %v3207
    %v3209 = vand.u32 %v2550, 4294901760
    %3210 = vmatprep.subr.mxu0 %v3209
    %v3211 = vand.u32 %v2549, 4294901760
    %3212 = vmatpush1.msra.mxu0 %v3211
    %v3213 = vand.u32 %v2546, 4294901760
    %3214 = vmatprep.subr.mxu0 %v3213
    %v3215 = vand.u32 %v2545, 4294901760
    %3216 = vmatpush1.msra.mxu0 %v3215
    %v3217 = vand.u32 %v2542, 4294901760
    %3218 = vmatprep.subr.mxu0 %v3217
    %v3219 = vand.u32 %v2541, 4294901760
    %3220 = vmatpush1.msra.mxu0 %v3219
    %v3221 = vand.u32 %v2538, 4294901760
    %3222 = vmatprep.subr.mxu0 %v3221
    %v3223 = vand.u32 %v2537, 4294901760
    %3224 = vmatpush1.msra.mxu0 %v3223
    %v3225 = vand.u32 %v2534, 4294901760
    %3226 = vmatprep.subr.mxu0 %v3225
    %v3227 = vand.u32 %v2533, 4294901760
    %3228 = vmatpush1.msra.mxu0 %v3227
    %v3229 = vand.u32 %v2530, 4294901760
    %3230 = vmatprep.subr.mxu0 %v3229
    %v3231 = vand.u32 %v2529, 4294901760
    %3232 = vmatpush1.msra.mxu0 %v3231
    %v3233 = vand.u32 %v2526, 4294901760
    %3234 = vmatprep.subr.mxu0 %v3233
    %v3235 = vand.u32 %v2525, 4294901760
    %3236 = vmatpush1.msra.mxu0 %v3235
    %v3237 = vand.u32 %v2522, 4294901760
    %3238 = vmatprep.subr.mxu0 %v3237
    %v3239 = vand.u32 %v2521, 4294901760
    %3240 = vmatpush1.msra.mxu0 %v3239
    %v3241 = vand.u32 %v2518, 4294901760
    %3242 = vmatprep.subr.mxu0 %v3241
    %v3243 = vand.u32 %v2517, 4294901760
    %3244 = vmatpush1.msra.mxu0 %v3243
    %v3245 = vand.u32 %v2514, 4294901760
    %3246 = vmatprep.subr.mxu0 %v3245
    %v3247 = vand.u32 %v2513, 4294901760
    %3248 = vmatpush1.msra.mxu0 %v3247
    %v3249 = vand.u32 %v2510, 4294901760
    %3250 = vmatprep.subr.mxu0 %v3249
    %v3251 = vand.u32 %v2509, 4294901760
    %3252 = vmatpush1.msra.mxu0 %v3251
    %v3253 = vand.u32 %v2506, 4294901760
    %3254 = vmatprep.subr.mxu0 %v3253
    %v3255 = vand.u32 %v2505, 4294901760
    %3256 = vmatpush1.msra.mxu0 %v3255
    %v3257 = vand.u32 %v2502, 4294901760
    %3258 = vmatprep.subr.mxu0 %v3257
    %v3259 = vand.u32 %v2501, 4294901760
    %3260 = vmatpush1.msra.mxu0 %v3259
    %v3261 = vand.u32 %v2498, 4294901760
    %3262 = vmatprep.subr.mxu0 %v3261
    %v3263 = vand.u32 %v2497, 4294901760
    %3264 = vmatpush1.msra.mxu0 %v3263
    %3265 = vmatprep.subr.mxu0 0.0
    %3266 = vmatpush2.msra.mxu0 0.0
    %3267 = vmatprep.subr.mxu0 0.0
    %3268 = vmatpush2.msra.mxu0 0.0
    %3269 = vmatprep.subr.mxu0 0.0
    %3270 = vmatpush2.msra.mxu0 0.0
    %3271 = vmatprep.subr.mxu0 0.0
    %3272 = vmatpush2.msra.mxu0 0.0
    %3273 = vmatprep.subr.mxu0 0.0
    %3274 = vmatpush2.msra.mxu0 0.0
    %3275 = vmatprep.subr.mxu0 0.0
    %3276 = vmatpush2.msra.mxu0 0.0
    %3277 = vmatprep.subr.mxu0 0.0
    %3278 = vmatpush2.msra.mxu0 0.0
    %3279 = vmatprep.subr.mxu0 0.0
    %3280 = vmatpush2.msra.mxu0 0.0
    %3281 = vmatprep.subr.mxu0 0.0
    %3282 = vmatpush2.msra.mxu0 0.0
    %3283 = vmatprep.subr.mxu0 0.0
    %3284 = vmatpush2.msra.mxu0 0.0
    %3285 = vmatprep.subr.mxu0 0.0
    %3286 = vmatpush2.msra.mxu0 0.0
    %3287 = vmatprep.subr.mxu0 0.0
    %3288 = vmatpush2.msra.mxu0 0.0
    %3289 = vmatprep.subr.mxu0 0.0
    %3290 = vmatpush2.msra.mxu0 0.0
    %3291 = vmatprep.subr.mxu0 0.0
    %3292 = vmatpush2.msra.mxu0 0.0
    %v3293 = vand.u32 %v108, 4294901760
    %3294 = vmatprep.subr.mxu0 %v3293
    %v3295 = vand.u32 %v106, 4294901760
    %3296 = vmatpush2.msra.mxu0 %v3295
    %v3297 = vand.u32 %v100, 4294901760
    %3298 = vmatprep.subr.mxu0 %v3297
    %v3299 = vand.u32 %v98, 4294901760
    %3300 = vmatpush2.msra.mxu0 %v3299
    %v3301 = vand.u32 %v2571, 4294901760
    %v3302 = vsub.f32 %v2571, %v3301
    %v3303 = vand.u32 %v3302, 4294901760
    %3304 = vmatprep.mubr.f32.mxu0 %v3303
    %v3305 = vand.u32 %v2561, 4294901760
    %v3306 = vsub.f32 %v2561, %v3305
    %v3307 = vand.u32 %v3306, 4294901760
    %3308 = vmatmul.mubr.f32.gmra.mxu0 %v3307
    %v3309 = vpop.f32.mrf.mxu0
    %v3310 = vadd.f32 %v3167, %v3309
    %v3311 = vpop.f32.mrf.mxu0
    %v3312 = vadd.f32 %v3169, %v3311
    %v3313 = vand.u32 %v2574, 4294901760
    %v3314 = vsub.f32 %v2574, %v3313
    %v3315 = vand.u32 %v3314, 4294901760
    %3316 = vmatprep.mubr.f32.mxu0 %v3315
    %v3317 = vand.u32 %v2563, 4294901760
    %v3318 = vsub.f32 %v2563, %v3317
    %v3319 = vand.u32 %v3318, 4294901760
    %3320 = vmatmul.mubr.f32.gmra.mxu0 %v3319
    %v3321 = vpop.f32.mrf.mxu0
    %v3322 = vadd.f32 %v3177, %v3321
    %v3323 = vpop.f32.mrf.mxu0
    %v3324 = vadd.f32 %v3179, %v3323
    %v3325 = vand.u32 %v2577, 4294901760
    %v3326 = vsub.f32 %v2577, %v3325
    %v3327 = vand.u32 %v3326, 4294901760
    %3328 = vmatprep.mubr.f32.mxu0 %v3327
    %v3329 = vand.u32 %v2565, 4294901760
    %v3330 = vsub.f32 %v2565, %v3329
    %v3331 = vand.u32 %v3330, 4294901760
    %3332 = vmatmul.mubr.f32.gmra.mxu0 %v3331
    %v3333 = vpop.f32.mrf.mxu0
    %v3334 = vadd.f32 %v3187, %v3333
    %v3335 = vpop.f32.mrf.mxu0
    %v3336 = vadd.f32 %v3189, %v3335
    %v3337 = vand.u32 %v2580, 4294901760
    %v3338 = vsub.f32 %v2580, %v3337
    %v3339 = vand.u32 %v3338, 4294901760
    %3340 = vmatprep.mubr.f32.mxu0 %v3339
    %v3341 = vand.u32 %v2567, 4294901760
    %v3342 = vsub.f32 %v2567, %v3341
    %v3343 = vand.u32 %v3342, 4294901760
    %3344 = vmatmul.mubr.f32.gmra.mxu0 %v3343
    %v3345 = vpop.f32.mrf.mxu0
    %v3346 = vadd.f32 %v3197, %v3345
    %v3347 = vpop.f32.mrf.mxu0
    %v3348 = vadd.f32 %v3199, %v3347
    %3349 = vdwg.mxu0
    %v3350 = vand.u32 %v2558, 4294901760
    %v3351 = vsub.f32 %v2558, %v3350
    %v3352 = vand.u32 %v3351, 4294901760
    %3353 = vmatprep.subr.mxu0 %v3352
    %v3354 = vand.u32 %v2557, 4294901760
    %v3355 = vsub.f32 %v2557, %v3354
    %v3356 = vand.u32 %v3355, 4294901760
    %3357 = vmatpush1.msra.mxu0 %v3356
    %v3358 = vand.u32 %v2554, 4294901760
    %v3359 = vsub.f32 %v2554, %v3358
    %v3360 = vand.u32 %v3359, 4294901760
    %3361 = vmatprep.subr.mxu0 %v3360
    %v3362 = vand.u32 %v2553, 4294901760
    %v3363 = vsub.f32 %v2553, %v3362
    %v3364 = vand.u32 %v3363, 4294901760
    %3365 = vmatpush1.msra.mxu0 %v3364
    %v3366 = vand.u32 %v2550, 4294901760
    %v3367 = vsub.f32 %v2550, %v3366
    %v3368 = vand.u32 %v3367, 4294901760
    %3369 = vmatprep.subr.mxu0 %v3368
    %v3370 = vand.u32 %v2549, 4294901760
    %v3371 = vsub.f32 %v2549, %v3370
    %v3372 = vand.u32 %v3371, 4294901760
    %3373 = vmatpush1.msra.mxu0 %v3372
    %v3374 = vand.u32 %v2546, 4294901760
    %v3375 = vsub.f32 %v2546, %v3374
    %v3376 = vand.u32 %v3375, 4294901760
    %3377 = vmatprep.subr.mxu0 %v3376
    %v3378 = vand.u32 %v2545, 4294901760
    %v3379 = vsub.f32 %v2545, %v3378
    %v3380 = vand.u32 %v3379, 4294901760
    %3381 = vmatpush1.msra.mxu0 %v3380
    %v3382 = vand.u32 %v2542, 4294901760
    %v3383 = vsub.f32 %v2542, %v3382
    %v3384 = vand.u32 %v3383, 4294901760
    %3385 = vmatprep.subr.mxu0 %v3384
    %v3386 = vand.u32 %v2541, 4294901760
    %v3387 = vsub.f32 %v2541, %v3386
    %v3388 = vand.u32 %v3387, 4294901760
    %3389 = vmatpush1.msra.mxu0 %v3388
    %v3390 = vand.u32 %v2538, 4294901760
    %v3391 = vsub.f32 %v2538, %v3390
    %v3392 = vand.u32 %v3391, 4294901760
    %3393 = vmatprep.subr.mxu0 %v3392
    %v3394 = vand.u32 %v2537, 4294901760
    %v3395 = vsub.f32 %v2537, %v3394
    %v3396 = vand.u32 %v3395, 4294901760
    %3397 = vmatpush1.msra.mxu0 %v3396
    %v3398 = vand.u32 %v2534, 4294901760
    %v3399 = vsub.f32 %v2534, %v3398
    %v3400 = vand.u32 %v3399, 4294901760
    %3401 = vmatprep.subr.mxu0 %v3400
    %v3402 = vand.u32 %v2533, 4294901760
    %v3403 = vsub.f32 %v2533, %v3402
    %v3404 = vand.u32 %v3403, 4294901760
    %3405 = vmatpush1.msra.mxu0 %v3404
    %v3406 = vand.u32 %v2530, 4294901760
    %v3407 = vsub.f32 %v2530, %v3406
    %v3408 = vand.u32 %v3407, 4294901760
    %3409 = vmatprep.subr.mxu0 %v3408
    %v3410 = vand.u32 %v2529, 4294901760
    %v3411 = vsub.f32 %v2529, %v3410
    %v3412 = vand.u32 %v3411, 4294901760
    %3413 = vmatpush1.msra.mxu0 %v3412
    %v3414 = vand.u32 %v2526, 4294901760
    %v3415 = vsub.f32 %v2526, %v3414
    %v3416 = vand.u32 %v3415, 4294901760
    %3417 = vmatprep.subr.mxu0 %v3416
    %v3418 = vand.u32 %v2525, 4294901760
    %v3419 = vsub.f32 %v2525, %v3418
    %v3420 = vand.u32 %v3419, 4294901760
    %3421 = vmatpush1.msra.mxu0 %v3420
    %v3422 = vand.u32 %v2522, 4294901760
    %v3423 = vsub.f32 %v2522, %v3422
    %v3424 = vand.u32 %v3423, 4294901760
    %3425 = vmatprep.subr.mxu0 %v3424
    %v3426 = vand.u32 %v2521, 4294901760
    %v3427 = vsub.f32 %v2521, %v3426
    %v3428 = vand.u32 %v3427, 4294901760
    %3429 = vmatpush1.msra.mxu0 %v3428
    %v3430 = vand.u32 %v2518, 4294901760
    %v3431 = vsub.f32 %v2518, %v3430
    %v3432 = vand.u32 %v3431, 4294901760
    %3433 = vmatprep.subr.mxu0 %v3432
    %v3434 = vand.u32 %v2517, 4294901760
    %v3435 = vsub.f32 %v2517, %v3434
    %v3436 = vand.u32 %v3435, 4294901760
    %3437 = vmatpush1.msra.mxu0 %v3436
    %v3438 = vand.u32 %v2514, 4294901760
    %v3439 = vsub.f32 %v2514, %v3438
    %v3440 = vand.u32 %v3439, 4294901760
    %3441 = vmatprep.subr.mxu0 %v3440
    %v3442 = vand.u32 %v2513, 4294901760
    %v3443 = vsub.f32 %v2513, %v3442
    %v3444 = vand.u32 %v3443, 4294901760
    %3445 = vmatpush1.msra.mxu0 %v3444
    %v3446 = vand.u32 %v2510, 4294901760
    %v3447 = vsub.f32 %v2510, %v3446
    %v3448 = vand.u32 %v3447, 4294901760
    %3449 = vmatprep.subr.mxu0 %v3448
    %v3450 = vand.u32 %v2509, 4294901760
    %v3451 = vsub.f32 %v2509, %v3450
    %v3452 = vand.u32 %v3451, 4294901760
    %3453 = vmatpush1.msra.mxu0 %v3452
    %v3454 = vand.u32 %v2506, 4294901760
    %v3455 = vsub.f32 %v2506, %v3454
    %v3456 = vand.u32 %v3455, 4294901760
    %3457 = vmatprep.subr.mxu0 %v3456
    %v3458 = vand.u32 %v2505, 4294901760
    %v3459 = vsub.f32 %v2505, %v3458
    %v3460 = vand.u32 %v3459, 4294901760
    %3461 = vmatpush1.msra.mxu0 %v3460
    %v3462 = vand.u32 %v2502, 4294901760
    %v3463 = vsub.f32 %v2502, %v3462
    %v3464 = vand.u32 %v3463, 4294901760
    %3465 = vmatprep.subr.mxu0 %v3464
    %v3466 = vand.u32 %v2501, 4294901760
    %v3467 = vsub.f32 %v2501, %v3466
    %v3468 = vand.u32 %v3467, 4294901760
    %3469 = vmatpush1.msra.mxu0 %v3468
    %v3470 = vand.u32 %v2498, 4294901760
    %v3471 = vsub.f32 %v2498, %v3470
    %v3472 = vand.u32 %v3471, 4294901760
    %3473 = vmatprep.subr.mxu0 %v3472
    %v3474 = vand.u32 %v2497, 4294901760
    %v3475 = vsub.f32 %v2497, %v3474
    %v3476 = vand.u32 %v3475, 4294901760
    %3477 = vmatpush1.msra.mxu0 %v3476
    %3478 = vmatprep.subr.mxu0 0.0
    %3479 = vmatpush2.msra.mxu0 0.0
    %3480 = vmatprep.subr.mxu0 0.0
    %3481 = vmatpush2.msra.mxu0 0.0
    %3482 = vmatprep.subr.mxu0 0.0
    %3483 = vmatpush2.msra.mxu0 0.0
    %3484 = vmatprep.subr.mxu0 0.0
    %3485 = vmatpush2.msra.mxu0 0.0
    %3486 = vmatprep.subr.mxu0 0.0
    %3487 = vmatpush2.msra.mxu0 0.0
    %3488 = vmatprep.subr.mxu0 0.0
    %3489 = vmatpush2.msra.mxu0 0.0
    %3490 = vmatprep.subr.mxu0 0.0
    %3491 = vmatpush2.msra.mxu0 0.0
    %3492 = vmatprep.subr.mxu0 0.0
    %3493 = vmatpush2.msra.mxu0 0.0
    %3494 = vmatprep.subr.mxu0 0.0
    %3495 = vmatpush2.msra.mxu0 0.0
    %3496 = vmatprep.subr.mxu0 0.0
    %3497 = vmatpush2.msra.mxu0 0.0
    %3498 = vmatprep.subr.mxu0 0.0
    %3499 = vmatpush2.msra.mxu0 0.0
    %3500 = vmatprep.subr.mxu0 0.0
    %3501 = vmatpush2.msra.mxu0 0.0
    %3502 = vmatprep.subr.mxu0 0.0
    %3503 = vmatpush2.msra.mxu0 0.0
    %3504 = vmatprep.subr.mxu0 0.0
    %3505 = vmatpush2.msra.mxu0 0.0
    %v3506 = vand.u32 %v108, 4294901760
    %v3507 = vsub.f32 %v108, %v3506
    %v3508 = vand.u32 %v3507, 4294901760
    %3509 = vmatprep.subr.mxu0 %v3508
    %v3510 = vand.u32 %v106, 4294901760
    %v3511 = vsub.f32 %v106, %v3510
    %v3512 = vand.u32 %v3511, 4294901760
    %3513 = vmatpush2.msra.mxu0 %v3512
    %v3514 = vand.u32 %v100, 4294901760
    %v3515 = vsub.f32 %v100, %v3514
    %v3516 = vand.u32 %v3515, 4294901760
    %3517 = vmatprep.subr.mxu0 %v3516
    %v3518 = vand.u32 %v98, 4294901760
    %v3519 = vsub.f32 %v98, %v3518
    %v3520 = vand.u32 %v3519, 4294901760
    %3521 = vmatpush2.msra.mxu0 %v3520
    %v3522 = vand.u32 %v2571, 4294901760
    %3523 = vmatprep.mubr.f32.mxu0 %v3522
    %v3524 = vand.u32 %v2561, 4294901760
    %3525 = vmatmul.mubr.f32.gmra.mxu0 %v3524
    %v3526 = vpop.f32.mrf.mxu0
    %v3527 = vadd.f32 %v3310, %v3526
    %v3528 = vpop.f32.mrf.mxu0
    %v3529 = vadd.f32 %v3312, %v3528
    %v3530 = vand.u32 %v2574, 4294901760
    %3531 = vmatprep.mubr.f32.mxu0 %v3530
    %v3532 = vand.u32 %v2563, 4294901760
    %3533 = vmatmul.mubr.f32.gmra.mxu0 %v3532
    %v3534 = vpop.f32.mrf.mxu0
    %v3535 = vadd.f32 %v3322, %v3534
    %v3536 = vpop.f32.mrf.mxu0
    %v3537 = vadd.f32 %v3324, %v3536
    %v3538 = vand.u32 %v2577, 4294901760
    %3539 = vmatprep.mubr.f32.mxu0 %v3538
    %v3540 = vand.u32 %v2565, 4294901760
    %3541 = vmatmul.mubr.f32.gmra.mxu0 %v3540
    %v3542 = vpop.f32.mrf.mxu0
    %v3543 = vadd.f32 %v3334, %v3542
    %v3544 = vpop.f32.mrf.mxu0
    %v3545 = vadd.f32 %v3336, %v3544
    %v3546 = vand.u32 %v2580, 4294901760
    %3547 = vmatprep.mubr.f32.mxu0 %v3546
    %v3548 = vand.u32 %v2567, 4294901760
    %3549 = vmatmul.mubr.f32.gmra.mxu0 %v3548
    %v3550 = vpop.f32.mrf.mxu0
    %v3551 = vadd.f32 %v3346, %v3550
    %v3552 = vpop.f32.mrf.mxu0
    %v3553 = vadd.f32 %v3348, %v3552
    %3554 = vdwg.mxu0
    %v3555 = vand.u32 %v2558, 4294901760
    %3556 = vmatprep.subr.mxu0 %v3555
    %v3557 = vand.u32 %v2557, 4294901760
    %3558 = vmatpush1.msra.mxu0 %v3557
    %v3559 = vand.u32 %v2554, 4294901760
    %3560 = vmatprep.subr.mxu0 %v3559
    %v3561 = vand.u32 %v2553, 4294901760
    %3562 = vmatpush1.msra.mxu0 %v3561
    %v3563 = vand.u32 %v2550, 4294901760
    %3564 = vmatprep.subr.mxu0 %v3563
    %v3565 = vand.u32 %v2549, 4294901760
    %3566 = vmatpush1.msra.mxu0 %v3565
    %v3567 = vand.u32 %v2546, 4294901760
    %3568 = vmatprep.subr.mxu0 %v3567
    %v3569 = vand.u32 %v2545, 4294901760
    %3570 = vmatpush1.msra.mxu0 %v3569
    %v3571 = vand.u32 %v2542, 4294901760
    %3572 = vmatprep.subr.mxu0 %v3571
    %v3573 = vand.u32 %v2541, 4294901760
    %3574 = vmatpush1.msra.mxu0 %v3573
    %v3575 = vand.u32 %v2538, 4294901760
    %3576 = vmatprep.subr.mxu0 %v3575
    %v3577 = vand.u32 %v2537, 4294901760
    %3578 = vmatpush1.msra.mxu0 %v3577
    %v3579 = vand.u32 %v2534, 4294901760
    %3580 = vmatprep.subr.mxu0 %v3579
    %v3581 = vand.u32 %v2533, 4294901760
    %3582 = vmatpush1.msra.mxu0 %v3581
    %v3583 = vand.u32 %v2530, 4294901760
    %3584 = vmatprep.subr.mxu0 %v3583
    %v3585 = vand.u32 %v2529, 4294901760
    %3586 = vmatpush1.msra.mxu0 %v3585
    %v3587 = vand.u32 %v2526, 4294901760
    %3588 = vmatprep.subr.mxu0 %v3587
    %v3589 = vand.u32 %v2525, 4294901760
    %3590 = vmatpush1.msra.mxu0 %v3589
    %v3591 = vand.u32 %v2522, 4294901760
    %3592 = vmatprep.subr.mxu0 %v3591
    %v3593 = vand.u32 %v2521, 4294901760
    %3594 = vmatpush1.msra.mxu0 %v3593
    %v3595 = vand.u32 %v2518, 4294901760
    %3596 = vmatprep.subr.mxu0 %v3595
    %v3597 = vand.u32 %v2517, 4294901760
    %3598 = vmatpush1.msra.mxu0 %v3597
    %v3599 = vand.u32 %v2514, 4294901760
    %3600 = vmatprep.subr.mxu0 %v3599
    %v3601 = vand.u32 %v2513, 4294901760
    %3602 = vmatpush1.msra.mxu0 %v3601
    %v3603 = vand.u32 %v2510, 4294901760
    %3604 = vmatprep.subr.mxu0 %v3603
    %v3605 = vand.u32 %v2509, 4294901760
    %3606 = vmatpush1.msra.mxu0 %v3605
    %v3607 = vand.u32 %v2506, 4294901760
    %3608 = vmatprep.subr.mxu0 %v3607
    %v3609 = vand.u32 %v2505, 4294901760
    %3610 = vmatpush1.msra.mxu0 %v3609
    %v3611 = vand.u32 %v2502, 4294901760
    %3612 = vmatprep.subr.mxu0 %v3611
    %v3613 = vand.u32 %v2501, 4294901760
    %3614 = vmatpush1.msra.mxu0 %v3613
    %v3615 = vand.u32 %v2498, 4294901760
    %3616 = vmatprep.subr.mxu0 %v3615
    %v3617 = vand.u32 %v2497, 4294901760
    %3618 = vmatpush1.msra.mxu0 %v3617
    %3619 = vmatprep.subr.mxu0 0.0
    %3620 = vmatpush2.msra.mxu0 0.0
    %3621 = vmatprep.subr.mxu0 0.0
    %3622 = vmatpush2.msra.mxu0 0.0
    %3623 = vmatprep.subr.mxu0 0.0
    %3624 = vmatpush2.msra.mxu0 0.0
    %3625 = vmatprep.subr.mxu0 0.0
    %3626 = vmatpush2.msra.mxu0 0.0
    %3627 = vmatprep.subr.mxu0 0.0
    %3628 = vmatpush2.msra.mxu0 0.0
    %3629 = vmatprep.subr.mxu0 0.0
    %3630 = vmatpush2.msra.mxu0 0.0
    %3631 = vmatprep.subr.mxu0 0.0
    %3632 = vmatpush2.msra.mxu0 0.0
    %3633 = vmatprep.subr.mxu0 0.0
    %3634 = vmatpush2.msra.mxu0 0.0
    %3635 = vmatprep.subr.mxu0 0.0
    %3636 = vmatpush2.msra.mxu0 0.0
    %3637 = vmatprep.subr.mxu0 0.0
    %3638 = vmatpush2.msra.mxu0 0.0
    %3639 = vmatprep.subr.mxu0 0.0
    %3640 = vmatpush2.msra.mxu0 0.0
    %3641 = vmatprep.subr.mxu0 0.0
    %3642 = vmatpush2.msra.mxu0 0.0
    %3643 = vmatprep.subr.mxu0 0.0
    %3644 = vmatpush2.msra.mxu0 0.0
    %3645 = vmatprep.subr.mxu0 0.0
    %3646 = vmatpush2.msra.mxu0 0.0
    %v3647 = vand.u32 %v108, 4294901760
    %3648 = vmatprep.subr.mxu0 %v3647
    %v3649 = vand.u32 %v106, 4294901760
    %3650 = vmatpush2.msra.mxu0 %v3649
    %v3651 = vand.u32 %v100, 4294901760
    %3652 = vmatprep.subr.mxu0 %v3651
    %v3653 = vand.u32 %v98, 4294901760
    %3654 = vmatpush2.msra.mxu0 %v3653
    %v3655 = vand.u32 %v2571, 4294901760
    %3656 = vmatprep.mubr.f32.mxu0 %v3655
    %v3657 = vand.u32 %v2561, 4294901760
    %3658 = vmatmul.mubr.f32.gmra.mxu0 %v3657
    %v3659 = vpop.f32.mrf.mxu0
    %v3660 = vadd.f32 %v3527, %v3659
    %v3661 = vpop.f32.mrf.mxu0
    %v3662 = vadd.f32 %v3529, %v3661
    %v3663 = vand.u32 %v2574, 4294901760
    %3664 = vmatprep.mubr.f32.mxu0 %v3663
    %v3665 = vand.u32 %v2563, 4294901760
    %3666 = vmatmul.mubr.f32.gmra.mxu0 %v3665
    %v3667 = vpop.f32.mrf.mxu0
    %v3668 = vadd.f32 %v3535, %v3667
    %v3669 = vpop.f32.mrf.mxu0
    %v3670 = vadd.f32 %v3537, %v3669
    %v3671 = vand.u32 %v2577, 4294901760
    %3672 = vmatprep.mubr.f32.mxu0 %v3671
    %v3673 = vand.u32 %v2565, 4294901760
    %3674 = vmatmul.mubr.f32.gmra.mxu0 %v3673
    %v3675 = vpop.f32.mrf.mxu0
    %v3676 = vadd.f32 %v3543, %v3675
    %v3677 = vpop.f32.mrf.mxu0
    %v3678 = vadd.f32 %v3545, %v3677
    %v3679 = vand.u32 %v2580, 4294901760
    %3680 = vmatprep.mubr.f32.mxu0 %v3679
    %v3681 = vand.u32 %v2567, 4294901760
    %3682 = vmatmul.mubr.f32.gmra.mxu0 %v3681
    %v3683 = vpop.f32.mrf.mxu0
    %v3684 = vadd.f32 %v3551, %v3683
    %v3685 = vpop.f32.mrf.mxu0
    %v3686 = vadd.f32 %v3553, %v3685
    %3687 = vdwg.mxu0
    %v3688 = vand.u32 %v2560, 4294901760
    %3689 = vmatprep.subr.mxu0 %v3688
    %v3690 = vand.u32 %v2559, 4294901760
    %3691 = vmatpush1.msra.mxu0 %v3690
    %v3692 = vand.u32 %v2556, 4294901760
    %3693 = vmatprep.subr.mxu0 %v3692
    %v3694 = vand.u32 %v2555, 4294901760
    %3695 = vmatpush1.msra.mxu0 %v3694
    %v3696 = vand.u32 %v2552, 4294901760
    %3697 = vmatprep.subr.mxu0 %v3696
    %v3698 = vand.u32 %v2551, 4294901760
    %3699 = vmatpush1.msra.mxu0 %v3698
    %v3700 = vand.u32 %v2548, 4294901760
    %3701 = vmatprep.subr.mxu0 %v3700
    %v3702 = vand.u32 %v2547, 4294901760
    %3703 = vmatpush1.msra.mxu0 %v3702
    %v3704 = vand.u32 %v2544, 4294901760
    %3705 = vmatprep.subr.mxu0 %v3704
    %v3706 = vand.u32 %v2543, 4294901760
    %3707 = vmatpush1.msra.mxu0 %v3706
    %v3708 = vand.u32 %v2540, 4294901760
    %3709 = vmatprep.subr.mxu0 %v3708
    %v3710 = vand.u32 %v2539, 4294901760
    %3711 = vmatpush1.msra.mxu0 %v3710
    %v3712 = vand.u32 %v2536, 4294901760
    %3713 = vmatprep.subr.mxu0 %v3712
    %v3714 = vand.u32 %v2535, 4294901760
    %3715 = vmatpush1.msra.mxu0 %v3714
    %v3716 = vand.u32 %v2532, 4294901760
    %3717 = vmatprep.subr.mxu0 %v3716
    %v3718 = vand.u32 %v2531, 4294901760
    %3719 = vmatpush1.msra.mxu0 %v3718
    %v3720 = vand.u32 %v2528, 4294901760
    %3721 = vmatprep.subr.mxu0 %v3720
    %v3722 = vand.u32 %v2527, 4294901760
    %3723 = vmatpush1.msra.mxu0 %v3722
    %v3724 = vand.u32 %v2524, 4294901760
    %3725 = vmatprep.subr.mxu0 %v3724
    %v3726 = vand.u32 %v2523, 4294901760
    %3727 = vmatpush1.msra.mxu0 %v3726
    %v3728 = vand.u32 %v2520, 4294901760
    %3729 = vmatprep.subr.mxu0 %v3728
    %v3730 = vand.u32 %v2519, 4294901760
    %3731 = vmatpush1.msra.mxu0 %v3730
    %v3732 = vand.u32 %v2516, 4294901760
    %3733 = vmatprep.subr.mxu0 %v3732
    %v3734 = vand.u32 %v2515, 4294901760
    %3735 = vmatpush1.msra.mxu0 %v3734
    %v3736 = vand.u32 %v2512, 4294901760
    %3737 = vmatprep.subr.mxu0 %v3736
    %v3738 = vand.u32 %v2511, 4294901760
    %3739 = vmatpush1.msra.mxu0 %v3738
    %v3740 = vand.u32 %v2508, 4294901760
    %3741 = vmatprep.subr.mxu0 %v3740
    %v3742 = vand.u32 %v2507, 4294901760
    %3743 = vmatpush1.msra.mxu0 %v3742
    %v3744 = vand.u32 %v2504, 4294901760
    %3745 = vmatprep.subr.mxu0 %v3744
    %v3746 = vand.u32 %v2503, 4294901760
    %3747 = vmatpush1.msra.mxu0 %v3746
    %v3748 = vand.u32 %v2500, 4294901760
    %3749 = vmatprep.subr.mxu0 %v3748
    %v3750 = vand.u32 %v2499, 4294901760
    %3751 = vmatpush1.msra.mxu0 %v3750
    %3752 = vmatprep.subr.mxu0 0.0
    %3753 = vmatpush2.msra.mxu0 0.0
    %3754 = vmatprep.subr.mxu0 0.0
    %3755 = vmatpush2.msra.mxu0 0.0
    %3756 = vmatprep.subr.mxu0 0.0
    %3757 = vmatpush2.msra.mxu0 0.0
    %3758 = vmatprep.subr.mxu0 0.0
    %3759 = vmatpush2.msra.mxu0 0.0
    %3760 = vmatprep.subr.mxu0 0.0
    %3761 = vmatpush2.msra.mxu0 0.0
    %3762 = vmatprep.subr.mxu0 0.0
    %3763 = vmatpush2.msra.mxu0 0.0
    %3764 = vmatprep.subr.mxu0 0.0
    %3765 = vmatpush2.msra.mxu0 0.0
    %3766 = vmatprep.subr.mxu0 0.0
    %3767 = vmatpush2.msra.mxu0 0.0
    %3768 = vmatprep.subr.mxu0 0.0
    %3769 = vmatpush2.msra.mxu0 0.0
    %3770 = vmatprep.subr.mxu0 0.0
    %3771 = vmatpush2.msra.mxu0 0.0
    %3772 = vmatprep.subr.mxu0 0.0
    %3773 = vmatpush2.msra.mxu0 0.0
    %3774 = vmatprep.subr.mxu0 0.0
    %3775 = vmatpush2.msra.mxu0 0.0
    %3776 = vmatprep.subr.mxu0 0.0
    %3777 = vmatpush2.msra.mxu0 0.0
    %3778 = vmatprep.subr.mxu0 0.0
    %3779 = vmatpush2.msra.mxu0 0.0
    %v3780 = vand.u32 %v112, 4294901760
    %3781 = vmatprep.subr.mxu0 %v3780
    %v3782 = vand.u32 %v110, 4294901760
    %3783 = vmatpush2.msra.mxu0 %v3782
    %v3784 = vand.u32 %v104, 4294901760
    %3785 = vmatprep.subr.mxu0 %v3784
    %v3786 = vand.u32 %v102, 4294901760
    %3787 = vmatpush2.msra.mxu0 %v3786
    %v3788 = vand.u32 %v2571, 4294901760
    %v3789 = vsub.f32 %v2571, %v3788
    %v3790 = vand.u32 %v3789, 4294901760
    %v3791 = vsub.f32 %v3789, %v3790
    %v3792 = vand.u32 %v3791, 4294901760
    %3793 = vmatprep.mubr.f32.mxu0 %v3792
    %v3794 = vand.u32 %v2561, 4294901760
    %v3795 = vsub.f32 %v2561, %v3794
    %v3796 = vand.u32 %v3795, 4294901760
    %v3797 = vsub.f32 %v3795, %v3796
    %v3798 = vand.u32 %v3797, 4294901760
    %3799 = vmatmul.mubr.f32.gmra.mxu0 %v3798
    %v3800 = vpop.f32.mrf.mxu0
    %v3801 = vadd.f32 0.0, %v3800
    %v3802 = vpop.f32.mrf.mxu0
    %v3803 = vadd.f32 0.0, %v3802
    %v3804 = vand.u32 %v2574, 4294901760
    %v3805 = vsub.f32 %v2574, %v3804
    %v3806 = vand.u32 %v3805, 4294901760
    %v3807 = vsub.f32 %v3805, %v3806
    %v3808 = vand.u32 %v3807, 4294901760
    %3809 = vmatprep.mubr.f32.mxu0 %v3808
    %v3810 = vand.u32 %v2563, 4294901760
    %v3811 = vsub.f32 %v2563, %v3810
    %v3812 = vand.u32 %v3811, 4294901760
    %v3813 = vsub.f32 %v3811, %v3812
    %v3814 = vand.u32 %v3813, 4294901760
    %3815 = vmatmul.mubr.f32.gmra.mxu0 %v3814
    %v3816 = vpop.f32.mrf.mxu0
    %v3817 = vadd.f32 0.0, %v3816
    %v3818 = vpop.f32.mrf.mxu0
    %v3819 = vadd.f32 0.0, %v3818
    %v3820 = vand.u32 %v2577, 4294901760
    %v3821 = vsub.f32 %v2577, %v3820
    %v3822 = vand.u32 %v3821, 4294901760
    %v3823 = vsub.f32 %v3821, %v3822
    %v3824 = vand.u32 %v3823, 4294901760
    %3825 = vmatprep.mubr.f32.mxu0 %v3824
    %v3826 = vand.u32 %v2565, 4294901760
    %v3827 = vsub.f32 %v2565, %v3826
    %v3828 = vand.u32 %v3827, 4294901760
    %v3829 = vsub.f32 %v3827, %v3828
    %v3830 = vand.u32 %v3829, 4294901760
    %3831 = vmatmul.mubr.f32.gmra.mxu0 %v3830
    %v3832 = vpop.f32.mrf.mxu0
    %v3833 = vadd.f32 0.0, %v3832
    %v3834 = vpop.f32.mrf.mxu0
    %v3835 = vadd.f32 0.0, %v3834
    %v3836 = vand.u32 %v2580, 4294901760
    %v3837 = vsub.f32 %v2580, %v3836
    %v3838 = vand.u32 %v3837, 4294901760
    %v3839 = vsub.f32 %v3837, %v3838
    %v3840 = vand.u32 %v3839, 4294901760
    %3841 = vmatprep.mubr.f32.mxu0 %v3840
    %v3842 = vand.u32 %v2567, 4294901760
    %v3843 = vsub.f32 %v2567, %v3842
    %v3844 = vand.u32 %v3843, 4294901760
    %v3845 = vsub.f32 %v3843, %v3844
    %v3846 = vand.u32 %v3845, 4294901760
    %3847 = vmatmul.mubr.f32.gmra.mxu0 %v3846
    %v3848 = vpop.f32.mrf.mxu0
    %v3849 = vadd.f32 0.0, %v3848
    %v3850 = vpop.f32.mrf.mxu0
    %v3851 = vadd.f32 0.0, %v3850
    %3852 = vdwg.mxu0
    %v3853 = vand.u32 %v2560, 4294901760
    %v3854 = vsub.f32 %v2560, %v3853
    %v3855 = vand.u32 %v3854, 4294901760
    %v3856 = vsub.f32 %v3854, %v3855
    %v3857 = vand.u32 %v3856, 4294901760
    %3858 = vmatprep.subr.mxu0 %v3857
    %v3859 = vand.u32 %v2559, 4294901760
    %v3860 = vsub.f32 %v2559, %v3859
    %v3861 = vand.u32 %v3860, 4294901760
    %v3862 = vsub.f32 %v3860, %v3861
    %v3863 = vand.u32 %v3862, 4294901760
    %3864 = vmatpush1.msra.mxu0 %v3863
    %v3865 = vand.u32 %v2556, 4294901760
    %v3866 = vsub.f32 %v2556, %v3865
    %v3867 = vand.u32 %v3866, 4294901760
    %v3868 = vsub.f32 %v3866, %v3867
    %v3869 = vand.u32 %v3868, 4294901760
    %3870 = vmatprep.subr.mxu0 %v3869
    %v3871 = vand.u32 %v2555, 4294901760
    %v3872 = vsub.f32 %v2555, %v3871
    %v3873 = vand.u32 %v3872, 4294901760
    %v3874 = vsub.f32 %v3872, %v3873
    %v3875 = vand.u32 %v3874, 4294901760
    %3876 = vmatpush1.msra.mxu0 %v3875
    %v3877 = vand.u32 %v2552, 4294901760
    %v3878 = vsub.f32 %v2552, %v3877
    %v3879 = vand.u32 %v3878, 4294901760
    %v3880 = vsub.f32 %v3878, %v3879
    %v3881 = vand.u32 %v3880, 4294901760
    %3882 = vmatprep.subr.mxu0 %v3881
    %v3883 = vand.u32 %v2551, 4294901760
    %v3884 = vsub.f32 %v2551, %v3883
    %v3885 = vand.u32 %v3884, 4294901760
    %v3886 = vsub.f32 %v3884, %v3885
    %v3887 = vand.u32 %v3886, 4294901760
    %3888 = vmatpush1.msra.mxu0 %v3887
    %v3889 = vand.u32 %v2548, 4294901760
    %v3890 = vsub.f32 %v2548, %v3889
    %v3891 = vand.u32 %v3890, 4294901760
    %v3892 = vsub.f32 %v3890, %v3891
    %v3893 = vand.u32 %v3892, 4294901760
    %3894 = vmatprep.subr.mxu0 %v3893
    %v3895 = vand.u32 %v2547, 4294901760
    %v3896 = vsub.f32 %v2547, %v3895
    %v3897 = vand.u32 %v3896, 4294901760
    %v3898 = vsub.f32 %v3896, %v3897
    %v3899 = vand.u32 %v3898, 4294901760
    %3900 = vmatpush1.msra.mxu0 %v3899
    %v3901 = vand.u32 %v2544, 4294901760
    %v3902 = vsub.f32 %v2544, %v3901
    %v3903 = vand.u32 %v3902, 4294901760
    %v3904 = vsub.f32 %v3902, %v3903
    %v3905 = vand.u32 %v3904, 4294901760
    %3906 = vmatprep.subr.mxu0 %v3905
    %v3907 = vand.u32 %v2543, 4294901760
    %v3908 = vsub.f32 %v2543, %v3907
    %v3909 = vand.u32 %v3908, 4294901760
    %v3910 = vsub.f32 %v3908, %v3909
    %v3911 = vand.u32 %v3910, 4294901760
    %3912 = vmatpush1.msra.mxu0 %v3911
    %v3913 = vand.u32 %v2540, 4294901760
    %v3914 = vsub.f32 %v2540, %v3913
    %v3915 = vand.u32 %v3914, 4294901760
    %v3916 = vsub.f32 %v3914, %v3915
    %v3917 = vand.u32 %v3916, 4294901760
    %3918 = vmatprep.subr.mxu0 %v3917
    %v3919 = vand.u32 %v2539, 4294901760
    %v3920 = vsub.f32 %v2539, %v3919
    %v3921 = vand.u32 %v3920, 4294901760
    %v3922 = vsub.f32 %v3920, %v3921
    %v3923 = vand.u32 %v3922, 4294901760
    %3924 = vmatpush1.msra.mxu0 %v3923
    %v3925 = vand.u32 %v2536, 4294901760
    %v3926 = vsub.f32 %v2536, %v3925
    %v3927 = vand.u32 %v3926, 4294901760
    %v3928 = vsub.f32 %v3926, %v3927
    %v3929 = vand.u32 %v3928, 4294901760
    %3930 = vmatprep.subr.mxu0 %v3929
    %v3931 = vand.u32 %v2535, 4294901760
    %v3932 = vsub.f32 %v2535, %v3931
    %v3933 = vand.u32 %v3932, 4294901760
    %v3934 = vsub.f32 %v3932, %v3933
    %v3935 = vand.u32 %v3934, 4294901760
    %3936 = vmatpush1.msra.mxu0 %v3935
    %v3937 = vand.u32 %v2532, 4294901760
    %v3938 = vsub.f32 %v2532, %v3937
    %v3939 = vand.u32 %v3938, 4294901760
    %v3940 = vsub.f32 %v3938, %v3939
    %v3941 = vand.u32 %v3940, 4294901760
    %3942 = vmatprep.subr.mxu0 %v3941
    %v3943 = vand.u32 %v2531, 4294901760
    %v3944 = vsub.f32 %v2531, %v3943
    %v3945 = vand.u32 %v3944, 4294901760
    %v3946 = vsub.f32 %v3944, %v3945
    %v3947 = vand.u32 %v3946, 4294901760
    %3948 = vmatpush1.msra.mxu0 %v3947
    %v3949 = vand.u32 %v2528, 4294901760
    %v3950 = vsub.f32 %v2528, %v3949
    %v3951 = vand.u32 %v3950, 4294901760
    %v3952 = vsub.f32 %v3950, %v3951
    %v3953 = vand.u32 %v3952, 4294901760
    %3954 = vmatprep.subr.mxu0 %v3953
    %v3955 = vand.u32 %v2527, 4294901760
    %v3956 = vsub.f32 %v2527, %v3955
    %v3957 = vand.u32 %v3956, 4294901760
    %v3958 = vsub.f32 %v3956, %v3957
    %v3959 = vand.u32 %v3958, 4294901760
    %3960 = vmatpush1.msra.mxu0 %v3959
    %v3961 = vand.u32 %v2524, 4294901760
    %v3962 = vsub.f32 %v2524, %v3961
    %v3963 = vand.u32 %v3962, 4294901760
    %v3964 = vsub.f32 %v3962, %v3963
    %v3965 = vand.u32 %v3964, 4294901760
    %3966 = vmatprep.subr.mxu0 %v3965
    %v3967 = vand.u32 %v2523, 4294901760
    %v3968 = vsub.f32 %v2523, %v3967
    %v3969 = vand.u32 %v3968, 4294901760
    %v3970 = vsub.f32 %v3968, %v3969
    %v3971 = vand.u32 %v3970, 4294901760
    %3972 = vmatpush1.msra.mxu0 %v3971
    %v3973 = vand.u32 %v2520, 4294901760
    %v3974 = vsub.f32 %v2520, %v3973
    %v3975 = vand.u32 %v3974, 4294901760
    %v3976 = vsub.f32 %v3974, %v3975
    %v3977 = vand.u32 %v3976, 4294901760
    %3978 = vmatprep.subr.mxu0 %v3977
    %v3979 = vand.u32 %v2519, 4294901760
    %v3980 = vsub.f32 %v2519, %v3979
    %v3981 = vand.u32 %v3980, 4294901760
    %v3982 = vsub.f32 %v3980, %v3981
    %v3983 = vand.u32 %v3982, 4294901760
    %3984 = vmatpush1.msra.mxu0 %v3983
    %v3985 = vand.u32 %v2516, 4294901760
    %v3986 = vsub.f32 %v2516, %v3985
    %v3987 = vand.u32 %v3986, 4294901760
    %v3988 = vsub.f32 %v3986, %v3987
    %v3989 = vand.u32 %v3988, 4294901760
    %3990 = vmatprep.subr.mxu0 %v3989
    %v3991 = vand.u32 %v2515, 4294901760
    %v3992 = vsub.f32 %v2515, %v3991
    %v3993 = vand.u32 %v3992, 4294901760
    %v3994 = vsub.f32 %v3992, %v3993
    %v3995 = vand.u32 %v3994, 4294901760
    %3996 = vmatpush1.msra.mxu0 %v3995
    %v3997 = vand.u32 %v2512, 4294901760
    %v3998 = vsub.f32 %v2512, %v3997
    %v3999 = vand.u32 %v3998, 4294901760
    %v4000 = vsub.f32 %v3998, %v3999
    %v4001 = vand.u32 %v4000, 4294901760
    %4002 = vmatprep.subr.mxu0 %v4001
    %v4003 = vand.u32 %v2511, 4294901760
    %v4004 = vsub.f32 %v2511, %v4003
    %v4005 = vand.u32 %v4004, 4294901760
    %v4006 = vsub.f32 %v4004, %v4005
    %v4007 = vand.u32 %v4006, 4294901760
    %4008 = vmatpush1.msra.mxu0 %v4007
    %v4009 = vand.u32 %v2508, 4294901760
    %v4010 = vsub.f32 %v2508, %v4009
    %v4011 = vand.u32 %v4010, 4294901760
    %v4012 = vsub.f32 %v4010, %v4011
    %v4013 = vand.u32 %v4012, 4294901760
    %4014 = vmatprep.subr.mxu0 %v4013
    %v4015 = vand.u32 %v2507, 4294901760
    %v4016 = vsub.f32 %v2507, %v4015
    %v4017 = vand.u32 %v4016, 4294901760
    %v4018 = vsub.f32 %v4016, %v4017
    %v4019 = vand.u32 %v4018, 4294901760
    %4020 = vmatpush1.msra.mxu0 %v4019
    %v4021 = vand.u32 %v2504, 4294901760
    %v4022 = vsub.f32 %v2504, %v4021
    %v4023 = vand.u32 %v4022, 4294901760
    %v4024 = vsub.f32 %v4022, %v4023
    %v4025 = vand.u32 %v4024, 4294901760
    %4026 = vmatprep.subr.mxu0 %v4025
    %v4027 = vand.u32 %v2503, 4294901760
    %v4028 = vsub.f32 %v2503, %v4027
    %v4029 = vand.u32 %v4028, 4294901760
    %v4030 = vsub.f32 %v4028, %v4029
    %v4031 = vand.u32 %v4030, 4294901760
    %4032 = vmatpush1.msra.mxu0 %v4031
    %v4033 = vand.u32 %v2500, 4294901760
    %v4034 = vsub.f32 %v2500, %v4033
    %v4035 = vand.u32 %v4034, 4294901760
    %v4036 = vsub.f32 %v4034, %v4035
    %v4037 = vand.u32 %v4036, 4294901760
    %4038 = vmatprep.subr.mxu0 %v4037
    %v4039 = vand.u32 %v2499, 4294901760
    %v4040 = vsub.f32 %v2499, %v4039
    %v4041 = vand.u32 %v4040, 4294901760
    %v4042 = vsub.f32 %v4040, %v4041
    %v4043 = vand.u32 %v4042, 4294901760
    %4044 = vmatpush1.msra.mxu0 %v4043
    %4045 = vmatprep.subr.mxu0 0.0
    %4046 = vmatpush2.msra.mxu0 0.0
    %4047 = vmatprep.subr.mxu0 0.0
    %4048 = vmatpush2.msra.mxu0 0.0
    %4049 = vmatprep.subr.mxu0 0.0
    %4050 = vmatpush2.msra.mxu0 0.0
    %4051 = vmatprep.subr.mxu0 0.0
    %4052 = vmatpush2.msra.mxu0 0.0
    %4053 = vmatprep.subr.mxu0 0.0
    %4054 = vmatpush2.msra.mxu0 0.0
    %4055 = vmatprep.subr.mxu0 0.0
    %4056 = vmatpush2.msra.mxu0 0.0
    %4057 = vmatprep.subr.mxu0 0.0
    %4058 = vmatpush2.msra.mxu0 0.0
    %4059 = vmatprep.subr.mxu0 0.0
    %4060 = vmatpush2.msra.mxu0 0.0
    %4061 = vmatprep.subr.mxu0 0.0
    %4062 = vmatpush2.msra.mxu0 0.0
    %4063 = vmatprep.subr.mxu0 0.0
    %4064 = vmatpush2.msra.mxu0 0.0
    %4065 = vmatprep.subr.mxu0 0.0
    %4066 = vmatpush2.msra.mxu0 0.0
    %4067 = vmatprep.subr.mxu0 0.0
    %4068 = vmatpush2.msra.mxu0 0.0
    %4069 = vmatprep.subr.mxu0 0.0
    %4070 = vmatpush2.msra.mxu0 0.0
    %4071 = vmatprep.subr.mxu0 0.0
    %4072 = vmatpush2.msra.mxu0 0.0
    %v4073 = vand.u32 %v112, 4294901760
    %v4074 = vsub.f32 %v112, %v4073
    %v4075 = vand.u32 %v4074, 4294901760
    %v4076 = vsub.f32 %v4074, %v4075
    %v4077 = vand.u32 %v4076, 4294901760
    %4078 = vmatprep.subr.mxu0 %v4077
    %v4079 = vand.u32 %v110, 4294901760
    %v4080 = vsub.f32 %v110, %v4079
    %v4081 = vand.u32 %v4080, 4294901760
    %v4082 = vsub.f32 %v4080, %v4081
    %v4083 = vand.u32 %v4082, 4294901760
    %4084 = vmatpush2.msra.mxu0 %v4083
    %v4085 = vand.u32 %v104, 4294901760
    %v4086 = vsub.f32 %v104, %v4085
    %v4087 = vand.u32 %v4086, 4294901760
    %v4088 = vsub.f32 %v4086, %v4087
    %v4089 = vand.u32 %v4088, 4294901760
    %4090 = vmatprep.subr.mxu0 %v4089
    %v4091 = vand.u32 %v102, 4294901760
    %v4092 = vsub.f32 %v102, %v4091
    %v4093 = vand.u32 %v4092, 4294901760
    %v4094 = vsub.f32 %v4092, %v4093
    %v4095 = vand.u32 %v4094, 4294901760
    %4096 = vmatpush2.msra.mxu0 %v4095
    %v4097 = vand.u32 %v2571, 4294901760
    %4098 = vmatprep.mubr.f32.mxu0 %v4097
    %v4099 = vand.u32 %v2561, 4294901760
    %4100 = vmatmul.mubr.f32.gmra.mxu0 %v4099
    %v4101 = vpop.f32.mrf.mxu0
    %v4102 = vadd.f32 %v3801, %v4101
    %v4103 = vpop.f32.mrf.mxu0
    %v4104 = vadd.f32 %v3803, %v4103
    %v4105 = vand.u32 %v2574, 4294901760
    %4106 = vmatprep.mubr.f32.mxu0 %v4105
    %v4107 = vand.u32 %v2563, 4294901760
    %4108 = vmatmul.mubr.f32.gmra.mxu0 %v4107
    %v4109 = vpop.f32.mrf.mxu0
    %v4110 = vadd.f32 %v3817, %v4109
    %v4111 = vpop.f32.mrf.mxu0
    %v4112 = vadd.f32 %v3819, %v4111
    %v4113 = vand.u32 %v2577, 4294901760
    %4114 = vmatprep.mubr.f32.mxu0 %v4113
    %v4115 = vand.u32 %v2565, 4294901760
    %4116 = vmatmul.mubr.f32.gmra.mxu0 %v4115
    %v4117 = vpop.f32.mrf.mxu0
    %v4118 = vadd.f32 %v3833, %v4117
    %v4119 = vpop.f32.mrf.mxu0
    %v4120 = vadd.f32 %v3835, %v4119
    %v4121 = vand.u32 %v2580, 4294901760
    %4122 = vmatprep.mubr.f32.mxu0 %v4121
    %v4123 = vand.u32 %v2567, 4294901760
    %4124 = vmatmul.mubr.f32.gmra.mxu0 %v4123
    %v4125 = vpop.f32.mrf.mxu0
    %v4126 = vadd.f32 %v3849, %v4125
    %v4127 = vpop.f32.mrf.mxu0
    %v4128 = vadd.f32 %v3851, %v4127
    %4129 = vdwg.mxu0
    %v4130 = vand.u32 %v2560, 4294901760
    %v4131 = vsub.f32 %v2560, %v4130
    %4132 = vmatprep.subr.mxu0 %v4131
    %v4133 = vand.u32 %v2559, 4294901760
    %v4134 = vsub.f32 %v2559, %v4133
    %4135 = vmatpush1.msra.mxu0 %v4134
    %v4136 = vand.u32 %v2556, 4294901760
    %v4137 = vsub.f32 %v2556, %v4136
    %4138 = vmatprep.subr.mxu0 %v4137
    %v4139 = vand.u32 %v2555, 4294901760
    %v4140 = vsub.f32 %v2555, %v4139
    %4141 = vmatpush1.msra.mxu0 %v4140
    %v4142 = vand.u32 %v2552, 4294901760
    %v4143 = vsub.f32 %v2552, %v4142
    %4144 = vmatprep.subr.mxu0 %v4143
    %v4145 = vand.u32 %v2551, 4294901760
    %v4146 = vsub.f32 %v2551, %v4145
    %4147 = vmatpush1.msra.mxu0 %v4146
    %v4148 = vand.u32 %v2548, 4294901760
    %v4149 = vsub.f32 %v2548, %v4148
    %4150 = vmatprep.subr.mxu0 %v4149
    %v4151 = vand.u32 %v2547, 4294901760
    %v4152 = vsub.f32 %v2547, %v4151
    %4153 = vmatpush1.msra.mxu0 %v4152
    %v4154 = vand.u32 %v2544, 4294901760
    %v4155 = vsub.f32 %v2544, %v4154
    %4156 = vmatprep.subr.mxu0 %v4155
    %v4157 = vand.u32 %v2543, 4294901760
    %v4158 = vsub.f32 %v2543, %v4157
    %4159 = vmatpush1.msra.mxu0 %v4158
    %v4160 = vand.u32 %v2540, 4294901760
    %v4161 = vsub.f32 %v2540, %v4160
    %4162 = vmatprep.subr.mxu0 %v4161
    %v4163 = vand.u32 %v2539, 4294901760
    %v4164 = vsub.f32 %v2539, %v4163
    %4165 = vmatpush1.msra.mxu0 %v4164
    %v4166 = vand.u32 %v2536, 4294901760
    %v4167 = vsub.f32 %v2536, %v4166
    %4168 = vmatprep.subr.mxu0 %v4167
    %v4169 = vand.u32 %v2535, 4294901760
    %v4170 = vsub.f32 %v2535, %v4169
    %4171 = vmatpush1.msra.mxu0 %v4170
    %v4172 = vand.u32 %v2532, 4294901760
    %v4173 = vsub.f32 %v2532, %v4172
    %4174 = vmatprep.subr.mxu0 %v4173
    %v4175 = vand.u32 %v2531, 4294901760
    %v4176 = vsub.f32 %v2531, %v4175
    %4177 = vmatpush1.msra.mxu0 %v4176
    %v4178 = vand.u32 %v2528, 4294901760
    %v4179 = vsub.f32 %v2528, %v4178
    %4180 = vmatprep.subr.mxu0 %v4179
    %v4181 = vand.u32 %v2527, 4294901760
    %v4182 = vsub.f32 %v2527, %v4181
    %4183 = vmatpush1.msra.mxu0 %v4182
    %v4184 = vand.u32 %v2524, 4294901760
    %v4185 = vsub.f32 %v2524, %v4184
    %4186 = vmatprep.subr.mxu0 %v4185
    %v4187 = vand.u32 %v2523, 4294901760
    %v4188 = vsub.f32 %v2523, %v4187
    %4189 = vmatpush1.msra.mxu0 %v4188
    %v4190 = vand.u32 %v2520, 4294901760
    %v4191 = vsub.f32 %v2520, %v4190
    %4192 = vmatprep.subr.mxu0 %v4191
    %v4193 = vand.u32 %v2519, 4294901760
    %v4194 = vsub.f32 %v2519, %v4193
    %4195 = vmatpush1.msra.mxu0 %v4194
    %v4196 = vand.u32 %v2516, 4294901760
    %v4197 = vsub.f32 %v2516, %v4196
    %4198 = vmatprep.subr.mxu0 %v4197
    %v4199 = vand.u32 %v2515, 4294901760
    %v4200 = vsub.f32 %v2515, %v4199
    %4201 = vmatpush1.msra.mxu0 %v4200
    %v4202 = vand.u32 %v2512, 4294901760
    %v4203 = vsub.f32 %v2512, %v4202
    %4204 = vmatprep.subr.mxu0 %v4203
    %v4205 = vand.u32 %v2511, 4294901760
    %v4206 = vsub.f32 %v2511, %v4205
    %4207 = vmatpush1.msra.mxu0 %v4206
    %v4208 = vand.u32 %v2508, 4294901760
    %v4209 = vsub.f32 %v2508, %v4208
    %4210 = vmatprep.subr.mxu0 %v4209
    %v4211 = vand.u32 %v2507, 4294901760
    %v4212 = vsub.f32 %v2507, %v4211
    %4213 = vmatpush1.msra.mxu0 %v4212
    %v4214 = vand.u32 %v2504, 4294901760
    %v4215 = vsub.f32 %v2504, %v4214
    %4216 = vmatprep.subr.mxu0 %v4215
    %v4217 = vand.u32 %v2503, 4294901760
    %v4218 = vsub.f32 %v2503, %v4217
    %4219 = vmatpush1.msra.mxu0 %v4218
    %v4220 = vand.u32 %v2500, 4294901760
    %v4221 = vsub.f32 %v2500, %v4220
    %4222 = vmatprep.subr.mxu0 %v4221
    %v4223 = vand.u32 %v2499, 4294901760
    %v4224 = vsub.f32 %v2499, %v4223
    %4225 = vmatpush1.msra.mxu0 %v4224
    %4226 = vmatprep.subr.mxu0 0.0
    %4227 = vmatpush2.msra.mxu0 0.0
    %4228 = vmatprep.subr.mxu0 0.0
    %4229 = vmatpush2.msra.mxu0 0.0
    %4230 = vmatprep.subr.mxu0 0.0
    %4231 = vmatpush2.msra.mxu0 0.0
    %4232 = vmatprep.subr.mxu0 0.0
    %4233 = vmatpush2.msra.mxu0 0.0
    %4234 = vmatprep.subr.mxu0 0.0
    %4235 = vmatpush2.msra.mxu0 0.0
    %4236 = vmatprep.subr.mxu0 0.0
    %4237 = vmatpush2.msra.mxu0 0.0
    %4238 = vmatprep.subr.mxu0 0.0
    %4239 = vmatpush2.msra.mxu0 0.0
    %4240 = vmatprep.subr.mxu0 0.0
    %4241 = vmatpush2.msra.mxu0 0.0
    %4242 = vmatprep.subr.mxu0 0.0
    %4243 = vmatpush2.msra.mxu0 0.0
    %4244 = vmatprep.subr.mxu0 0.0
    %4245 = vmatpush2.msra.mxu0 0.0
    %4246 = vmatprep.subr.mxu0 0.0
    %4247 = vmatpush2.msra.mxu0 0.0
    %4248 = vmatprep.subr.mxu0 0.0
    %4249 = vmatpush2.msra.mxu0 0.0
    %4250 = vmatprep.subr.mxu0 0.0
    %4251 = vmatpush2.msra.mxu0 0.0
    %4252 = vmatprep.subr.mxu0 0.0
    %4253 = vmatpush2.msra.mxu0 0.0
    %v4254 = vand.u32 %v112, 4294901760
    %v4255 = vsub.f32 %v112, %v4254
    %4256 = vmatprep.subr.mxu0 %v4255
    %v4257 = vand.u32 %v110, 4294901760
    %v4258 = vsub.f32 %v110, %v4257
    %4259 = vmatpush2.msra.mxu0 %v4258
    %v4260 = vand.u32 %v104, 4294901760
    %v4261 = vsub.f32 %v104, %v4260
    %4262 = vmatprep.subr.mxu0 %v4261
    %v4263 = vand.u32 %v102, 4294901760
    %v4264 = vsub.f32 %v102, %v4263
    %4265 = vmatpush2.msra.mxu0 %v4264
    %v4266 = vand.u32 %v2571, 4294901760
    %v4267 = vsub.f32 %v2571, %v4266
    %4268 = vmatprep.mubr.f32.mxu0 %v4267
    %v4269 = vand.u32 %v2561, 4294901760
    %v4270 = vsub.f32 %v2561, %v4269
    %4271 = vmatmul.mubr.f32.gmra.mxu0 %v4270
    %v4272 = vpop.f32.mrf.mxu0
    %v4273 = vadd.f32 %v4102, %v4272
    %v4274 = vpop.f32.mrf.mxu0
    %v4275 = vadd.f32 %v4104, %v4274
    %v4276 = vand.u32 %v2574, 4294901760
    %v4277 = vsub.f32 %v2574, %v4276
    %4278 = vmatprep.mubr.f32.mxu0 %v4277
    %v4279 = vand.u32 %v2563, 4294901760
    %v4280 = vsub.f32 %v2563, %v4279
    %4281 = vmatmul.mubr.f32.gmra.mxu0 %v4280
    %v4282 = vpop.f32.mrf.mxu0
    %v4283 = vadd.f32 %v4110, %v4282
    %v4284 = vpop.f32.mrf.mxu0
    %v4285 = vadd.f32 %v4112, %v4284
    %v4286 = vand.u32 %v2577, 4294901760
    %v4287 = vsub.f32 %v2577, %v4286
    %4288 = vmatprep.mubr.f32.mxu0 %v4287
    %v4289 = vand.u32 %v2565, 4294901760
    %v4290 = vsub.f32 %v2565, %v4289
    %4291 = vmatmul.mubr.f32.gmra.mxu0 %v4290
    %v4292 = vpop.f32.mrf.mxu0
    %v4293 = vadd.f32 %v4118, %v4292
    %v4294 = vpop.f32.mrf.mxu0
    %v4295 = vadd.f32 %v4120, %v4294
    %v4296 = vand.u32 %v2580, 4294901760
    %v4297 = vsub.f32 %v2580, %v4296
    %4298 = vmatprep.mubr.f32.mxu0 %v4297
    %v4299 = vand.u32 %v2567, 4294901760
    %v4300 = vsub.f32 %v2567, %v4299
    %4301 = vmatmul.mubr.f32.gmra.mxu0 %v4300
    %v4302 = vpop.f32.mrf.mxu0
    %v4303 = vadd.f32 %v4126, %v4302
    %v4304 = vpop.f32.mrf.mxu0
    %v4305 = vadd.f32 %v4128, %v4304
    %4306 = vdwg.mxu0
    %v4307 = vand.u32 %v2560, 4294901760
    %4308 = vmatprep.subr.mxu0 %v4307
    %v4309 = vand.u32 %v2559, 4294901760
    %4310 = vmatpush1.msra.mxu0 %v4309
    %v4311 = vand.u32 %v2556, 4294901760
    %4312 = vmatprep.subr.mxu0 %v4311
    %v4313 = vand.u32 %v2555, 4294901760
    %4314 = vmatpush1.msra.mxu0 %v4313
    %v4315 = vand.u32 %v2552, 4294901760
    %4316 = vmatprep.subr.mxu0 %v4315
    %v4317 = vand.u32 %v2551, 4294901760
    %4318 = vmatpush1.msra.mxu0 %v4317
    %v4319 = vand.u32 %v2548, 4294901760
    %4320 = vmatprep.subr.mxu0 %v4319
    %v4321 = vand.u32 %v2547, 4294901760
    %4322 = vmatpush1.msra.mxu0 %v4321
    %v4323 = vand.u32 %v2544, 4294901760
    %4324 = vmatprep.subr.mxu0 %v4323
    %v4325 = vand.u32 %v2543, 4294901760
    %4326 = vmatpush1.msra.mxu0 %v4325
    %v4327 = vand.u32 %v2540, 4294901760
    %4328 = vmatprep.subr.mxu0 %v4327
    %v4329 = vand.u32 %v2539, 4294901760
    %4330 = vmatpush1.msra.mxu0 %v4329
    %v4331 = vand.u32 %v2536, 4294901760
    %4332 = vmatprep.subr.mxu0 %v4331
    %v4333 = vand.u32 %v2535, 4294901760
    %4334 = vmatpush1.msra.mxu0 %v4333
    %v4335 = vand.u32 %v2532, 4294901760
    %4336 = vmatprep.subr.mxu0 %v4335
    %v4337 = vand.u32 %v2531, 4294901760
    %4338 = vmatpush1.msra.mxu0 %v4337
    %v4339 = vand.u32 %v2528, 4294901760
    %4340 = vmatprep.subr.mxu0 %v4339
    %v4341 = vand.u32 %v2527, 4294901760
    %4342 = vmatpush1.msra.mxu0 %v4341
    %v4343 = vand.u32 %v2524, 4294901760
    %4344 = vmatprep.subr.mxu0 %v4343
    %v4345 = vand.u32 %v2523, 4294901760
    %4346 = vmatpush1.msra.mxu0 %v4345
    %v4347 = vand.u32 %v2520, 4294901760
    %4348 = vmatprep.subr.mxu0 %v4347
    %v4349 = vand.u32 %v2519, 4294901760
    %4350 = vmatpush1.msra.mxu0 %v4349
    %v4351 = vand.u32 %v2516, 4294901760
    %4352 = vmatprep.subr.mxu0 %v4351
    %v4353 = vand.u32 %v2515, 4294901760
    %4354 = vmatpush1.msra.mxu0 %v4353
    %v4355 = vand.u32 %v2512, 4294901760
    %4356 = vmatprep.subr.mxu0 %v4355
    %v4357 = vand.u32 %v2511, 4294901760
    %4358 = vmatpush1.msra.mxu0 %v4357
    %v4359 = vand.u32 %v2508, 4294901760
    %4360 = vmatprep.subr.mxu0 %v4359
    %v4361 = vand.u32 %v2507, 4294901760
    %4362 = vmatpush1.msra.mxu0 %v4361
    %v4363 = vand.u32 %v2504, 4294901760
    %4364 = vmatprep.subr.mxu0 %v4363
    %v4365 = vand.u32 %v2503, 4294901760
    %4366 = vmatpush1.msra.mxu0 %v4365
    %v4367 = vand.u32 %v2500, 4294901760
    %4368 = vmatprep.subr.mxu0 %v4367
    %v4369 = vand.u32 %v2499, 4294901760
    %4370 = vmatpush1.msra.mxu0 %v4369
    %4371 = vmatprep.subr.mxu0 0.0
    %4372 = vmatpush2.msra.mxu0 0.0
    %4373 = vmatprep.subr.mxu0 0.0
    %4374 = vmatpush2.msra.mxu0 0.0
    %4375 = vmatprep.subr.mxu0 0.0
    %4376 = vmatpush2.msra.mxu0 0.0
    %4377 = vmatprep.subr.mxu0 0.0
    %4378 = vmatpush2.msra.mxu0 0.0
    %4379 = vmatprep.subr.mxu0 0.0
    %4380 = vmatpush2.msra.mxu0 0.0
    %4381 = vmatprep.subr.mxu0 0.0
    %4382 = vmatpush2.msra.mxu0 0.0
    %4383 = vmatprep.subr.mxu0 0.0
    %4384 = vmatpush2.msra.mxu0 0.0
    %4385 = vmatprep.subr.mxu0 0.0
    %4386 = vmatpush2.msra.mxu0 0.0
    %4387 = vmatprep.subr.mxu0 0.0
    %4388 = vmatpush2.msra.mxu0 0.0
    %4389 = vmatprep.subr.mxu0 0.0
    %4390 = vmatpush2.msra.mxu0 0.0
    %4391 = vmatprep.subr.mxu0 0.0
    %4392 = vmatpush2.msra.mxu0 0.0
    %4393 = vmatprep.subr.mxu0 0.0
    %4394 = vmatpush2.msra.mxu0 0.0
    %4395 = vmatprep.subr.mxu0 0.0
    %4396 = vmatpush2.msra.mxu0 0.0
    %4397 = vmatprep.subr.mxu0 0.0
    %4398 = vmatpush2.msra.mxu0 0.0
    %v4399 = vand.u32 %v112, 4294901760
    %4400 = vmatprep.subr.mxu0 %v4399
    %v4401 = vand.u32 %v110, 4294901760
    %4402 = vmatpush2.msra.mxu0 %v4401
    %v4403 = vand.u32 %v104, 4294901760
    %4404 = vmatprep.subr.mxu0 %v4403
    %v4405 = vand.u32 %v102, 4294901760
    %4406 = vmatpush2.msra.mxu0 %v4405
    %v4407 = vand.u32 %v2571, 4294901760
    %v4408 = vsub.f32 %v2571, %v4407
    %v4409 = vand.u32 %v4408, 4294901760
    %4410 = vmatprep.mubr.f32.mxu0 %v4409
    %v4411 = vand.u32 %v2561, 4294901760
    %v4412 = vsub.f32 %v2561, %v4411
    %v4413 = vand.u32 %v4412, 4294901760
    %4414 = vmatmul.mubr.f32.gmra.mxu0 %v4413
    %v4415 = vpop.f32.mrf.mxu0
    %v4416 = vadd.f32 %v4273, %v4415
    %v4417 = vpop.f32.mrf.mxu0
    %v4418 = vadd.f32 %v4275, %v4417
    %v4419 = vand.u32 %v2574, 4294901760
    %v4420 = vsub.f32 %v2574, %v4419
    %v4421 = vand.u32 %v4420, 4294901760
    %4422 = vmatprep.mubr.f32.mxu0 %v4421
    %v4423 = vand.u32 %v2563, 4294901760
    %v4424 = vsub.f32 %v2563, %v4423
    %v4425 = vand.u32 %v4424, 4294901760
    %4426 = vmatmul.mubr.f32.gmra.mxu0 %v4425
    %v4427 = vpop.f32.mrf.mxu0
    %v4428 = vadd.f32 %v4283, %v4427
    %v4429 = vpop.f32.mrf.mxu0
    %v4430 = vadd.f32 %v4285, %v4429
    %v4431 = vand.u32 %v2577, 4294901760
    %v4432 = vsub.f32 %v2577, %v4431
    %v4433 = vand.u32 %v4432, 4294901760
    %4434 = vmatprep.mubr.f32.mxu0 %v4433
    %v4435 = vand.u32 %v2565, 4294901760
    %v4436 = vsub.f32 %v2565, %v4435
    %v4437 = vand.u32 %v4436, 4294901760
    %4438 = vmatmul.mubr.f32.gmra.mxu0 %v4437
    %v4439 = vpop.f32.mrf.mxu0
    %v4440 = vadd.f32 %v4293, %v4439
    %v4441 = vpop.f32.mrf.mxu0
    %v4442 = vadd.f32 %v4295, %v4441
    %v4443 = vand.u32 %v2580, 4294901760
    %v4444 = vsub.f32 %v2580, %v4443
    %v4445 = vand.u32 %v4444, 4294901760
    %4446 = vmatprep.mubr.f32.mxu0 %v4445
    %v4447 = vand.u32 %v2567, 4294901760
    %v4448 = vsub.f32 %v2567, %v4447
    %v4449 = vand.u32 %v4448, 4294901760
    %4450 = vmatmul.mubr.f32.gmra.mxu0 %v4449
    %v4451 = vpop.f32.mrf.mxu0
    %v4452 = vadd.f32 %v4303, %v4451
    %v4453 = vpop.f32.mrf.mxu0
    %v4454 = vadd.f32 %v4305, %v4453
    %4455 = vdwg.mxu0
    %v4456 = vand.u32 %v2560, 4294901760
    %v4457 = vsub.f32 %v2560, %v4456
    %v4458 = vand.u32 %v4457, 4294901760
    %4459 = vmatprep.subr.mxu0 %v4458
    %v4460 = vand.u32 %v2559, 4294901760
    %v4461 = vsub.f32 %v2559, %v4460
    %v4462 = vand.u32 %v4461, 4294901760
    %4463 = vmatpush1.msra.mxu0 %v4462
    %v4464 = vand.u32 %v2556, 4294901760
    %v4465 = vsub.f32 %v2556, %v4464
    %v4466 = vand.u32 %v4465, 4294901760
    %4467 = vmatprep.subr.mxu0 %v4466
    %v4468 = vand.u32 %v2555, 4294901760
    %v4469 = vsub.f32 %v2555, %v4468
    %v4470 = vand.u32 %v4469, 4294901760
    %4471 = vmatpush1.msra.mxu0 %v4470
    %v4472 = vand.u32 %v2552, 4294901760
    %v4473 = vsub.f32 %v2552, %v4472
    %v4474 = vand.u32 %v4473, 4294901760
    %4475 = vmatprep.subr.mxu0 %v4474
    %v4476 = vand.u32 %v2551, 4294901760
    %v4477 = vsub.f32 %v2551, %v4476
    %v4478 = vand.u32 %v4477, 4294901760
    %4479 = vmatpush1.msra.mxu0 %v4478
    %v4480 = vand.u32 %v2548, 4294901760
    %v4481 = vsub.f32 %v2548, %v4480
    %v4482 = vand.u32 %v4481, 4294901760
    %4483 = vmatprep.subr.mxu0 %v4482
    %v4484 = vand.u32 %v2547, 4294901760
    %v4485 = vsub.f32 %v2547, %v4484
    %v4486 = vand.u32 %v4485, 4294901760
    %4487 = vmatpush1.msra.mxu0 %v4486
    %v4488 = vand.u32 %v2544, 4294901760
    %v4489 = vsub.f32 %v2544, %v4488
    %v4490 = vand.u32 %v4489, 4294901760
    %4491 = vmatprep.subr.mxu0 %v4490
    %v4492 = vand.u32 %v2543, 4294901760
    %v4493 = vsub.f32 %v2543, %v4492
    %v4494 = vand.u32 %v4493, 4294901760
    %4495 = vmatpush1.msra.mxu0 %v4494
    %v4496 = vand.u32 %v2540, 4294901760
    %v4497 = vsub.f32 %v2540, %v4496
    %v4498 = vand.u32 %v4497, 4294901760
    %4499 = vmatprep.subr.mxu0 %v4498
    %v4500 = vand.u32 %v2539, 4294901760
    %v4501 = vsub.f32 %v2539, %v4500
    %v4502 = vand.u32 %v4501, 4294901760
    %4503 = vmatpush1.msra.mxu0 %v4502
    %v4504 = vand.u32 %v2536, 4294901760
    %v4505 = vsub.f32 %v2536, %v4504
    %v4506 = vand.u32 %v4505, 4294901760
    %4507 = vmatprep.subr.mxu0 %v4506
    %v4508 = vand.u32 %v2535, 4294901760
    %v4509 = vsub.f32 %v2535, %v4508
    %v4510 = vand.u32 %v4509, 4294901760
    %4511 = vmatpush1.msra.mxu0 %v4510
    %v4512 = vand.u32 %v2532, 4294901760
    %v4513 = vsub.f32 %v2532, %v4512
    %v4514 = vand.u32 %v4513, 4294901760
    %4515 = vmatprep.subr.mxu0 %v4514
    %v4516 = vand.u32 %v2531, 4294901760
    %v4517 = vsub.f32 %v2531, %v4516
    %v4518 = vand.u32 %v4517, 4294901760
    %4519 = vmatpush1.msra.mxu0 %v4518
    %v4520 = vand.u32 %v2528, 4294901760
    %v4521 = vsub.f32 %v2528, %v4520
    %v4522 = vand.u32 %v4521, 4294901760
    %4523 = vmatprep.subr.mxu0 %v4522
    %v4524 = vand.u32 %v2527, 4294901760
    %v4525 = vsub.f32 %v2527, %v4524
    %v4526 = vand.u32 %v4525, 4294901760
    %4527 = vmatpush1.msra.mxu0 %v4526
    %v4528 = vand.u32 %v2524, 4294901760
    %v4529 = vsub.f32 %v2524, %v4528
    %v4530 = vand.u32 %v4529, 4294901760
    %4531 = vmatprep.subr.mxu0 %v4530
    %v4532 = vand.u32 %v2523, 4294901760
    %v4533 = vsub.f32 %v2523, %v4532
    %v4534 = vand.u32 %v4533, 4294901760
    %4535 = vmatpush1.msra.mxu0 %v4534
    %v4536 = vand.u32 %v2520, 4294901760
    %v4537 = vsub.f32 %v2520, %v4536
    %v4538 = vand.u32 %v4537, 4294901760
    %4539 = vmatprep.subr.mxu0 %v4538
    %v4540 = vand.u32 %v2519, 4294901760
    %v4541 = vsub.f32 %v2519, %v4540
    %v4542 = vand.u32 %v4541, 4294901760
    %4543 = vmatpush1.msra.mxu0 %v4542
    %v4544 = vand.u32 %v2516, 4294901760
    %v4545 = vsub.f32 %v2516, %v4544
    %v4546 = vand.u32 %v4545, 4294901760
    %4547 = vmatprep.subr.mxu0 %v4546
    %v4548 = vand.u32 %v2515, 4294901760
    %v4549 = vsub.f32 %v2515, %v4548
    %v4550 = vand.u32 %v4549, 4294901760
    %4551 = vmatpush1.msra.mxu0 %v4550
    %v4552 = vand.u32 %v2512, 4294901760
    %v4553 = vsub.f32 %v2512, %v4552
    %v4554 = vand.u32 %v4553, 4294901760
    %4555 = vmatprep.subr.mxu0 %v4554
    %v4556 = vand.u32 %v2511, 4294901760
    %v4557 = vsub.f32 %v2511, %v4556
    %v4558 = vand.u32 %v4557, 4294901760
    %4559 = vmatpush1.msra.mxu0 %v4558
    %v4560 = vand.u32 %v2508, 4294901760
    %v4561 = vsub.f32 %v2508, %v4560
    %v4562 = vand.u32 %v4561, 4294901760
    %4563 = vmatprep.subr.mxu0 %v4562
    %v4564 = vand.u32 %v2507, 4294901760
    %v4565 = vsub.f32 %v2507, %v4564
    %v4566 = vand.u32 %v4565, 4294901760
    %4567 = vmatpush1.msra.mxu0 %v4566
    %v4568 = vand.u32 %v2504, 4294901760
    %v4569 = vsub.f32 %v2504, %v4568
    %v4570 = vand.u32 %v4569, 4294901760
    %4571 = vmatprep.subr.mxu0 %v4570
    %v4572 = vand.u32 %v2503, 4294901760
    %v4573 = vsub.f32 %v2503, %v4572
    %v4574 = vand.u32 %v4573, 4294901760
    %4575 = vmatpush1.msra.mxu0 %v4574
    %v4576 = vand.u32 %v2500, 4294901760
    %v4577 = vsub.f32 %v2500, %v4576
    %v4578 = vand.u32 %v4577, 4294901760
    %4579 = vmatprep.subr.mxu0 %v4578
    %v4580 = vand.u32 %v2499, 4294901760
    %v4581 = vsub.f32 %v2499, %v4580
    %v4582 = vand.u32 %v4581, 4294901760
    %4583 = vmatpush1.msra.mxu0 %v4582
    %4584 = vmatprep.subr.mxu0 0.0
    %4585 = vmatpush2.msra.mxu0 0.0
    %4586 = vmatprep.subr.mxu0 0.0
    %4587 = vmatpush2.msra.mxu0 0.0
    %4588 = vmatprep.subr.mxu0 0.0
    %4589 = vmatpush2.msra.mxu0 0.0
    %4590 = vmatprep.subr.mxu0 0.0
    %4591 = vmatpush2.msra.mxu0 0.0
    %4592 = vmatprep.subr.mxu0 0.0
    %4593 = vmatpush2.msra.mxu0 0.0
    %4594 = vmatprep.subr.mxu0 0.0
    %4595 = vmatpush2.msra.mxu0 0.0
    %4596 = vmatprep.subr.mxu0 0.0
    %4597 = vmatpush2.msra.mxu0 0.0
    %4598 = vmatprep.subr.mxu0 0.0
    %4599 = vmatpush2.msra.mxu0 0.0
    %4600 = vmatprep.subr.mxu0 0.0
    %4601 = vmatpush2.msra.mxu0 0.0
    %4602 = vmatprep.subr.mxu0 0.0
    %4603 = vmatpush2.msra.mxu0 0.0
    %4604 = vmatprep.subr.mxu0 0.0
    %4605 = vmatpush2.msra.mxu0 0.0
    %4606 = vmatprep.subr.mxu0 0.0
    %4607 = vmatpush2.msra.mxu0 0.0
    %4608 = vmatprep.subr.mxu0 0.0
    %4609 = vmatpush2.msra.mxu0 0.0
    %4610 = vmatprep.subr.mxu0 0.0
    %4611 = vmatpush2.msra.mxu0 0.0
    %v4612 = vand.u32 %v112, 4294901760
    %v4613 = vsub.f32 %v112, %v4612
    %v4614 = vand.u32 %v4613, 4294901760
    %4615 = vmatprep.subr.mxu0 %v4614
    %v4616 = vand.u32 %v110, 4294901760
    %v4617 = vsub.f32 %v110, %v4616
    %v4618 = vand.u32 %v4617, 4294901760
    %4619 = vmatpush2.msra.mxu0 %v4618
    %v4620 = vand.u32 %v104, 4294901760
    %v4621 = vsub.f32 %v104, %v4620
    %v4622 = vand.u32 %v4621, 4294901760
    %4623 = vmatprep.subr.mxu0 %v4622
    %v4624 = vand.u32 %v102, 4294901760
    %v4625 = vsub.f32 %v102, %v4624
    %v4626 = vand.u32 %v4625, 4294901760
    %4627 = vmatpush2.msra.mxu0 %v4626
    %v4628 = vand.u32 %v2571, 4294901760
    %4629 = vmatprep.mubr.f32.mxu0 %v4628
    %v4630 = vand.u32 %v2561, 4294901760
    %4631 = vmatmul.mubr.f32.gmra.mxu0 %v4630
    %v4632 = vpop.f32.mrf.mxu0
    %v4633 = vadd.f32 %v4416, %v4632
    %v4634 = vpop.f32.mrf.mxu0
    %v4635 = vadd.f32 %v4418, %v4634
    %v4636 = vand.u32 %v2574, 4294901760
    %4637 = vmatprep.mubr.f32.mxu0 %v4636
    %v4638 = vand.u32 %v2563, 4294901760
    %4639 = vmatmul.mubr.f32.gmra.mxu0 %v4638
    %v4640 = vpop.f32.mrf.mxu0
    %v4641 = vadd.f32 %v4428, %v4640
    %v4642 = vpop.f32.mrf.mxu0
    %v4643 = vadd.f32 %v4430, %v4642
    %v4644 = vand.u32 %v2577, 4294901760
    %4645 = vmatprep.mubr.f32.mxu0 %v4644
    %v4646 = vand.u32 %v2565, 4294901760
    %4647 = vmatmul.mubr.f32.gmra.mxu0 %v4646
    %v4648 = vpop.f32.mrf.mxu0
    %v4649 = vadd.f32 %v4440, %v4648
    %v4650 = vpop.f32.mrf.mxu0
    %v4651 = vadd.f32 %v4442, %v4650
    %v4652 = vand.u32 %v2580, 4294901760
    %4653 = vmatprep.mubr.f32.mxu0 %v4652
    %v4654 = vand.u32 %v2567, 4294901760
    %4655 = vmatmul.mubr.f32.gmra.mxu0 %v4654
    %v4656 = vpop.f32.mrf.mxu0
    %v4657 = vadd.f32 %v4452, %v4656
    %v4658 = vpop.f32.mrf.mxu0
    %v4659 = vadd.f32 %v4454, %v4658
    %4660 = vdwg.mxu0
    %v4661 = vand.u32 %v2560, 4294901760
    %4662 = vmatprep.subr.mxu0 %v4661
    %v4663 = vand.u32 %v2559, 4294901760
    %4664 = vmatpush1.msra.mxu0 %v4663
    %v4665 = vand.u32 %v2556, 4294901760
    %4666 = vmatprep.subr.mxu0 %v4665
    %v4667 = vand.u32 %v2555, 4294901760
    %4668 = vmatpush1.msra.mxu0 %v4667
    %v4669 = vand.u32 %v2552, 4294901760
    %4670 = vmatprep.subr.mxu0 %v4669
    %v4671 = vand.u32 %v2551, 4294901760
    %4672 = vmatpush1.msra.mxu0 %v4671
    %v4673 = vand.u32 %v2548, 4294901760
    %4674 = vmatprep.subr.mxu0 %v4673
    %v4675 = vand.u32 %v2547, 4294901760
    %4676 = vmatpush1.msra.mxu0 %v4675
    %v4677 = vand.u32 %v2544, 4294901760
    %4678 = vmatprep.subr.mxu0 %v4677
    %v4679 = vand.u32 %v2543, 4294901760
    %4680 = vmatpush1.msra.mxu0 %v4679
    %v4681 = vand.u32 %v2540, 4294901760
    %4682 = vmatprep.subr.mxu0 %v4681
    %v4683 = vand.u32 %v2539, 4294901760
    %4684 = vmatpush1.msra.mxu0 %v4683
    %v4685 = vand.u32 %v2536, 4294901760
    %4686 = vmatprep.subr.mxu0 %v4685
    %v4687 = vand.u32 %v2535, 4294901760
    %4688 = vmatpush1.msra.mxu0 %v4687
    %v4689 = vand.u32 %v2532, 4294901760
    %4690 = vmatprep.subr.mxu0 %v4689
    %v4691 = vand.u32 %v2531, 4294901760
    %4692 = vmatpush1.msra.mxu0 %v4691
    %v4693 = vand.u32 %v2528, 4294901760
    %4694 = vmatprep.subr.mxu0 %v4693
    %v4695 = vand.u32 %v2527, 4294901760
    %4696 = vmatpush1.msra.mxu0 %v4695
    %v4697 = vand.u32 %v2524, 4294901760
    %4698 = vmatprep.subr.mxu0 %v4697
    %v4699 = vand.u32 %v2523, 4294901760
    %4700 = vmatpush1.msra.mxu0 %v4699
    %v4701 = vand.u32 %v2520, 4294901760
    %4702 = vmatprep.subr.mxu0 %v4701
    %v4703 = vand.u32 %v2519, 4294901760
    %4704 = vmatpush1.msra.mxu0 %v4703
    %v4705 = vand.u32 %v2516, 4294901760
    %4706 = vmatprep.subr.mxu0 %v4705
    %v4707 = vand.u32 %v2515, 4294901760
    %4708 = vmatpush1.msra.mxu0 %v4707
    %v4709 = vand.u32 %v2512, 4294901760
    %4710 = vmatprep.subr.mxu0 %v4709
    %v4711 = vand.u32 %v2511, 4294901760
    %4712 = vmatpush1.msra.mxu0 %v4711
    %v4713 = vand.u32 %v2508, 4294901760
    %4714 = vmatprep.subr.mxu0 %v4713
    %v4715 = vand.u32 %v2507, 4294901760
    %4716 = vmatpush1.msra.mxu0 %v4715
    %v4717 = vand.u32 %v2504, 4294901760
    %4718 = vmatprep.subr.mxu0 %v4717
    %v4719 = vand.u32 %v2503, 4294901760
    %4720 = vmatpush1.msra.mxu0 %v4719
    %v4721 = vand.u32 %v2500, 4294901760
    %4722 = vmatprep.subr.mxu0 %v4721
    %v4723 = vand.u32 %v2499, 4294901760
    %4724 = vmatpush1.msra.mxu0 %v4723
    %4725 = vmatprep.subr.mxu0 0.0
    %4726 = vmatpush2.msra.mxu0 0.0
    %4727 = vmatprep.subr.mxu0 0.0
    %4728 = vmatpush2.msra.mxu0 0.0
    %4729 = vmatprep.subr.mxu0 0.0
    %4730 = vmatpush2.msra.mxu0 0.0
    %4731 = vmatprep.subr.mxu0 0.0
    %4732 = vmatpush2.msra.mxu0 0.0
    %4733 = vmatprep.subr.mxu0 0.0
    %4734 = vmatpush2.msra.mxu0 0.0
    %4735 = vmatprep.subr.mxu0 0.0
    %4736 = vmatpush2.msra.mxu0 0.0
    %4737 = vmatprep.subr.mxu0 0.0
    %4738 = vmatpush2.msra.mxu0 0.0
    %4739 = vmatprep.subr.mxu0 0.0
    %4740 = vmatpush2.msra.mxu0 0.0
    %4741 = vmatprep.subr.mxu0 0.0
    %4742 = vmatpush2.msra.mxu0 0.0
    %4743 = vmatprep.subr.mxu0 0.0
    %4744 = vmatpush2.msra.mxu0 0.0
    %4745 = vmatprep.subr.mxu0 0.0
    %4746 = vmatpush2.msra.mxu0 0.0
    %4747 = vmatprep.subr.mxu0 0.0
    %4748 = vmatpush2.msra.mxu0 0.0
    %4749 = vmatprep.subr.mxu0 0.0
    %4750 = vmatpush2.msra.mxu0 0.0
    %4751 = vmatprep.subr.mxu0 0.0
    %4752 = vmatpush2.msra.mxu0 0.0
    %v4753 = vand.u32 %v112, 4294901760
    %4754 = vmatprep.subr.mxu0 %v4753
    %v4755 = vand.u32 %v110, 4294901760
    %4756 = vmatpush2.msra.mxu0 %v4755
    %v4757 = vand.u32 %v104, 4294901760
    %4758 = vmatprep.subr.mxu0 %v4757
    %v4759 = vand.u32 %v102, 4294901760
    %4760 = vmatpush2.msra.mxu0 %v4759
    %v4761 = vand.u32 %v2571, 4294901760
    %4762 = vmatprep.mubr.f32.mxu0 %v4761
    %v4763 = vand.u32 %v2561, 4294901760
    %4764 = vmatmul.mubr.f32.gmra.mxu0 %v4763
    %v4765 = vpop.f32.mrf.mxu0
    %v4766 = vadd.f32 %v4633, %v4765
    %v4767 = vpop.f32.mrf.mxu0
    %v4768 = vadd.f32 %v4635, %v4767
    %v4769 = vand.u32 %v2574, 4294901760
    %4770 = vmatprep.mubr.f32.mxu0 %v4769
    %v4771 = vand.u32 %v2563, 4294901760
    %4772 = vmatmul.mubr.f32.gmra.mxu0 %v4771
    %v4773 = vpop.f32.mrf.mxu0
    %v4774 = vadd.f32 %v4641, %v4773
    %v4775 = vpop.f32.mrf.mxu0
    %v4776 = vadd.f32 %v4643, %v4775
    %v4777 = vand.u32 %v2577, 4294901760
    %4778 = vmatprep.mubr.f32.mxu0 %v4777
    %v4779 = vand.u32 %v2565, 4294901760
    %4780 = vmatmul.mubr.f32.gmra.mxu0 %v4779
    %v4781 = vpop.f32.mrf.mxu0
    %v4782 = vadd.f32 %v4649, %v4781
    %v4783 = vpop.f32.mrf.mxu0
    %v4784 = vadd.f32 %v4651, %v4783
    %v4785 = vand.u32 %v2580, 4294901760
    %4786 = vmatprep.mubr.f32.mxu0 %v4785
    %v4787 = vand.u32 %v2567, 4294901760
    %4788 = vmatmul.mubr.f32.gmra.mxu0 %v4787
    %v4789 = vpop.f32.mrf.mxu0
    %v4790 = vadd.f32 %v4657, %v4789
    %v4791 = vpop.f32.mrf.mxu0
    %v4792 = vadd.f32 %v4659, %v4791
    %4793 = vdwg.mxu0
    %4794 = vst [vmem:[#allocation2] sm:$0xff] %v3660
    %4795 = vst [vmem:[#allocation2 + $0x8] sm:$0xff] %v3662
    %4796 = vst [vmem:[#allocation2 + $0x10] sm:$0xff] %v4766
    %4797 = vst [vmem:[#allocation2 + $0x18] sm:$0xff] %v4768
    %4798 = vst [vmem:[#allocation2 + $0x20] sm:$0xff] %v3668
    %4799 = vst [vmem:[#allocation2 + $0x28] sm:$0xff] %v3670
    %4800 = vst [vmem:[#allocation2 + $0x30] sm:$0xff] %v4774
    %4801 = vst [vmem:[#allocation2 + $0x38] sm:$0xff] %v4776
    %4802 = vst [vmem:[#allocation2 + $0x40] sm:$0xff] %v3676
    %4803 = vst [vmem:[#allocation2 + $0x48] sm:$0xff] %v3678
    %4804 = vst [vmem:[#allocation2 + $0x50] sm:$0xff] %v4782
    %4805 = vst [vmem:[#allocation2 + $0x58] sm:$0xff] %v4784
    %4806 = vst [vmem:[#allocation2 + $0x60] sm:$0xff] %v3684
    %4807 = vst [vmem:[#allocation2 + $0x68] sm:$0xff] %v3686
    %4808 = vst [vmem:[#allocation2 + $0x70] sm:$0xff] %v4790
    %4809 = vst [vmem:[#allocation2 + $0x78] sm:$0xff] %v4792
    // Predicated region
    $region38: #{tpu_custom_call.1} parent=1 // pred_check
      _
    $region39: #{tpu_custom_call.1} parent=1 // pred_check_branch
      %4811 = sbr.rel (0) target = $region41
    $region40: #{tpu_custom_call.1} parent=1 // pred_region
      %s4813 = ssub.s32 2048, 2048
      %4814 = vsyncadd [#allocation3], %s4813
      %s4815 = sshll.u32 [#allocation2], 4
      %s4816 = int_to_ptr.vmem [resolvable:$true] %s4815
      %4821 = dma.vmem_to_hbm [thread:$0]  %s4816, 2048, %s9, [#allocation3], 512, 512, 32
    $region41: #{tpu_custom_call.1} parent=1 // pred_fallthru
      _
    // Predicated region
    $region42: #{tpu_custom_call.1} parent=1 // pred_check
      _
    $region43: #{tpu_custom_call.1} parent=1 // pred_check_branch
      %4823 = sbr.rel (0) target = $region45
    $region44: #{tpu_custom_call.1} parent=1 // pred_region
      %4824 = dma.done [#allocation3], 2048
    $region45: #{tpu_custom_call.1} parent=1 // pred_fallthru
      _
    %4825 = vsyncpa [#allocation3], 1

</llo_original>
